<compile_context>
chip_gen: v7x
topology: tpu7x:2x2x1
jax: 0.10.0
libtpu: 0.0.40
codegen_flags: <defaults>
</compile_context>

<pallas_src>
import jax
import jax.numpy as jnp
from jax.experimental import pallas as pl
from jax.experimental.pallas import tpu as pltpu


def _round_up(n, m):
    return (n + m - 1) // m * m


_PARAM_ORDER = [
    'enc_w1', 'enc_b1', 'enc_w2', 'enc_b2', 'enc_w3', 'enc_b3',
    'lith_ln1_g', 'lith_ln1_b', 'lith_fc1_w', 'lith_fc1_b',
    'lith_ln2_g', 'lith_ln2_b', 'lith_fc2_w', 'lith_fc2_b',
    'phi_ln1_g_enc', 'phi_ln1_g_prob', 'phi_ln1_b_enc', 'phi_ln1_b_prob',
    'phi_fc1_w_enc', 'phi_fc1_w_prob', 'phi_fc1_b',
    'phi_ln2_g', 'phi_ln2_b', 'phi_fc2_w', 'phi_fc2_b',
    'sw_ln1_g_enc', 'sw_ln1_g_prob', 'sw_ln1_g_phi',
    'sw_ln1_b_enc', 'sw_ln1_b_prob', 'sw_ln1_b_phi',
    'sw_fc1_w_enc', 'sw_fc1_w_prob', 'sw_fc1_w_phi', 'sw_fc1_b',
    'sw_ln2_g', 'sw_ln2_b', 'sw_fc2_w', 'sw_fc2_b',
]


# --------------------------- parameter packing ----------------------------- #

def _pack_params(params):
    """Pack every (r, c) param into one (R, W) f32 slab; each param occupies its
    own 8-row-aligned block so all in-kernel slices start on aligned sublanes."""
    width = max(int(params[k].shape[1]) for k in _PARAM_ORDER)
    blocks, meta, off = [], {}, 0
    for name in _PARAM_ORDER:
        a = jnp.asarray(params[name], jnp.float32)
        r, c = int(a.shape[0]), int(a.shape[1])
        rpad = _round_up(r, 8)
        blk = jnp.zeros((rpad, width), jnp.float32).at[:r, :c].set(a)
        blocks.append(blk)
        meta[name] = (off, r, c)
        off += rpad
    return jnp.concatenate(blocks, axis=0), meta


# ----------------------------- Pallas kernel ------------------------------- #

def _make_ann_kernel(meta):
    def kernel(x_ref, p_ref, out_ref):
        def W(name):                       # static slice of the packed slab
            off, r, c = meta[name]
            return p_ref[off:off + r, 0:c]

        V = W                              # vectors are just 1-row blocks

        def relu(v):
            return jnp.maximum(v, 0.0)

        def dot(a, w):
            return jnp.dot(a, w, preferred_element_type=jnp.float32)

        def layernorm(v, g, b, eps=1e-5):
            mu = jnp.mean(v, axis=-1, keepdims=True)
            var = jnp.mean((v - mu) ** 2, axis=-1, keepdims=True)
            return (v - mu) * jax.lax.rsqrt(var + eps) * g + b

        # ---- encoder: 3 x (Linear + ReLU)  (the PyTorch loop never builds the
        #      final hidden[-1] -> num_classes Linear, so encoder output = D)
        x = x_ref[...]
        h = relu(dot(x, W('enc_w1')) + V('enc_b1'))
        h = relu(dot(h, W('enc_w2')) + V('enc_b2'))
        enc = relu(dot(h, W('enc_w3')) + V('enc_b3'))

        # ---- lithology head: LN -> ReLU -> Linear -> LN -> ReLU -> Linear
        t = relu(layernorm(enc, V('lith_ln1_g'), V('lith_ln1_b')))
        t = dot(t, W('lith_fc1_w')) + V('lith_fc1_b')
        t = relu(layernorm(t, V('lith_ln2_g'), V('lith_ln2_b')))
        lith = dot(t, W('lith_fc2_w')) + V('lith_fc2_b')
        C = lith.shape[-1]
        out_ref[:, 0:C] = lith

        # ---- softmax over classes (denominator reciprocal on the EUP)
        m = jnp.max(lith, axis=-1, keepdims=True)
        e = jnp.exp(lith - m)
        prob = e * pl.reciprocal(jnp.sum(e, axis=-1, keepdims=True), approx=True)

        D = enc.shape[-1]

        # ---- phi head on virtual concat [enc, prob]  (width D + C)
        dv = float(D + C)
        mu = (jnp.sum(enc, -1, keepdims=True) + jnp.sum(prob, -1, keepdims=True)) / dv
        de, dp = enc - mu, prob - mu
        var = (jnp.sum(de * de, -1, keepdims=True)
               + jnp.sum(dp * dp, -1, keepdims=True)) / dv
        rstd = jax.lax.rsqrt(var + 1e-5)
        te = relu(de * rstd * V('phi_ln1_g_enc') + V('phi_ln1_b_enc'))
        tp = relu(dp * rstd * V('phi_ln1_g_prob') + V('phi_ln1_b_prob'))
        t = dot(te, W('phi_fc1_w_enc')) + dot(tp, W('phi_fc1_w_prob')) + V('phi_fc1_b')
        t = relu(layernorm(t, V('phi_ln2_g'), V('phi_ln2_b')))
        phi = dot(t, W('phi_fc2_w')) + V('phi_fc2_b')
        out_ref[:, C:C + 1] = phi

        # ---- sw head on virtual concat [enc, prob, phi]  (width D + C + 1)
        dv2 = float(D + C + 1)
        mu2 = (jnp.sum(enc, -1, keepdims=True)
               + jnp.sum(prob, -1, keepdims=True) + phi) / dv2
        de2, dp2, df2 = enc - mu2, prob - mu2, phi - mu2
        var2 = (jnp.sum(de2 * de2, -1, keepdims=True)
                + jnp.sum(dp2 * dp2, -1, keepdims=True) + df2 * df2) / dv2
        rstd2 = jax.lax.rsqrt(var2 + 1e-5)
        te2 = relu(de2 * rstd2 * V('sw_ln1_g_enc') + V('sw_ln1_b_enc'))
        tp2 = relu(dp2 * rstd2 * V('sw_ln1_g_prob') + V('sw_ln1_b_prob'))
        tf2 = relu(df2 * rstd2 * V('sw_ln1_g_phi') + V('sw_ln1_b_phi'))     # (TM, 1)
        t2 = (dot(te2, W('sw_fc1_w_enc')) + dot(tp2, W('sw_fc1_w_prob'))
              + tf2 * V('sw_fc1_w_phi') + V('sw_fc1_b'))                    # (TM,1)*(1,HH)
        t2 = relu(layernorm(t2, V('sw_ln2_g'), V('sw_ln2_b')))
        sw = dot(t2, W('sw_fc2_w')) + V('sw_fc2_b')
        out_ref[:, C + 1:C + 2] = pl.reciprocal(1.0 + jnp.exp(-sw), approx=True)  # sigmoid

    return kernel


# ------------------------------ wrapper ------------------------------------ #

def ann_forward(x, params, *, tile_rows=1024):
    """tile_rows: target rows per grid step (rounded to a multiple of 128 and
    clamped to the padded problem size).  1024 is a good default; use ~2048 on
    v6e's 128 MiB VMEM and keep >=2 grid steps on v7x for both TensorCores."""
    B, S, F = x.shape
    N = B * S
    C = params['lith_fc2_w'].shape[1]

    # row tile: multiple of 128 (lane-friendly stores/loads), <= padded problem
    tm = min(int(tile_rows), _round_up(N, 128))
    tm = max(128, _round_up(tm, 128))
    Np = _round_up(N, tm)

    xf = x.reshape(N, F).astype(jnp.float32)
    if Np != N:
        xf = jnp.pad(xf, ((0, Np - N), (0, 0)))

    slab, meta = _pack_params(params)
    kernel = _make_ann_kernel(meta)

    fused = pl.pallas_call(
        kernel,
        grid=(Np // tm,),
        in_specs=[
            pl.BlockSpec((tm, F), lambda i: (i, 0)),
            pl.BlockSpec(slab.shape, lambda i: (0, 0)),   # whole param slab, resident
        ],
        out_specs=pl.BlockSpec((tm, C + 2), lambda i: (i, 0)),
        out_shape=jax.ShapeDtypeStruct((Np, C + 2), jnp.float32),
        compiler_params=pltpu.CompilerParams(
            dimension_semantics=("parallel",)),
    )(xf, slab)

    lith = fused[:N, 0:C].reshape(B, S, C)
    phi = fused[:N, C:C + 1].reshape(B, S, 1)
    sw = fused[:N, C + 1:C + 2].reshape(B, S, 1)
    return lith, phi, sw


# ------------------- deterministic parameter construction ------------------ #

def init_params(key, num_features, num_classes, hidden=(32, 16, 8)):
    D = hidden[-1]
    HH = D // 2
    keys = iter(jax.random.split(key, 64))

    def uni(shape, bound):
        return jax.random.uniform(next(keys), shape, jnp.float32, -bound, bound)

    def linear(din, dout):
        bound = din ** -0.5
        return uni((din, dout), bound), uni((1, dout), bound)

    def lnorm(d):
        g = 1.0 + 0.1 * jax.random.normal(next(keys), (1, d), jnp.float32)
        b = 0.1 * jax.random.normal(next(keys), (1, d), jnp.float32)
        return g, b

    p = {}
    sizes = [num_features] + list(hidden)
    # Encoder: PyTorch loop only builds len(layer_sizes)-2 Linears, so the
    # final hidden[-1] -> num_classes Linear is intentionally absent.
    p['enc_w1'], p['enc_b1'] = linear(sizes[0], sizes[1])
    p['enc_w2'], p['enc_b2'] = linear(sizes[1], sizes[2])
    p['enc_w3'], p['enc_b3'] = linear(sizes[2], sizes[3])

    # lithology head
    p['lith_ln1_g'], p['lith_ln1_b'] = lnorm(D)
    p['lith_fc1_w'], p['lith_fc1_b'] = linear(D, HH)
    p['lith_ln2_g'], p['lith_ln2_b'] = lnorm(HH)
    p['lith_fc2_w'], p['lith_fc2_b'] = linear(HH, num_classes)

    # phi head (operates on concat(enc, prob) -> split the params)
    g, b = lnorm(D + num_classes)
    p['phi_ln1_g_enc'], p['phi_ln1_g_prob'] = g[:, :D], g[:, D:]
    p['phi_ln1_b_enc'], p['phi_ln1_b_prob'] = b[:, :D], b[:, D:]
    w, bb = linear(D + num_classes, HH)
    p['phi_fc1_w_enc'], p['phi_fc1_w_prob'], p['phi_fc1_b'] = w[:D], w[D:], bb
    p['phi_ln2_g'], p['phi_ln2_b'] = lnorm(HH)
    p['phi_fc2_w'], p['phi_fc2_b'] = linear(HH, 1)

    # sw head (operates on concat(enc, prob, phi) -> split the params)
    g, b = lnorm(D + num_classes + 1)
    p['sw_ln1_g_enc'] = g[:, :D]
    p['sw_ln1_g_prob'] = g[:, D:D + num_classes]
    p['sw_ln1_g_phi'] = g[:, D + num_classes:]
    p['sw_ln1_b_enc'] = b[:, :D]
    p['sw_ln1_b_prob'] = b[:, D:D + num_classes]
    p['sw_ln1_b_phi'] = b[:, D + num_classes:]
    w, bb = linear(D + num_classes + 1, HH)
    p['sw_fc1_w_enc'] = w[:D]
    p['sw_fc1_w_prob'] = w[D:D + num_classes]
    p['sw_fc1_w_phi'] = w[D + num_classes:]
    p['sw_fc1_b'] = bb
    p['sw_ln2_g'], p['sw_ln2_b'] = lnorm(HH)
    p['sw_fc2_w'], p['sw_fc2_b'] = linear(HH, 1)
    return p


# ------------------------ pure-JAX reference (check) ----------------------- #

def ann_reference(x, p):
    relu = lambda v: jnp.maximum(v, 0.0)

    def ln(v, g, b):
        mu = v.mean(-1, keepdims=True)
        var = ((v - mu) ** 2).mean(-1, keepdims=True)
        return (v - mu) / jnp.sqrt(var + 1e-5) * g + b

    h = relu(x @ p['enc_w1'] + p['enc_b1'])
    h = relu(h @ p['enc_w2'] + p['enc_b2'])
    enc = relu(h @ p['enc_w3'] + p['enc_b3'])

    t = relu(ln(enc, p['lith_ln1_g'], p['lith_ln1_b']))
    t = t @ p['lith_fc1_w'] + p['lith_fc1_b']
    t = relu(ln(t, p['lith_ln2_g'], p['lith_ln2_b']))
    lith = t @ p['lith_fc2_w'] + p['lith_fc2_b']
    prob = jax.nn.softmax(lith, axis=-1)

    xl = jnp.concatenate([enc, prob], -1)
    g = jnp.concatenate([p['phi_ln1_g_enc'], p['phi_ln1_g_prob']], -1)
    b = jnp.concatenate([p['phi_ln1_b_enc'], p['phi_ln1_b_prob']], -1)
    w = jnp.concatenate([p['phi_fc1_w_enc'], p['phi_fc1_w_prob']], 0)
    t = relu(ln(xl, g, b)) @ w + p['phi_fc1_b']
    t = relu(ln(t, p['phi_ln2_g'], p['phi_ln2_b']))
    phi = t @ p['phi_fc2_w'] + p['phi_fc2_b']

    xlp = jnp.concatenate([enc, prob, phi], -1)
    g = jnp.concatenate([p['sw_ln1_g_enc'], p['sw_ln1_g_prob'], p['sw_ln1_g_phi']], -1)
    b = jnp.concatenate([p['sw_ln1_b_enc'], p['sw_ln1_b_prob'], p['sw_ln1_b_phi']], -1)
    w = jnp.concatenate([p['sw_fc1_w_enc'], p['sw_fc1_w_prob'], p['sw_fc1_w_phi']], 0)
    t = relu(ln(xlp, g, b)) @ w + p['sw_fc1_b']
    t = relu(ln(t, p['sw_ln2_g'], p['sw_ln2_b']))
    sw = jax.nn.sigmoid(t @ p['sw_fc2_w'] + p['sw_fc2_b'])
    return lith, phi, sw


if __name__ == "__main__":
    key = jax.random.PRNGKey(0)
    kx, kp = jax.random.split(key)

    B, S, F, C = 2, 8, 16, 4
    hidden = (32, 16, 8)

    x = jax.random.normal(kx, (B, S, F), jnp.float32)
    params = init_params(kp, num_features=F, num_classes=C, hidden=hidden)

    # small case: single padded 128-row tile
    lith, phi, sw = ann_forward(x, params)
    jax.block_until_ready((lith, phi, sw))
    assert lith.shape == (B, S, C)
    assert phi.shape == (B, S, 1)
    assert sw.shape == (B, S, 1)

    lith_r, phi_r, sw_r = ann_reference(x, params)
    for got, ref in ((lith, lith_r), (phi, phi_r), (sw, sw_r)):
        assert jnp.allclose(got, ref, atol=3e-3, rtol=3e-3), "mismatch vs reference"

    # multi-tile case: exercises row padding + grid > 1
    B2, S2 = 3, 300                       # N = 900 -> Np = 1024, 4 tiles of 256
    x2 = jax.random.normal(jax.random.PRNGKey(1), (B2, S2, F), jnp.float32)
    lith2, phi2, sw2 = ann_forward(x2, params, tile_rows=256)
    jax.block_until_ready((lith2, phi2, sw2))
    lith2_r, phi2_r, sw2_r = ann_reference(x2, params)
    for got, ref in ((lith2, lith2_r), (phi2, phi2_r), (sw2, sw2_r)):
        assert jnp.allclose(got, ref, atol=3e-3, rtol=3e-3), "mismatch vs reference (multi-tile)"

    print("KERNEL_OK")
</pallas_src>

<mosaic_0001>
module attributes {stable_mosaic.version = 11 : i64} {
  func.func @kernel(%arg0: i32, %arg1: memref<128x16xf32, #tpu.memory_space<vmem>>, %arg2: memref<352x32xf32, #tpu.memory_space<vmem>>, %arg3: memref<128x6xf32, #tpu.memory_space<vmem>>) attributes {dimension_semantics = [#tpu.dimension_semantics<parallel>], iteration_bounds = array<i64: 1>, scalar_prefetch = 0 : i64, scratch_operands = 0 : i64, tpu.core_type = #tpu.core_type<tc>, window_params = [{transform_indices = @transform_0, window_bounds = array<i64: 128, 16>}, {pipeline_mode = #tpu.pipeline_mode<synchronous>, transform_indices = @transform_1, window_bounds = array<i64: 352, 32>}, {transform_indices = @transform_2, window_bounds = array<i64: 128, 6>}]} {
    %c0 = arith.constant 0 : index
    %c0_0 = arith.constant 0 : index
    %0 = vector.load %arg1[%c0, %c0_0] : memref<128x16xf32, #tpu.memory_space<vmem>>, vector<128x16xf32>
    %c0_1 = arith.constant 0 : index
    %c0_2 = arith.constant 0 : index
    %1 = vector.load %arg2[%c0_1, %c0_2] : memref<352x32xf32, #tpu.memory_space<vmem>>, vector<16x32xf32>
    %cst = arith.constant dense<0.000000e+00> : vector<128x32xf32>
    %2 = tpu.matmul %0, %1, %cst {dimension_numbers = #tpu.dot_dimension_numbers<[1], [0], [0], [1], [0, 0, 1, 1], [], []>} : vector<128x16xf32>, vector<16x32xf32>, vector<128x32xf32> -> vector<128x32xf32>
    %c16 = arith.constant 16 : index
    %c0_3 = arith.constant 0 : index
    %3 = vector.load %arg2[%c16, %c0_3] : memref<352x32xf32, #tpu.memory_space<vmem>>, vector<1x32xf32>
    %4 = vector.broadcast %3 : vector<1x32xf32> to vector<128x32xf32>
    %5 = arith.addf %2, %4 : vector<128x32xf32>
    %cst_4 = arith.constant 0.000000e+00 : f32
    %6 = vector.broadcast %cst_4 : f32 to vector<128x32xf32>
    %7 = arith.maximumf %5, %6 : vector<128x32xf32>
    %c24 = arith.constant 24 : index
    %c0_5 = arith.constant 0 : index
    %8 = vector.load %arg2[%c24, %c0_5] : memref<352x32xf32, #tpu.memory_space<vmem>>, vector<32x16xf32>
    %cst_6 = arith.constant dense<0.000000e+00> : vector<128x16xf32>
    %9 = tpu.matmul %7, %8, %cst_6 {dimension_numbers = #tpu.dot_dimension_numbers<[1], [0], [0], [1], [0, 0, 1, 1], [], []>} : vector<128x32xf32>, vector<32x16xf32>, vector<128x16xf32> -> vector<128x16xf32>
    %c56 = arith.constant 56 : index
    %c0_7 = arith.constant 0 : index
    %10 = vector.load %arg2[%c56, %c0_7] : memref<352x32xf32, #tpu.memory_space<vmem>>, vector<1x16xf32>
    %11 = vector.broadcast %10 : vector<1x16xf32> to vector<128x16xf32>
    %12 = arith.addf %9, %11 : vector<128x16xf32>
    %cst_8 = arith.constant 0.000000e+00 : f32
    %13 = vector.broadcast %cst_8 : f32 to vector<128x16xf32>
    %14 = arith.maximumf %12, %13 : vector<128x16xf32>
    %c64 = arith.constant 64 : index
    %c0_9 = arith.constant 0 : index
    %15 = vector.load %arg2[%c64, %c0_9] : memref<352x32xf32, #tpu.memory_space<vmem>>, vector<16x8xf32>
    %cst_10 = arith.constant dense<0.000000e+00> : vector<128x8xf32>
    %16 = tpu.matmul %14, %15, %cst_10 {dimension_numbers = #tpu.dot_dimension_numbers<[1], [0], [0], [1], [0, 0, 1, 1], [], []>} : vector<128x16xf32>, vector<16x8xf32>, vector<128x8xf32> -> vector<128x8xf32>
    %c80 = arith.constant 80 : index
    %c0_11 = arith.constant 0 : index
    %17 = vector.load %arg2[%c80, %c0_11] : memref<352x32xf32, #tpu.memory_space<vmem>>, vector<1x8xf32>
    %18 = vector.broadcast %17 : vector<1x8xf32> to vector<128x8xf32>
    %19 = arith.addf %16, %18 : vector<128x8xf32>
    %cst_12 = arith.constant 0.000000e+00 : f32
    %20 = vector.broadcast %cst_12 : f32 to vector<128x8xf32>
    %21 = arith.maximumf %19, %20 : vector<128x8xf32>
    %c88 = arith.constant 88 : index
    %c0_13 = arith.constant 0 : index
    %22 = vector.load %arg2[%c88, %c0_13] : memref<352x32xf32, #tpu.memory_space<vmem>>, vector<1x8xf32>
    %c96 = arith.constant 96 : index
    %c0_14 = arith.constant 0 : index
    %23 = vector.load %arg2[%c96, %c0_14] : memref<352x32xf32, #tpu.memory_space<vmem>>, vector<1x8xf32>
    %cst_15 = arith.constant dense<0.000000e+00> : vector<128xf32>
    %24 = vector.multi_reduction <add>, %21, %cst_15 [1] : vector<128x8xf32> to vector<128xf32>
    %25 = vector.shape_cast %24 : vector<128xf32> to vector<128x1xf32>
    %cst_16 = arith.constant 8.000000e+00 : f32
    %26 = vector.broadcast %cst_16 : f32 to vector<128x1xf32>
    %27 = arith.divf %25, %26 : vector<128x1xf32>
    %28 = vector.broadcast %27 : vector<128x1xf32> to vector<128x8xf32>
    %29 = arith.subf %21, %28 : vector<128x8xf32>
    %30 = arith.mulf %29, %29 : vector<128x8xf32>
    %cst_17 = arith.constant dense<0.000000e+00> : vector<128xf32>
    %31 = vector.multi_reduction <add>, %30, %cst_17 [1] : vector<128x8xf32> to vector<128xf32>
    %32 = vector.shape_cast %31 : vector<128xf32> to vector<128x1xf32>
    %cst_18 = arith.constant 8.000000e+00 : f32
    %33 = vector.broadcast %cst_18 : f32 to vector<128x1xf32>
    %34 = arith.divf %32, %33 : vector<128x1xf32>
    %35 = vector.broadcast %27 : vector<128x1xf32> to vector<128x8xf32>
    %36 = arith.subf %21, %35 : vector<128x8xf32>
    %cst_19 = arith.constant 9.99999974E-6 : f32
    %37 = vector.broadcast %cst_19 : f32 to vector<128x1xf32>
    %38 = arith.addf %34, %37 : vector<128x1xf32>
    %39 = math.rsqrt %38 : vector<128x1xf32>
    %40 = vector.broadcast %39 : vector<128x1xf32> to vector<128x8xf32>
    %41 = arith.mulf %36, %40 : vector<128x8xf32>
    %42 = vector.broadcast %22 : vector<1x8xf32> to vector<128x8xf32>
    %43 = arith.mulf %41, %42 : vector<128x8xf32>
    %44 = vector.broadcast %23 : vector<1x8xf32> to vector<128x8xf32>
    %45 = arith.addf %43, %44 : vector<128x8xf32>
    %cst_20 = arith.constant 0.000000e+00 : f32
    %46 = vector.broadcast %cst_20 : f32 to vector<128x8xf32>
    %47 = arith.maximumf %45, %46 : vector<128x8xf32>
    %c104 = arith.constant 104 : index
    %c0_21 = arith.constant 0 : index
    %48 = vector.load %arg2[%c104, %c0_21] : memref<352x32xf32, #tpu.memory_space<vmem>>, vector<8x4xf32>
    %cst_22 = arith.constant dense<0.000000e+00> : vector<128x4xf32>
    %49 = tpu.matmul %47, %48, %cst_22 {dimension_numbers = #tpu.dot_dimension_numbers<[1], [0], [0], [1], [0, 0, 1, 1], [], []>} : vector<128x8xf32>, vector<8x4xf32>, vector<128x4xf32> -> vector<128x4xf32>
    %c112 = arith.constant 112 : index
    %c0_23 = arith.constant 0 : index
    %50 = vector.load %arg2[%c112, %c0_23] : memref<352x32xf32, #tpu.memory_space<vmem>>, vector<1x4xf32>
    %51 = vector.broadcast %50 : vector<1x4xf32> to vector<128x4xf32>
    %52 = arith.addf %49, %51 : vector<128x4xf32>
    %c120 = arith.constant 120 : index
    %c0_24 = arith.constant 0 : index
    %53 = vector.load %arg2[%c120, %c0_24] : memref<352x32xf32, #tpu.memory_space<vmem>>, vector<1x4xf32>
    %c128 = arith.constant 128 : index
    %c0_25 = arith.constant 0 : index
    %54 = vector.load %arg2[%c128, %c0_25] : memref<352x32xf32, #tpu.memory_space<vmem>>, vector<1x4xf32>
    %cst_26 = arith.constant dense<0.000000e+00> : vector<128xf32>
    %55 = vector.multi_reduction <add>, %52, %cst_26 [1] : vector<128x4xf32> to vector<128xf32>
    %56 = vector.shape_cast %55 : vector<128xf32> to vector<128x1xf32>
    %cst_27 = arith.constant 4.000000e+00 : f32
    %57 = vector.broadcast %cst_27 : f32 to vector<128x1xf32>
    %58 = arith.divf %56, %57 : vector<128x1xf32>
    %59 = vector.broadcast %58 : vector<128x1xf32> to vector<128x4xf32>
    %60 = arith.subf %52, %59 : vector<128x4xf32>
    %61 = arith.mulf %60, %60 : vector<128x4xf32>
    %cst_28 = arith.constant dense<0.000000e+00> : vector<128xf32>
    %62 = vector.multi_reduction <add>, %61, %cst_28 [1] : vector<128x4xf32> to vector<128xf32>
    %63 = vector.shape_cast %62 : vector<128xf32> to vector<128x1xf32>
    %cst_29 = arith.constant 4.000000e+00 : f32
    %64 = vector.broadcast %cst_29 : f32 to vector<128x1xf32>
    %65 = arith.divf %63, %64 : vector<128x1xf32>
    %66 = vector.broadcast %58 : vector<128x1xf32> to vector<128x4xf32>
    %67 = arith.subf %52, %66 : vector<128x4xf32>
    %cst_30 = arith.constant 9.99999974E-6 : f32
    %68 = vector.broadcast %cst_30 : f32 to vector<128x1xf32>
    %69 = arith.addf %65, %68 : vector<128x1xf32>
    %70 = math.rsqrt %69 : vector<128x1xf32>
    %71 = vector.broadcast %70 : vector<128x1xf32> to vector<128x4xf32>
    %72 = arith.mulf %67, %71 : vector<128x4xf32>
    %73 = vector.broadcast %53 : vector<1x4xf32> to vector<128x4xf32>
    %74 = arith.mulf %72, %73 : vector<128x4xf32>
    %75 = vector.broadcast %54 : vector<1x4xf32> to vector<128x4xf32>
    %76 = arith.addf %74, %75 : vector<128x4xf32>
    %cst_31 = arith.constant 0.000000e+00 : f32
    %77 = vector.broadcast %cst_31 : f32 to vector<128x4xf32>
    %78 = arith.maximumf %76, %77 : vector<128x4xf32>
    %c136 = arith.constant 136 : index
    %c0_32 = arith.constant 0 : index
    %79 = vector.load %arg2[%c136, %c0_32] : memref<352x32xf32, #tpu.memory_space<vmem>>, vector<4x4xf32>
    %cst_33 = arith.constant dense<0.000000e+00> : vector<128x4xf32>
    %80 = tpu.matmul %78, %79, %cst_33 {dimension_numbers = #tpu.dot_dimension_numbers<[1], [0], [0], [1], [0, 0, 1, 1], [], []>} : vector<128x4xf32>, vector<4x4xf32>, vector<128x4xf32> -> vector<128x4xf32>
    %c144 = arith.constant 144 : index
    %c0_34 = arith.constant 0 : index
    %81 = vector.load %arg2[%c144, %c0_34] : memref<352x32xf32, #tpu.memory_space<vmem>>, vector<1x4xf32>
    %82 = vector.broadcast %81 : vector<1x4xf32> to vector<128x4xf32>
    %83 = arith.addf %80, %82 : vector<128x4xf32>
    %c0_35 = arith.constant 0 : index
    %c0_36 = arith.constant 0 : index
    %84 = vector.load %arg3[%c0_35, %c0_36] : memref<128x6xf32, #tpu.memory_space<vmem>>, vector<128x4xf32>
    tpu.vector_store %arg3[%c0_35, %c0_36], %83 {strides = array<i32>} : memref<128x6xf32, #tpu.memory_space<vmem>>, vector<128x4xf32>,
    %cst_37 = arith.constant dense<0xFF800000> : vector<128xf32>
    %85 = vector.multi_reduction <maximumf>, %83, %cst_37 [1] : vector<128x4xf32> to vector<128xf32>
    %86 = vector.shape_cast %85 : vector<128xf32> to vector<128x1xf32>
    %87 = vector.broadcast %86 : vector<128x1xf32> to vector<128x4xf32>
    %88 = arith.subf %83, %87 : vector<128x4xf32>
    %89 = math.exp %88 : vector<128x4xf32>
    %cst_38 = arith.constant dense<0.000000e+00> : vector<128xf32>
    %90 = vector.multi_reduction <add>, %89, %cst_38 [1] : vector<128x4xf32> to vector<128xf32>
    %91 = vector.shape_cast %90 : vector<128xf32> to vector<128x1xf32>
    %92 = tpu.reciprocal %91 {approx = true} : vector<128x1xf32> -> vector<128x1xf32>
    %93 = vector.broadcast %92 : vector<128x1xf32> to vector<128x4xf32>
    %94 = arith.mulf %89, %93 : vector<128x4xf32>
    %cst_39 = arith.constant dense<0.000000e+00> : vector<128xf32>
    %95 = vector.multi_reduction <add>, %21, %cst_39 [1] : vector<128x8xf32> to vector<128xf32>
    %96 = vector.shape_cast %95 : vector<128xf32> to vector<128x1xf32>
    %cst_40 = arith.constant dense<0.000000e+00> : vector<128xf32>
    %97 = vector.multi_reduction <add>, %94, %cst_40 [1] : vector<128x4xf32> to vector<128xf32>
    %98 = vector.shape_cast %97 : vector<128xf32> to vector<128x1xf32>
    %99 = arith.addf %96, %98 : vector<128x1xf32>
    %cst_41 = arith.constant 1.200000e+01 : f32
    %100 = vector.broadcast %cst_41 : f32 to vector<128x1xf32>
    %101 = arith.divf %99, %100 : vector<128x1xf32>
    %102 = vector.broadcast %101 : vector<128x1xf32> to vector<128x8xf32>
    %103 = arith.subf %21, %102 : vector<128x8xf32>
    %104 = vector.broadcast %101 : vector<128x1xf32> to vector<128x4xf32>
    %105 = arith.subf %94, %104 : vector<128x4xf32>
    %106 = arith.mulf %103, %103 : vector<128x8xf32>
    %cst_42 = arith.constant dense<0.000000e+00> : vector<128xf32>
    %107 = vector.multi_reduction <add>, %106, %cst_42 [1] : vector<128x8xf32> to vector<128xf32>
    %108 = vector.shape_cast %107 : vector<128xf32> to vector<128x1xf32>
    %109 = arith.mulf %105, %105 : vector<128x4xf32>
    %cst_43 = arith.constant dense<0.000000e+00> : vector<128xf32>
    %110 = vector.multi_reduction <add>, %109, %cst_43 [1] : vector<128x4xf32> to vector<128xf32>
    %111 = vector.shape_cast %110 : vector<128xf32> to vector<128x1xf32>
    %112 = arith.addf %108, %111 : vector<128x1xf32>
    %cst_44 = arith.constant 1.200000e+01 : f32
    %113 = vector.broadcast %cst_44 : f32 to vector<128x1xf32>
    %114 = arith.divf %112, %113 : vector<128x1xf32>
    %cst_45 = arith.constant 9.99999974E-6 : f32
    %115 = vector.broadcast %cst_45 : f32 to vector<128x1xf32>
    %116 = arith.addf %114, %115 : vector<128x1xf32>
    %117 = math.rsqrt %116 : vector<128x1xf32>
    %118 = vector.broadcast %117 : vector<128x1xf32> to vector<128x8xf32>
    %119 = arith.mulf %103, %118 : vector<128x8xf32>
    %c152 = arith.constant 152 : index
    %c0_46 = arith.constant 0 : index
    %120 = vector.load %arg2[%c152, %c0_46] : memref<352x32xf32, #tpu.memory_space<vmem>>, vector<1x8xf32>
    %121 = vector.broadcast %120 : vector<1x8xf32> to vector<128x8xf32>
    %122 = arith.mulf %119, %121 : vector<128x8xf32>
    %c168 = arith.constant 168 : index
    %c0_47 = arith.constant 0 : index
    %123 = vector.load %arg2[%c168, %c0_47] : memref<352x32xf32, #tpu.memory_space<vmem>>, vector<1x8xf32>
    %124 = vector.broadcast %123 : vector<1x8xf32> to vector<128x8xf32>
    %125 = arith.addf %122, %124 : vector<128x8xf32>
    %cst_48 = arith.constant 0.000000e+00 : f32
    %126 = vector.broadcast %cst_48 : f32 to vector<128x8xf32>
    %127 = arith.maximumf %125, %126 : vector<128x8xf32>
    %128 = vector.broadcast %117 : vector<128x1xf32> to vector<128x4xf32>
    %129 = arith.mulf %105, %128 : vector<128x4xf32>
    %c160 = arith.constant 160 : index
    %c0_49 = arith.constant 0 : index
    %130 = vector.load %arg2[%c160, %c0_49] : memref<352x32xf32, #tpu.memory_space<vmem>>, vector<1x4xf32>
    %131 = vector.broadcast %130 : vector<1x4xf32> to vector<128x4xf32>
    %132 = arith.mulf %129, %131 : vector<128x4xf32>
    %c176 = arith.constant 176 : index
    %c0_50 = arith.constant 0 : index
    %133 = vector.load %arg2[%c176, %c0_50] : memref<352x32xf32, #tpu.memory_space<vmem>>, vector<1x4xf32>
    %134 = vector.broadcast %133 : vector<1x4xf32> to vector<128x4xf32>
    %135 = arith.addf %132, %134 : vector<128x4xf32>
    %cst_51 = arith.constant 0.000000e+00 : f32
    %136 = vector.broadcast %cst_51 : f32 to vector<128x4xf32>
    %137 = arith.maximumf %135, %136 : vector<128x4xf32>
    %c184 = arith.constant 184 : index
    %c0_52 = arith.constant 0 : index
    %138 = vector.load %arg2[%c184, %c0_52] : memref<352x32xf32, #tpu.memory_space<vmem>>, vector<8x4xf32>
    %cst_53 = arith.constant dense<0.000000e+00> : vector<128x4xf32>
    %139 = tpu.matmul %127, %138, %cst_53 {dimension_numbers = #tpu.dot_dimension_numbers<[1], [0], [0], [1], [0, 0, 1, 1], [], []>} : vector<128x8xf32>, vector<8x4xf32>, vector<128x4xf32> -> vector<128x4xf32>
    %c192 = arith.constant 192 : index
    %c0_54 = arith.constant 0 : index
    %140 = vector.load %arg2[%c192, %c0_54] : memref<352x32xf32, #tpu.memory_space<vmem>>, vector<4x4xf32>
    %cst_55 = arith.constant dense<0.000000e+00> : vector<128x4xf32>
    %141 = tpu.matmul %137, %140, %cst_55 {dimension_numbers = #tpu.dot_dimension_numbers<[1], [0], [0], [1], [0, 0, 1, 1], [], []>} : vector<128x4xf32>, vector<4x4xf32>, vector<128x4xf32> -> vector<128x4xf32>
    %142 = arith.addf %139, %141 : vector<128x4xf32>
    %c200 = arith.constant 200 : index
    %c0_56 = arith.constant 0 : index
    %143 = vector.load %arg2[%c200, %c0_56] : memref<352x32xf32, #tpu.memory_space<vmem>>, vector<1x4xf32>
    %144 = vector.broadcast %143 : vector<1x4xf32> to vector<128x4xf32>
    %145 = arith.addf %142, %144 : vector<128x4xf32>
    %c208 = arith.constant 208 : index
    %c0_57 = arith.constant 0 : index
    %146 = vector.load %arg2[%c208, %c0_57] : memref<352x32xf32, #tpu.memory_space<vmem>>, vector<1x4xf32>
    %c216 = arith.constant 216 : index
    %c0_58 = arith.constant 0 : index
    %147 = vector.load %arg2[%c216, %c0_58] : memref<352x32xf32, #tpu.memory_space<vmem>>, vector<1x4xf32>
    %cst_59 = arith.constant dense<0.000000e+00> : vector<128xf32>
    %148 = vector.multi_reduction <add>, %145, %cst_59 [1] : vector<128x4xf32> to vector<128xf32>
    %149 = vector.shape_cast %148 : vector<128xf32> to vector<128x1xf32>
    %cst_60 = arith.constant 4.000000e+00 : f32
    %150 = vector.broadcast %cst_60 : f32 to vector<128x1xf32>
    %151 = arith.divf %149, %150 : vector<128x1xf32>
    %152 = vector.broadcast %151 : vector<128x1xf32> to vector<128x4xf32>
    %153 = arith.subf %145, %152 : vector<128x4xf32>
    %154 = arith.mulf %153, %153 : vector<128x4xf32>
    %cst_61 = arith.constant dense<0.000000e+00> : vector<128xf32>
    %155 = vector.multi_reduction <add>, %154, %cst_61 [1] : vector<128x4xf32> to vector<128xf32>
    %156 = vector.shape_cast %155 : vector<128xf32> to vector<128x1xf32>
    %cst_62 = arith.constant 4.000000e+00 : f32
    %157 = vector.broadcast %cst_62 : f32 to vector<128x1xf32>
    %158 = arith.divf %156, %157 : vector<128x1xf32>
    %159 = vector.broadcast %151 : vector<128x1xf32> to vector<128x4xf32>
    %160 = arith.subf %145, %159 : vector<128x4xf32>
    %cst_63 = arith.constant 9.99999974E-6 : f32
    %161 = vector.broadcast %cst_63 : f32 to vector<128x1xf32>
    %162 = arith.addf %158, %161 : vector<128x1xf32>
    %163 = math.rsqrt %162 : vector<128x1xf32>
    %164 = vector.broadcast %163 : vector<128x1xf32> to vector<128x4xf32>
    %165 = arith.mulf %160, %164 : vector<128x4xf32>
    %166 = vector.broadcast %146 : vector<1x4xf32> to vector<128x4xf32>
    %167 = arith.mulf %165, %166 : vector<128x4xf32>
    %168 = vector.broadcast %147 : vector<1x4xf32> to vector<128x4xf32>
    %169 = arith.addf %167, %168 : vector<128x4xf32>
    %cst_64 = arith.constant 0.000000e+00 : f32
    %170 = vector.broadcast %cst_64 : f32 to vector<128x4xf32>
    %171 = arith.maximumf %169, %170 : vector<128x4xf32>
    %c224 = arith.constant 224 : index
    %c0_65 = arith.constant 0 : index
    %172 = vector.load %arg2[%c224, %c0_65] : memref<352x32xf32, #tpu.memory_space<vmem>>, vector<4x1xf32>
    %cst_66 = arith.constant dense<0.000000e+00> : vector<128x1xf32>
    %173 = tpu.matmul %171, %172, %cst_66 {dimension_numbers = #tpu.dot_dimension_numbers<[1], [0], [0], [1], [0, 0, 1, 1], [], []>} : vector<128x4xf32>, vector<4x1xf32>, vector<128x1xf32> -> vector<128x1xf32>
    %c232 = arith.constant 232 : index
    %c0_67 = arith.constant 0 : index
    %174 = vector.load %arg2[%c232, %c0_67] : memref<352x32xf32, #tpu.memory_space<vmem>>, vector<1x1xf32>
    %175 = vector.broadcast %174 : vector<1x1xf32> to vector<128x1xf32>
    %176 = arith.addf %173, %175 : vector<128x1xf32>
    %c0_68 = arith.constant 0 : index
    %c4 = arith.constant 4 : index
    %177 = vector.load %arg3[%c0_68, %c4] : memref<128x6xf32, #tpu.memory_space<vmem>>, vector<128x1xf32>
    tpu.vector_store %arg3[%c0_68, %c4], %176 {strides = array<i32>} : memref<128x6xf32, #tpu.memory_space<vmem>>, vector<128x1xf32>,
    %cst_69 = arith.constant dense<0.000000e+00> : vector<128xf32>
    %178 = vector.multi_reduction <add>, %21, %cst_69 [1] : vector<128x8xf32> to vector<128xf32>
    %179 = vector.shape_cast %178 : vector<128xf32> to vector<128x1xf32>
    %cst_70 = arith.constant dense<0.000000e+00> : vector<128xf32>
    %180 = vector.multi_reduction <add>, %94, %cst_70 [1] : vector<128x4xf32> to vector<128xf32>
    %181 = vector.shape_cast %180 : vector<128xf32> to vector<128x1xf32>
    %182 = arith.addf %179, %181 : vector<128x1xf32>
    %183 = arith.addf %182, %176 : vector<128x1xf32>
    %cst_71 = arith.constant 1.300000e+01 : f32
    %184 = vector.broadcast %cst_71 : f32 to vector<128x1xf32>
    %185 = arith.divf %183, %184 : vector<128x1xf32>
    %186 = vector.broadcast %185 : vector<128x1xf32> to vector<128x8xf32>
    %187 = arith.subf %21, %186 : vector<128x8xf32>
    %188 = vector.broadcast %185 : vector<128x1xf32> to vector<128x4xf32>
    %189 = arith.subf %94, %188 : vector<128x4xf32>
    %190 = arith.subf %176, %185 : vector<128x1xf32>
    %191 = arith.mulf %187, %187 : vector<128x8xf32>
    %cst_72 = arith.constant dense<0.000000e+00> : vector<128xf32>
    %192 = vector.multi_reduction <add>, %191, %cst_72 [1] : vector<128x8xf32> to vector<128xf32>
    %193 = vector.shape_cast %192 : vector<128xf32> to vector<128x1xf32>
    %194 = arith.mulf %189, %189 : vector<128x4xf32>
    %cst_73 = arith.constant dense<0.000000e+00> : vector<128xf32>
    %195 = vector.multi_reduction <add>, %194, %cst_73 [1] : vector<128x4xf32> to vector<128xf32>
    %196 = vector.shape_cast %195 : vector<128xf32> to vector<128x1xf32>
    %197 = arith.addf %193, %196 : vector<128x1xf32>
    %198 = arith.mulf %190, %190 : vector<128x1xf32>
    %199 = arith.addf %197, %198 : vector<128x1xf32>
    %cst_74 = arith.constant 1.300000e+01 : f32
    %200 = vector.broadcast %cst_74 : f32 to vector<128x1xf32>
    %201 = arith.divf %199, %200 : vector<128x1xf32>
    %cst_75 = arith.constant 9.99999974E-6 : f32
    %202 = vector.broadcast %cst_75 : f32 to vector<128x1xf32>
    %203 = arith.addf %201, %202 : vector<128x1xf32>
    %204 = math.rsqrt %203 : vector<128x1xf32>
    %205 = vector.broadcast %204 : vector<128x1xf32> to vector<128x8xf32>
    %206 = arith.mulf %187, %205 : vector<128x8xf32>
    %c240 = arith.constant 240 : index
    %c0_76 = arith.constant 0 : index
    %207 = vector.load %arg2[%c240, %c0_76] : memref<352x32xf32, #tpu.memory_space<vmem>>, vector<1x8xf32>
    %208 = vector.broadcast %207 : vector<1x8xf32> to vector<128x8xf32>
    %209 = arith.mulf %206, %208 : vector<128x8xf32>
    %c264 = arith.constant 264 : index
    %c0_77 = arith.constant 0 : index
    %210 = vector.load %arg2[%c264, %c0_77] : memref<352x32xf32, #tpu.memory_space<vmem>>, vector<1x8xf32>
    %211 = vector.broadcast %210 : vector<1x8xf32> to vector<128x8xf32>
    %212 = arith.addf %209, %211 : vector<128x8xf32>
    %cst_78 = arith.constant 0.000000e+00 : f32
    %213 = vector.broadcast %cst_78 : f32 to vector<128x8xf32>
    %214 = arith.maximumf %212, %213 : vector<128x8xf32>
    %215 = vector.broadcast %204 : vector<128x1xf32> to vector<128x4xf32>
    %216 = arith.mulf %189, %215 : vector<128x4xf32>
    %c248 = arith.constant 248 : index
    %c0_79 = arith.constant 0 : index
    %217 = vector.load %arg2[%c248, %c0_79] : memref<352x32xf32, #tpu.memory_space<vmem>>, vector<1x4xf32>
    %218 = vector.broadcast %217 : vector<1x4xf32> to vector<128x4xf32>
    %219 = arith.mulf %216, %218 : vector<128x4xf32>
    %c272 = arith.constant 272 : index
    %c0_80 = arith.constant 0 : index
    %220 = vector.load %arg2[%c272, %c0_80] : memref<352x32xf32, #tpu.memory_space<vmem>>, vector<1x4xf32>
    %221 = vector.broadcast %220 : vector<1x4xf32> to vector<128x4xf32>
    %222 = arith.addf %219, %221 : vector<128x4xf32>
    %cst_81 = arith.constant 0.000000e+00 : f32
    %223 = vector.broadcast %cst_81 : f32 to vector<128x4xf32>
    %224 = arith.maximumf %222, %223 : vector<128x4xf32>
    %225 = arith.mulf %190, %204 : vector<128x1xf32>
    %c256 = arith.constant 256 : index
    %c0_82 = arith.constant 0 : index
    %226 = vector.load %arg2[%c256, %c0_82] : memref<352x32xf32, #tpu.memory_space<vmem>>, vector<1x1xf32>
    %227 = vector.broadcast %226 : vector<1x1xf32> to vector<128x1xf32>
    %228 = arith.mulf %225, %227 : vector<128x1xf32>
    %c280 = arith.constant 280 : index
    %c0_83 = arith.constant 0 : index
    %229 = vector.load %arg2[%c280, %c0_83] : memref<352x32xf32, #tpu.memory_space<vmem>>, vector<1x1xf32>
    %230 = vector.broadcast %229 : vector<1x1xf32> to vector<128x1xf32>
    %231 = arith.addf %228, %230 : vector<128x1xf32>
    %cst_84 = arith.constant 0.000000e+00 : f32
    %232 = vector.broadcast %cst_84 : f32 to vector<128x1xf32>
    %233 = arith.maximumf %231, %232 : vector<128x1xf32>
    %c288 = arith.constant 288 : index
    %c0_85 = arith.constant 0 : index
    %234 = vector.load %arg2[%c288, %c0_85] : memref<352x32xf32, #tpu.memory_space<vmem>>, vector<8x4xf32>
    %cst_86 = arith.constant dense<0.000000e+00> : vector<128x4xf32>
    %235 = tpu.matmul %214, %234, %cst_86 {dimension_numbers = #tpu.dot_dimension_numbers<[1], [0], [0], [1], [0, 0, 1, 1], [], []>} : vector<128x8xf32>, vector<8x4xf32>, vector<128x4xf32> -> vector<128x4xf32>
    %c296 = arith.constant 296 : index
    %c0_87 = arith.constant 0 : index
    %236 = vector.load %arg2[%c296, %c0_87] : memref<352x32xf32, #tpu.memory_space<vmem>>, vector<4x4xf32>
    %cst_88 = arith.constant dense<0.000000e+00> : vector<128x4xf32>
    %237 = tpu.matmul %224, %236, %cst_88 {dimension_numbers = #tpu.dot_dimension_numbers<[1], [0], [0], [1], [0, 0, 1, 1], [], []>} : vector<128x4xf32>, vector<4x4xf32>, vector<128x4xf32> -> vector<128x4xf32>
    %238 = arith.addf %235, %237 : vector<128x4xf32>
    %c304 = arith.constant 304 : index
    %c0_89 = arith.constant 0 : index
    %239 = vector.load %arg2[%c304, %c0_89] : memref<352x32xf32, #tpu.memory_space<vmem>>, vector<1x4xf32>
    %240 = vector.broadcast %233 : vector<128x1xf32> to vector<128x4xf32>
    %241 = vector.broadcast %239 : vector<1x4xf32> to vector<128x4xf32>
    %242 = arith.mulf %240, %241 : vector<128x4xf32>
    %243 = arith.addf %238, %242 : vector<128x4xf32>
    %c312 = arith.constant 312 : index
    %c0_90 = arith.constant 0 : index
    %244 = vector.load %arg2[%c312, %c0_90] : memref<352x32xf32, #tpu.memory_space<vmem>>, vector<1x4xf32>
    %245 = vector.broadcast %244 : vector<1x4xf32> to vector<128x4xf32>
    %246 = arith.addf %243, %245 : vector<128x4xf32>
    %c320 = arith.constant 320 : index
    %c0_91 = arith.constant 0 : index
    %247 = vector.load %arg2[%c320, %c0_91] : memref<352x32xf32, #tpu.memory_space<vmem>>, vector<1x4xf32>
    %c328 = arith.constant 328 : index
    %c0_92 = arith.constant 0 : index
    %248 = vector.load %arg2[%c328, %c0_92] : memref<352x32xf32, #tpu.memory_space<vmem>>, vector<1x4xf32>
    %cst_93 = arith.constant dense<0.000000e+00> : vector<128xf32>
    %249 = vector.multi_reduction <add>, %246, %cst_93 [1] : vector<128x4xf32> to vector<128xf32>
    %250 = vector.shape_cast %249 : vector<128xf32> to vector<128x1xf32>
    %cst_94 = arith.constant 4.000000e+00 : f32
    %251 = vector.broadcast %cst_94 : f32 to vector<128x1xf32>
    %252 = arith.divf %250, %251 : vector<128x1xf32>
    %253 = vector.broadcast %252 : vector<128x1xf32> to vector<128x4xf32>
    %254 = arith.subf %246, %253 : vector<128x4xf32>
    %255 = arith.mulf %254, %254 : vector<128x4xf32>
    %cst_95 = arith.constant dense<0.000000e+00> : vector<128xf32>
    %256 = vector.multi_reduction <add>, %255, %cst_95 [1] : vector<128x4xf32> to vector<128xf32>
    %257 = vector.shape_cast %256 : vector<128xf32> to vector<128x1xf32>
    %cst_96 = arith.constant 4.000000e+00 : f32
    %258 = vector.broadcast %cst_96 : f32 to vector<128x1xf32>
    %259 = arith.divf %257, %258 : vector<128x1xf32>
    %260 = vector.broadcast %252 : vector<128x1xf32> to vector<128x4xf32>
    %261 = arith.subf %246, %260 : vector<128x4xf32>
    %cst_97 = arith.constant 9.99999974E-6 : f32
    %262 = vector.broadcast %cst_97 : f32 to vector<128x1xf32>
    %263 = arith.addf %259, %262 : vector<128x1xf32>
    %264 = math.rsqrt %263 : vector<128x1xf32>
    %265 = vector.broadcast %264 : vector<128x1xf32> to vector<128x4xf32>
    %266 = arith.mulf %261, %265 : vector<128x4xf32>
    %267 = vector.broadcast %247 : vector<1x4xf32> to vector<128x4xf32>
    %268 = arith.mulf %266, %267 : vector<128x4xf32>
    %269 = vector.broadcast %248 : vector<1x4xf32> to vector<128x4xf32>
    %270 = arith.addf %268, %269 : vector<128x4xf32>
    %cst_98 = arith.constant 0.000000e+00 : f32
    %271 = vector.broadcast %cst_98 : f32 to vector<128x4xf32>
    %272 = arith.maximumf %270, %271 : vector<128x4xf32>
    %c336 = arith.constant 336 : index
    %c0_99 = arith.constant 0 : index
    %273 = vector.load %arg2[%c336, %c0_99] : memref<352x32xf32, #tpu.memory_space<vmem>>, vector<4x1xf32>
    %cst_100 = arith.constant dense<0.000000e+00> : vector<128x1xf32>
    %274 = tpu.matmul %272, %273, %cst_100 {dimension_numbers = #tpu.dot_dimension_numbers<[1], [0], [0], [1], [0, 0, 1, 1], [], []>} : vector<128x4xf32>, vector<4x1xf32>, vector<128x1xf32> -> vector<128x1xf32>
    %c344 = arith.constant 344 : index
    %c0_101 = arith.constant 0 : index
    %275 = vector.load %arg2[%c344, %c0_101] : memref<352x32xf32, #tpu.memory_space<vmem>>, vector<1x1xf32>
    %276 = vector.broadcast %275 : vector<1x1xf32> to vector<128x1xf32>
    %277 = arith.addf %274, %276 : vector<128x1xf32>
    %cst_102 = arith.constant 0.000000e+00 : f32
    %278 = vector.broadcast %cst_102 : f32 to vector<128x1xf32>
    %279 = arith.subf %278, %277 : vector<128x1xf32>
    %280 = math.exp %279 : vector<128x1xf32>
    %cst_103 = arith.constant 1.000000e+00 : f32
    %281 = vector.broadcast %cst_103 : f32 to vector<128x1xf32>
    %282 = arith.addf %281, %280 : vector<128x1xf32>
    %283 = tpu.reciprocal %282 {approx = true} : vector<128x1xf32> -> vector<128x1xf32>
    %c0_104 = arith.constant 0 : index
    %c5 = arith.constant 5 : index
    %284 = vector.load %arg3[%c0_104, %c5] : memref<128x6xf32, #tpu.memory_space<vmem>>, vector<128x1xf32>
    tpu.vector_store %arg3[%c0_104, %c5], %283 {strides = array<i32>} : memref<128x6xf32, #tpu.memory_space<vmem>>, vector<128x1xf32>,
    return
  }
  func.func @transform_0(%arg0: i32) -> (i32, i32) {
    %c0_i32 = arith.constant 0 : i32
    %c0_i32_0 = arith.constant 0 : i32
    return %arg0, %c0_i32 : i32, i32
  }
  func.func @transform_1(%arg0: i32) -> (i32, i32) {
    %c0_i32 = arith.constant 0 : i32
    %c0_i32_0 = arith.constant 0 : i32
    %c0_i32_1 = arith.constant 0 : i32
    return %c0_i32, %c0_i32_0 : i32, i32
  }
  func.func @transform_2(%arg0: i32) -> (i32, i32) {
    %c0_i32 = arith.constant 0 : i32
    %c0_i32_0 = arith.constant 0 : i32
    return %arg0, %c0_i32 : i32, i32
  }
}

</mosaic_0001>

<llo_original>
// kernel: tpu_custom_call.1
$region0: #{tpu_custom_call.1}
  #allocation0 [shape = 'u32[]', space=smem, size = 0x4, offset = 0x4, fixed_abs, tag = 'smem constant byte address 0x4 - core index']
  #allocation1 [shape = 'u32[144,128]{1,0:T(1,128)}', space=vmem, size = 0x12000, scoped, tag = 'internal scratch']
  %s0 = inlined_call_operand.vmem [shape: f32[128,16], index: 0, kind: input, shape index: {}]
  %s1 = inlined_call_operand.vmem [shape: f32[352,32], index: 1, kind: input, shape index: {}]
  %s2 = inlined_call_operand.vmem [shape: f32[128,6], index: 2, kind: output, shape index: {}]
  %s3 = sld [smem:[#allocation0]]
  $region18: #{tpu_custom_call.1} parent=0
    _
  %s5 = ssub.s32 1, %s3
  %s6 = scalar_select 0, %s5, %s3
  // Predicated region
  $region2: #{tpu_custom_call.1} parent=0 // pred_check
    _
  $region3: #{tpu_custom_call.1} parent=0 // pred_check_branch
    %8 = sbr.rel (0) target = $region5
  $region4: #{tpu_custom_call.1} parent=0 // pred_region
    _
  $region5: #{tpu_custom_call.1} parent=0 // pred_fallthru
    _
  // Predicated region
  $region6: #{tpu_custom_call.1} parent=0 // pred_check
    _
  $region7: #{tpu_custom_call.1} parent=0 // pred_check_branch
    %10 = sbr.rel (0) target = $region9
  $region8: #{tpu_custom_call.1} parent=0 // pred_region
    _
  $region9: #{tpu_custom_call.1} parent=0 // pred_fallthru
    _
  %v11 = vld [vmem:[%s0] sm:$0xff]
  %v12 = vld [vmem:[%s0 + $0x8] sm:$0xff]
  %v13 = vld [vmem:[%s0 + $0x10] sm:$0xff]
  %v14 = vld [vmem:[%s0 + $0x18] sm:$0xff]
  %v15 = vld [vmem:[%s0 + $0x20] sm:$0xff]
  %v16 = vld [vmem:[%s0 + $0x28] sm:$0xff]
  %v17 = vld [vmem:[%s0 + $0x30] sm:$0xff]
  %v18 = vld [vmem:[%s0 + $0x38] sm:$0xff]
  %v19 = vld [vmem:[%s0 + $0x40] sm:$0xff]
  %v20 = vld [vmem:[%s0 + $0x48] sm:$0xff]
  %v21 = vld [vmem:[%s0 + $0x50] sm:$0xff]
  %v22 = vld [vmem:[%s0 + $0x58] sm:$0xff]
  %v23 = vld [vmem:[%s0 + $0x60] sm:$0xff]
  %v24 = vld [vmem:[%s0 + $0x68] sm:$0xff]
  %v25 = vld [vmem:[%s0 + $0x70] sm:$0xff]
  %v26 = vld [vmem:[%s0 + $0x78] sm:$0xff]
  %v27 = vld [vmem:[%s1] sm:$0xff]
  %v28 = vld [vmem:[%s1 + $0x8] sm:$0xff]
  %v29 = vld [vmem:[%s1 + $0x10] sm:$0x1]
  %v30 = vlaneseq
  %v31 = vshrl.u32 %v30, 7
  %v32 = vsub.s32 0, %v31
  %v33 = vrot.slane %v29, %v32
  %vm34 = vcmask 130048
  %v36 = vsel %vm34, %v11, 0
  %v39 = vsel %vm34, %v12, 0
  %v42 = vsel %vm34, %v13, 0
  %v45 = vsel %vm34, %v14, 0
  %v48 = vsel %vm34, %v15, 0
  %v51 = vsel %vm34, %v16, 0
  %v54 = vsel %vm34, %v17, 0
  %v57 = vsel %vm34, %v18, 0
  %v60 = vsel %vm34, %v19, 0
  %v63 = vsel %vm34, %v20, 0
  %v66 = vsel %vm34, %v21, 0
  %v69 = vsel %vm34, %v22, 0
  %v72 = vsel %vm34, %v23, 0
  %v75 = vsel %vm34, %v24, 0
  %v78 = vsel %vm34, %v25, 0
  %v81 = vsel %vm34, %v26, 0
  %83 = vmatprep.subr.mxu0 0.0
  %84 = vmatpush1.msra.mxu0 %v27
  %85 = vmatprep.subr.mxu0 0.0
  %86 = vmatpush1.msra.mxu0 %v28
  %87 = vmatprep.subr.mxu0 0.0
  %88 = vmatpush1.msra.mxu0 0.0
  %89 = vmatprep.subr.mxu0 0.0
  %90 = vmatpush1.msra.mxu0 0.0
  %91 = vmatprep.subr.mxu0 0.0
  %92 = vmatpush1.msra.mxu0 0.0
  %93 = vmatprep.subr.mxu0 0.0
  %94 = vmatpush1.msra.mxu0 0.0
  %95 = vmatprep.subr.mxu0 0.0
  %96 = vmatpush1.msra.mxu0 0.0
  %97 = vmatprep.subr.mxu0 0.0
  %98 = vmatpush1.msra.mxu0 0.0
  %99 = vmatprep.subr.mxu0 0.0
  %100 = vmatpush1.msra.mxu0 0.0
  %101 = vmatprep.subr.mxu0 0.0
  %102 = vmatpush1.msra.mxu0 0.0
  %103 = vmatprep.subr.mxu0 0.0
  %104 = vmatpush1.msra.mxu0 0.0
  %105 = vmatprep.subr.mxu0 0.0
  %106 = vmatpush1.msra.mxu0 0.0
  %107 = vmatprep.subr.mxu0 0.0
  %108 = vmatpush1.msra.mxu0 0.0
  %109 = vmatprep.subr.mxu0 0.0
  %110 = vmatpush1.msra.mxu0 0.0
  %111 = vmatprep.subr.mxu0 0.0
  %112 = vmatpush1.msra.mxu0 0.0
  %113 = vmatprep.subr.mxu0 0.0
  %114 = vmatpush1.msra.mxu0 0.0
  %115 = vmatprep.subr.mxu0 0.0
  %116 = vmatpush1.msra.mxu0 0.0
  %117 = vmatprep.subr.mxu0 0.0
  %118 = vmatpush1.msra.mxu0 0.0
  %119 = vmatprep.subr.mxu0 0.0
  %120 = vmatpush1.msra.mxu0 0.0
  %121 = vmatprep.subr.mxu0 0.0
  %122 = vmatpush1.msra.mxu0 0.0
  %123 = vmatprep.subr.mxu0 0.0
  %124 = vmatpush1.msra.mxu0 0.0
  %125 = vmatprep.subr.mxu0 0.0
  %126 = vmatpush1.msra.mxu0 0.0
  %127 = vmatprep.subr.mxu0 0.0
  %128 = vmatpush1.msra.mxu0 0.0
  %129 = vmatprep.subr.mxu0 0.0
  %130 = vmatpush1.msra.mxu0 0.0
  %131 = vmatprep.subr.mxu0 0.0
  %132 = vmatpush1.msra.mxu0 0.0
  %133 = vmatprep.subr.mxu0 0.0
  %134 = vmatpush1.msra.mxu0 0.0
  %135 = vmatprep.subr.mxu0 0.0
  %136 = vmatpush1.msra.mxu0 0.0
  %137 = vmatprep.subr.mxu0 0.0
  %138 = vmatpush1.msra.mxu0 0.0
  %139 = vmatprep.subr.mxu0 0.0
  %140 = vmatpush1.msra.mxu0 0.0
  %141 = vmatprep.subr.mxu0 0.0
  %142 = vmatpush1.msra.mxu0 0.0
  %143 = vmatprep.subr.mxu0 0.0
  %144 = vmatpush1.msra.mxu0 0.0
  %145 = vmatprep.subr.mxu0 0.0
  %146 = vmatpush1.msra.mxu0 0.0
  %147 = vmatprep.mubr.f32.mxu0 0.0
  %148 = vmatmul.mubr.f32.gmra.mrb[0].mxu0 %v36
  %v149 = vpop.f32.mrb[0].mxu0
  %v150 = vadd.f32 %v33, %v149
  %v151 = vpop.f32.mrb[0].mxu0
  %152 = vmatprep.mubr.f32.mxu0 0.0
  %153 = vmatmul.mubr.f32.gmra.mrb[0].mxu0 %v39
  %v154 = vpop.f32.mrb[0].mxu0
  %v155 = vadd.f32 %v33, %v154
  %v156 = vpop.f32.mrb[0].mxu0
  %157 = vmatprep.mubr.f32.mxu0 0.0
  %158 = vmatmul.mubr.f32.gmra.mrb[0].mxu0 %v42
  %v159 = vpop.f32.mrb[0].mxu0
  %v160 = vadd.f32 %v33, %v159
  %v161 = vpop.f32.mrb[0].mxu0
  %162 = vmatprep.mubr.f32.mxu0 0.0
  %163 = vmatmul.mubr.f32.gmra.mrb[0].mxu0 %v45
  %v164 = vpop.f32.mrb[0].mxu0
  %v165 = vadd.f32 %v33, %v164
  %v166 = vpop.f32.mrb[0].mxu0
  %167 = vmatprep.mubr.f32.mxu0 0.0
  %168 = vmatmul.mubr.f32.gmra.mrb[0].mxu0 %v48
  %v169 = vpop.f32.mrb[0].mxu0
  %v170 = vadd.f32 %v33, %v169
  %v171 = vpop.f32.mrb[0].mxu0
  %172 = vmatprep.mubr.f32.mxu0 0.0
  %173 = vmatmul.mubr.f32.gmra.mrb[0].mxu0 %v51
  %v174 = vpop.f32.mrb[0].mxu0
  %v175 = vadd.f32 %v33, %v174
  %v176 = vpop.f32.mrb[0].mxu0
  %177 = vmatprep.mubr.f32.mxu0 0.0
  %178 = vmatmul.mubr.f32.gmra.mrb[0].mxu0 %v54
  %v179 = vpop.f32.mrb[0].mxu0
  %v180 = vadd.f32 %v33, %v179
  %v181 = vpop.f32.mrb[0].mxu0
  %182 = vmatprep.mubr.f32.mxu0 0.0
  %183 = vmatmul.mubr.f32.gmra.mrb[0].mxu0 %v57
  %v184 = vpop.f32.mrb[0].mxu0
  %v185 = vadd.f32 %v33, %v184
  %v186 = vpop.f32.mrb[0].mxu0
  %187 = vmatprep.mubr.f32.mxu0 0.0
  %188 = vmatmul.mubr.f32.gmra.mrb[0].mxu0 %v60
  %v189 = vpop.f32.mrb[0].mxu0
  %v190 = vadd.f32 %v33, %v189
  %v191 = vpop.f32.mrb[0].mxu0
  %192 = vmatprep.mubr.f32.mxu0 0.0
  %193 = vmatmul.mubr.f32.gmra.mrb[0].mxu0 %v63
  %v194 = vpop.f32.mrb[0].mxu0
  %v195 = vadd.f32 %v33, %v194
  %v196 = vpop.f32.mrb[0].mxu0
  %197 = vmatprep.mubr.f32.mxu0 0.0
  %198 = vmatmul.mubr.f32.gmra.mrb[0].mxu0 %v66
  %v199 = vpop.f32.mrb[0].mxu0
  %v200 = vadd.f32 %v33, %v199
  %v201 = vpop.f32.mrb[0].mxu0
  %202 = vmatprep.mubr.f32.mxu0 0.0
  %203 = vmatmul.mubr.f32.gmra.mrb[0].mxu0 %v69
  %v204 = vpop.f32.mrb[0].mxu0
  %v205 = vadd.f32 %v33, %v204
  %v206 = vpop.f32.mrb[0].mxu0
  %207 = vmatprep.mubr.f32.mxu0 0.0
  %208 = vmatmul.mubr.f32.gmra.mrb[0].mxu0 %v72
  %v209 = vpop.f32.mrb[0].mxu0
  %v210 = vadd.f32 %v33, %v209
  %v211 = vpop.f32.mrb[0].mxu0
  %212 = vmatprep.mubr.f32.mxu0 0.0
  %213 = vmatmul.mubr.f32.gmra.mrb[0].mxu0 %v75
  %v214 = vpop.f32.mrb[0].mxu0
  %v215 = vadd.f32 %v33, %v214
  %v216 = vpop.f32.mrb[0].mxu0
  %217 = vmatprep.mubr.f32.mxu0 0.0
  %218 = vmatmul.mubr.f32.gmra.mrb[0].mxu0 %v78
  %v219 = vpop.f32.mrb[0].mxu0
  %v220 = vadd.f32 %v33, %v219
  %v221 = vpop.f32.mrb[0].mxu0
  %222 = vmatprep.mubr.f32.mxu0 0.0
  %223 = vmatmul.mubr.f32.gmra.mrb[0].mxu0 %v81
  %v224 = vpop.f32.mrb[0].mxu0
  %v225 = vadd.f32 %v33, %v224
  %v226 = vpop.f32.mrb[0].mxu0
  %227 = vdwg.mxu0
  %v228 = vmax.f32 %v150, 0.0
  %v229 = vmax.f32 %v155, 0.0
  %v230 = vmax.f32 %v160, 0.0
  %v231 = vmax.f32 %v165, 0.0
  %v232 = vmax.f32 %v170, 0.0
  %v233 = vmax.f32 %v175, 0.0
  %v234 = vmax.f32 %v180, 0.0
  %v235 = vmax.f32 %v185, 0.0
  %v236 = vmax.f32 %v190, 0.0
  %v237 = vmax.f32 %v195, 0.0
  %v238 = vmax.f32 %v200, 0.0
  %v239 = vmax.f32 %v205, 0.0
  %v240 = vmax.f32 %v210, 0.0
  %v241 = vmax.f32 %v215, 0.0
  %v242 = vmax.f32 %v220, 0.0
  %v243 = vmax.f32 %v225, 0.0
  %v244 = vld [vmem:[%s1 + $0x18] sm:$0xff]
  %v245 = vld [vmem:[%s1 + $0x20] sm:$0xff]
  %v246 = vld [vmem:[%s1 + $0x28] sm:$0xff]
  %v247 = vld [vmem:[%s1 + $0x30] sm:$0xff]
  %v248 = vld [vmem:[%s1 + $0x38] sm:$0x1]
  %v249 = vlaneseq
  %v250 = vshrl.u32 %v249, 7
  %v251 = vsub.s32 0, %v250
  %v252 = vrot.slane %v248, %v251
  %vm253 = vcmask 261120
  %v255 = vsel %vm253, %v228, 0
  %v258 = vsel %vm253, %v229, 0
  %v261 = vsel %vm253, %v230, 0
  %v264 = vsel %vm253, %v231, 0
  %v267 = vsel %vm253, %v232, 0
  %v270 = vsel %vm253, %v233, 0
  %v273 = vsel %vm253, %v234, 0
  %v276 = vsel %vm253, %v235, 0
  %v279 = vsel %vm253, %v236, 0
  %v282 = vsel %vm253, %v237, 0
  %v285 = vsel %vm253, %v238, 0
  %v288 = vsel %vm253, %v239, 0
  %v291 = vsel %vm253, %v240, 0
  %v294 = vsel %vm253, %v241, 0
  %v297 = vsel %vm253, %v242, 0
  %v300 = vsel %vm253, %v243, 0
  %302 = vmatprep.subr.mxu0 0.0
  %303 = vmatpush1.msra.mxu0 %v244
  %304 = vmatprep.subr.mxu0 0.0
  %305 = vmatpush1.msra.mxu0 %v245
  %306 = vmatprep.subr.mxu0 0.0
  %307 = vmatpush1.msra.mxu0 %v246
  %308 = vmatprep.subr.mxu0 0.0
  %309 = vmatpush1.msra.mxu0 %v247
  %310 = vmatprep.subr.mxu0 0.0
  %311 = vmatpush1.msra.mxu0 0.0
  %312 = vmatprep.subr.mxu0 0.0
  %313 = vmatpush1.msra.mxu0 0.0
  %314 = vmatprep.subr.mxu0 0.0
  %315 = vmatpush1.msra.mxu0 0.0
  %316 = vmatprep.subr.mxu0 0.0
  %317 = vmatpush1.msra.mxu0 0.0
  %318 = vmatprep.subr.mxu0 0.0
  %319 = vmatpush1.msra.mxu0 0.0
  %320 = vmatprep.subr.mxu0 0.0
  %321 = vmatpush1.msra.mxu0 0.0
  %322 = vmatprep.subr.mxu0 0.0
  %323 = vmatpush1.msra.mxu0 0.0
  %324 = vmatprep.subr.mxu0 0.0
  %325 = vmatpush1.msra.mxu0 0.0
  %326 = vmatprep.subr.mxu0 0.0
  %327 = vmatpush1.msra.mxu0 0.0
  %328 = vmatprep.subr.mxu0 0.0
  %329 = vmatpush1.msra.mxu0 0.0
  %330 = vmatprep.subr.mxu0 0.0
  %331 = vmatpush1.msra.mxu0 0.0
  %332 = vmatprep.subr.mxu0 0.0
  %333 = vmatpush1.msra.mxu0 0.0
  %334 = vmatprep.subr.mxu0 0.0
  %335 = vmatpush1.msra.mxu0 0.0
  %336 = vmatprep.subr.mxu0 0.0
  %337 = vmatpush1.msra.mxu0 0.0
  %338 = vmatprep.subr.mxu0 0.0
  %339 = vmatpush1.msra.mxu0 0.0
  %340 = vmatprep.subr.mxu0 0.0
  %341 = vmatpush1.msra.mxu0 0.0
  %342 = vmatprep.subr.mxu0 0.0
  %343 = vmatpush1.msra.mxu0 0.0
  %344 = vmatprep.subr.mxu0 0.0
  %345 = vmatpush1.msra.mxu0 0.0
  %346 = vmatprep.subr.mxu0 0.0
  %347 = vmatpush1.msra.mxu0 0.0
  %348 = vmatprep.subr.mxu0 0.0
  %349 = vmatpush1.msra.mxu0 0.0
  %350 = vmatprep.subr.mxu0 0.0
  %351 = vmatpush1.msra.mxu0 0.0
  %352 = vmatprep.subr.mxu0 0.0
  %353 = vmatpush1.msra.mxu0 0.0
  %354 = vmatprep.subr.mxu0 0.0
  %355 = vmatpush1.msra.mxu0 0.0
  %356 = vmatprep.subr.mxu0 0.0
  %357 = vmatpush1.msra.mxu0 0.0
  %358 = vmatprep.subr.mxu0 0.0
  %359 = vmatpush1.msra.mxu0 0.0
  %360 = vmatprep.subr.mxu0 0.0
  %361 = vmatpush1.msra.mxu0 0.0
  %362 = vmatprep.subr.mxu0 0.0
  %363 = vmatpush1.msra.mxu0 0.0
  %364 = vmatprep.subr.mxu0 0.0
  %365 = vmatpush1.msra.mxu0 0.0
  %366 = vmatprep.mubr.f32.mxu0 0.0
  %367 = vmatmul.mubr.f32.gmra.mrb[0].mxu0 %v255
  %v368 = vpop.f32.mrb[0].mxu0
  %v369 = vadd.f32 %v252, %v368
  %v370 = vpop.f32.mrb[0].mxu0
  %371 = vmatprep.mubr.f32.mxu0 0.0
  %372 = vmatmul.mubr.f32.gmra.mrb[0].mxu0 %v258
  %v373 = vpop.f32.mrb[0].mxu0
  %v374 = vadd.f32 %v252, %v373
  %v375 = vpop.f32.mrb[0].mxu0
  %376 = vmatprep.mubr.f32.mxu0 0.0
  %377 = vmatmul.mubr.f32.gmra.mrb[0].mxu0 %v261
  %v378 = vpop.f32.mrb[0].mxu0
  %v379 = vadd.f32 %v252, %v378
  %v380 = vpop.f32.mrb[0].mxu0
  %381 = vmatprep.mubr.f32.mxu0 0.0
  %382 = vmatmul.mubr.f32.gmra.mrb[0].mxu0 %v264
  %v383 = vpop.f32.mrb[0].mxu0
  %v384 = vadd.f32 %v252, %v383
  %v385 = vpop.f32.mrb[0].mxu0
  %386 = vmatprep.mubr.f32.mxu0 0.0
  %387 = vmatmul.mubr.f32.gmra.mrb[0].mxu0 %v267
  %v388 = vpop.f32.mrb[0].mxu0
  %v389 = vadd.f32 %v252, %v388
  %v390 = vpop.f32.mrb[0].mxu0
  %391 = vmatprep.mubr.f32.mxu0 0.0
  %392 = vmatmul.mubr.f32.gmra.mrb[0].mxu0 %v270
  %v393 = vpop.f32.mrb[0].mxu0
  %v394 = vadd.f32 %v252, %v393
  %v395 = vpop.f32.mrb[0].mxu0
  %396 = vmatprep.mubr.f32.mxu0 0.0
  %397 = vmatmul.mubr.f32.gmra.mrb[0].mxu0 %v273
  %v398 = vpop.f32.mrb[0].mxu0
  %v399 = vadd.f32 %v252, %v398
  %v400 = vpop.f32.mrb[0].mxu0
  %401 = vmatprep.mubr.f32.mxu0 0.0
  %402 = vmatmul.mubr.f32.gmra.mrb[0].mxu0 %v276
  %v403 = vpop.f32.mrb[0].mxu0
  %v404 = vadd.f32 %v252, %v403
  %v405 = vpop.f32.mrb[0].mxu0
  %406 = vmatprep.mubr.f32.mxu0 0.0
  %407 = vmatmul.mubr.f32.gmra.mrb[0].mxu0 %v279
  %v408 = vpop.f32.mrb[0].mxu0
  %v409 = vadd.f32 %v252, %v408
  %v410 = vpop.f32.mrb[0].mxu0
  %411 = vmatprep.mubr.f32.mxu0 0.0
  %412 = vmatmul.mubr.f32.gmra.mrb[0].mxu0 %v282
  %v413 = vpop.f32.mrb[0].mxu0
  %v414 = vadd.f32 %v252, %v413
  %v415 = vpop.f32.mrb[0].mxu0
  %416 = vmatprep.mubr.f32.mxu0 0.0
  %417 = vmatmul.mubr.f32.gmra.mrb[0].mxu0 %v285
  %v418 = vpop.f32.mrb[0].mxu0
  %v419 = vadd.f32 %v252, %v418
  %v420 = vpop.f32.mrb[0].mxu0
  %421 = vmatprep.mubr.f32.mxu0 0.0
  %422 = vmatmul.mubr.f32.gmra.mrb[0].mxu0 %v288
  %v423 = vpop.f32.mrb[0].mxu0
  %v424 = vadd.f32 %v252, %v423
  %v425 = vpop.f32.mrb[0].mxu0
  %426 = vmatprep.mubr.f32.mxu0 0.0
  %427 = vmatmul.mubr.f32.gmra.mrb[0].mxu0 %v291
  %v428 = vpop.f32.mrb[0].mxu0
  %v429 = vadd.f32 %v252, %v428
  %v430 = vpop.f32.mrb[0].mxu0
  %431 = vmatprep.mubr.f32.mxu0 0.0
  %432 = vmatmul.mubr.f32.gmra.mrb[0].mxu0 %v294
  %v433 = vpop.f32.mrb[0].mxu0
  %v434 = vadd.f32 %v252, %v433
  %v435 = vpop.f32.mrb[0].mxu0
  %436 = vmatprep.mubr.f32.mxu0 0.0
  %437 = vmatmul.mubr.f32.gmra.mrb[0].mxu0 %v297
  %v438 = vpop.f32.mrb[0].mxu0
  %v439 = vadd.f32 %v252, %v438
  %v440 = vpop.f32.mrb[0].mxu0
  %441 = vmatprep.mubr.f32.mxu0 0.0
  %442 = vmatmul.mubr.f32.gmra.mrb[0].mxu0 %v300
  %v443 = vpop.f32.mrb[0].mxu0
  %v444 = vadd.f32 %v252, %v443
  %v445 = vpop.f32.mrb[0].mxu0
  %446 = vdwg.mxu0
  %v447 = vmax.f32 %v369, 0.0
  %v448 = vmax.f32 %v374, 0.0
  %v449 = vmax.f32 %v379, 0.0
  %v450 = vmax.f32 %v384, 0.0
  %v451 = vmax.f32 %v389, 0.0
  %v452 = vmax.f32 %v394, 0.0
  %v453 = vmax.f32 %v399, 0.0
  %v454 = vmax.f32 %v404, 0.0
  %v455 = vmax.f32 %v409, 0.0
  %v456 = vmax.f32 %v414, 0.0
  %v457 = vmax.f32 %v419, 0.0
  %v458 = vmax.f32 %v424, 0.0
  %v459 = vmax.f32 %v429, 0.0
  %v460 = vmax.f32 %v434, 0.0
  %v461 = vmax.f32 %v439, 0.0
  %v462 = vmax.f32 %v444, 0.0
  %v463 = vld [vmem:[%s1 + $0x40] sm:$0xff]
  %v464 = vld [vmem:[%s1 + $0x48] sm:$0xff]
  %v465 = vld [vmem:[%s1 + $0x50] sm:$0x1]
  %v466 = vlaneseq
  %v467 = vshrl.u32 %v466, 7
  %v468 = vsub.s32 0, %v467
  %v469 = vrot.slane %v465, %v468
  %v471 = vsel %vm34, %v447, 0
  %v474 = vsel %vm34, %v448, 0
  %v477 = vsel %vm34, %v449, 0
  %v480 = vsel %vm34, %v450, 0
  %v483 = vsel %vm34, %v451, 0
  %v486 = vsel %vm34, %v452, 0
  %v489 = vsel %vm34, %v453, 0
  %v492 = vsel %vm34, %v454, 0
  %v495 = vsel %vm34, %v455, 0
  %v498 = vsel %vm34, %v456, 0
  %v501 = vsel %vm34, %v457, 0
  %v504 = vsel %vm34, %v458, 0
  %v507 = vsel %vm34, %v459, 0
  %v510 = vsel %vm34, %v460, 0
  %v513 = vsel %vm34, %v461, 0
  %v516 = vsel %vm34, %v462, 0
  %518 = vmatprep.subr.mxu0 0.0
  %519 = vmatpush1.msra.mxu0 %v463
  %520 = vmatprep.subr.mxu0 0.0
  %521 = vmatpush1.msra.mxu0 %v464
  %522 = vmatprep.subr.mxu0 0.0
  %523 = vmatpush1.msra.mxu0 0.0
  %524 = vmatprep.subr.mxu0 0.0
  %525 = vmatpush1.msra.mxu0 0.0
  %526 = vmatprep.subr.mxu0 0.0
  %527 = vmatpush1.msra.mxu0 0.0
  %528 = vmatprep.subr.mxu0 0.0
  %529 = vmatpush1.msra.mxu0 0.0
  %530 = vmatprep.subr.mxu0 0.0
  %531 = vmatpush1.msra.mxu0 0.0
  %532 = vmatprep.subr.mxu0 0.0
  %533 = vmatpush1.msra.mxu0 0.0
  %534 = vmatprep.subr.mxu0 0.0
  %535 = vmatpush1.msra.mxu0 0.0
  %536 = vmatprep.subr.mxu0 0.0
  %537 = vmatpush1.msra.mxu0 0.0
  %538 = vmatprep.subr.mxu0 0.0
  %539 = vmatpush1.msra.mxu0 0.0
  %540 = vmatprep.subr.mxu0 0.0
  %541 = vmatpush1.msra.mxu0 0.0
  %542 = vmatprep.subr.mxu0 0.0
  %543 = vmatpush1.msra.mxu0 0.0
  %544 = vmatprep.subr.mxu0 0.0
  %545 = vmatpush1.msra.mxu0 0.0
  %546 = vmatprep.subr.mxu0 0.0
  %547 = vmatpush1.msra.mxu0 0.0
  %548 = vmatprep.subr.mxu0 0.0
  %549 = vmatpush1.msra.mxu0 0.0
  %550 = vmatprep.subr.mxu0 0.0
  %551 = vmatpush1.msra.mxu0 0.0
  %552 = vmatprep.subr.mxu0 0.0
  %553 = vmatpush1.msra.mxu0 0.0
  %554 = vmatprep.subr.mxu0 0.0
  %555 = vmatpush1.msra.mxu0 0.0
  %556 = vmatprep.subr.mxu0 0.0
  %557 = vmatpush1.msra.mxu0 0.0
  %558 = vmatprep.subr.mxu0 0.0
  %559 = vmatpush1.msra.mxu0 0.0
  %560 = vmatprep.subr.mxu0 0.0
  %561 = vmatpush1.msra.mxu0 0.0
  %562 = vmatprep.subr.mxu0 0.0
  %563 = vmatpush1.msra.mxu0 0.0
  %564 = vmatprep.subr.mxu0 0.0
  %565 = vmatpush1.msra.mxu0 0.0
  %566 = vmatprep.subr.mxu0 0.0
  %567 = vmatpush1.msra.mxu0 0.0
  %568 = vmatprep.subr.mxu0 0.0
  %569 = vmatpush1.msra.mxu0 0.0
  %570 = vmatprep.subr.mxu0 0.0
  %571 = vmatpush1.msra.mxu0 0.0
  %572 = vmatprep.subr.mxu0 0.0
  %573 = vmatpush1.msra.mxu0 0.0
  %574 = vmatprep.subr.mxu0 0.0
  %575 = vmatpush1.msra.mxu0 0.0
  %576 = vmatprep.subr.mxu0 0.0
  %577 = vmatpush1.msra.mxu0 0.0
  %578 = vmatprep.subr.mxu0 0.0
  %579 = vmatpush1.msra.mxu0 0.0
  %580 = vmatprep.subr.mxu0 0.0
  %581 = vmatpush1.msra.mxu0 0.0
  %582 = vmatprep.mubr.f32.mxu0 0.0
  %583 = vmatmul.mubr.f32.gmra.mrb[0].mxu0 %v471
  %v584 = vpop.f32.mrb[0].mxu0
  %v585 = vadd.f32 %v469, %v584
  %v586 = vpop.f32.mrb[0].mxu0
  %587 = vmatprep.mubr.f32.mxu0 0.0
  %588 = vmatmul.mubr.f32.gmra.mrb[0].mxu0 %v474
  %v589 = vpop.f32.mrb[0].mxu0
  %v590 = vadd.f32 %v469, %v589
  %v591 = vpop.f32.mrb[0].mxu0
  %592 = vmatprep.mubr.f32.mxu0 0.0
  %593 = vmatmul.mubr.f32.gmra.mrb[0].mxu0 %v477
  %v594 = vpop.f32.mrb[0].mxu0
  %v595 = vadd.f32 %v469, %v594
  %v596 = vpop.f32.mrb[0].mxu0
  %597 = vmatprep.mubr.f32.mxu0 0.0
  %598 = vmatmul.mubr.f32.gmra.mrb[0].mxu0 %v480
  %v599 = vpop.f32.mrb[0].mxu0
  %v600 = vadd.f32 %v469, %v599
  %v601 = vpop.f32.mrb[0].mxu0
  %602 = vmatprep.mubr.f32.mxu0 0.0
  %603 = vmatmul.mubr.f32.gmra.mrb[0].mxu0 %v483
  %v604 = vpop.f32.mrb[0].mxu0
  %v605 = vadd.f32 %v469, %v604
  %v606 = vpop.f32.mrb[0].mxu0
  %607 = vmatprep.mubr.f32.mxu0 0.0
  %608 = vmatmul.mubr.f32.gmra.mrb[0].mxu0 %v486
  %v609 = vpop.f32.mrb[0].mxu0
  %v610 = vadd.f32 %v469, %v609
  %v611 = vpop.f32.mrb[0].mxu0
  %612 = vmatprep.mubr.f32.mxu0 0.0
  %613 = vmatmul.mubr.f32.gmra.mrb[0].mxu0 %v489
  %v614 = vpop.f32.mrb[0].mxu0
  %v615 = vadd.f32 %v469, %v614
  %v616 = vpop.f32.mrb[0].mxu0
  %617 = vmatprep.mubr.f32.mxu0 0.0
  %618 = vmatmul.mubr.f32.gmra.mrb[0].mxu0 %v492
  %v619 = vpop.f32.mrb[0].mxu0
  %v620 = vadd.f32 %v469, %v619
  %v621 = vpop.f32.mrb[0].mxu0
  %622 = vmatprep.mubr.f32.mxu0 0.0
  %623 = vmatmul.mubr.f32.gmra.mrb[0].mxu0 %v495
  %v624 = vpop.f32.mrb[0].mxu0
  %v625 = vadd.f32 %v469, %v624
  %v626 = vpop.f32.mrb[0].mxu0
  %627 = vmatprep.mubr.f32.mxu0 0.0
  %628 = vmatmul.mubr.f32.gmra.mrb[0].mxu0 %v498
  %v629 = vpop.f32.mrb[0].mxu0
  %v630 = vadd.f32 %v469, %v629
  %v631 = vpop.f32.mrb[0].mxu0
  %632 = vmatprep.mubr.f32.mxu0 0.0
  %633 = vmatmul.mubr.f32.gmra.mrb[0].mxu0 %v501
  %v634 = vpop.f32.mrb[0].mxu0
  %v635 = vadd.f32 %v469, %v634
  %v636 = vpop.f32.mrb[0].mxu0
  %637 = vmatprep.mubr.f32.mxu0 0.0
  %638 = vmatmul.mubr.f32.gmra.mrb[0].mxu0 %v504
  %v639 = vpop.f32.mrb[0].mxu0
  %v640 = vadd.f32 %v469, %v639
  %v641 = vpop.f32.mrb[0].mxu0
  %642 = vmatprep.mubr.f32.mxu0 0.0
  %643 = vmatmul.mubr.f32.gmra.mrb[0].mxu0 %v507
  %v644 = vpop.f32.mrb[0].mxu0
  %v645 = vadd.f32 %v469, %v644
  %v646 = vpop.f32.mrb[0].mxu0
  %647 = vmatprep.mubr.f32.mxu0 0.0
  %648 = vmatmul.mubr.f32.gmra.mrb[0].mxu0 %v510
  %v649 = vpop.f32.mrb[0].mxu0
  %v650 = vadd.f32 %v469, %v649
  %v651 = vpop.f32.mrb[0].mxu0
  %652 = vmatprep.mubr.f32.mxu0 0.0
  %653 = vmatmul.mubr.f32.gmra.mrb[0].mxu0 %v513
  %v654 = vpop.f32.mrb[0].mxu0
  %v655 = vadd.f32 %v469, %v654
  %v656 = vpop.f32.mrb[0].mxu0
  %657 = vmatprep.mubr.f32.mxu0 0.0
  %658 = vmatmul.mubr.f32.gmra.mrb[0].mxu0 %v516
  %v659 = vpop.f32.mrb[0].mxu0
  %v660 = vadd.f32 %v469, %v659
  %v661 = vpop.f32.mrb[0].mxu0
  %662 = vdwg.mxu0
  %v663 = vmax.f32 %v585, 0.0
  %v664 = vmax.f32 %v590, 0.0
  %v665 = vmax.f32 %v595, 0.0
  %v666 = vmax.f32 %v600, 0.0
  %v667 = vmax.f32 %v605, 0.0
  %v668 = vmax.f32 %v610, 0.0
  %v669 = vmax.f32 %v615, 0.0
  %v670 = vmax.f32 %v620, 0.0
  %v671 = vmax.f32 %v625, 0.0
  %v672 = vmax.f32 %v630, 0.0
  %v673 = vmax.f32 %v635, 0.0
  %v674 = vmax.f32 %v640, 0.0
  %v675 = vmax.f32 %v645, 0.0
  %v676 = vmax.f32 %v650, 0.0
  %v677 = vmax.f32 %v655, 0.0
  %v678 = vmax.f32 %v660, 0.0
  %v679 = vld [vmem:[%s1 + $0x58] sm:$0x1]
  %v680 = vld [vmem:[%s1 + $0x60] sm:$0x1]
  %vm681 = vcmask 64512
  %v682 = vsel %vm681, %v663, 0.0
  %683 = vadd.xlane.f32.xlu0 %v682
  %v684 = vpop.xlane.xlu0 %683
  %v685 = vsel %vm681, %v664, 0.0
  %686 = vadd.xlane.f32.xlu0 %v685
  %v687 = vpop.xlane.xlu0 %686
  %v688 = vsel %vm681, %v665, 0.0
  %689 = vadd.xlane.f32.xlu0 %v688
  %v690 = vpop.xlane.xlu0 %689
  %v691 = vsel %vm681, %v666, 0.0
  %692 = vadd.xlane.f32.xlu0 %v691
  %v693 = vpop.xlane.xlu0 %692
  %v694 = vsel %vm681, %v667, 0.0
  %695 = vadd.xlane.f32.xlu0 %v694
  %v696 = vpop.xlane.xlu0 %695
  %v697 = vsel %vm681, %v668, 0.0
  %698 = vadd.xlane.f32.xlu0 %v697
  %v699 = vpop.xlane.xlu0 %698
  %v700 = vsel %vm681, %v669, 0.0
  %701 = vadd.xlane.f32.xlu0 %v700
  %v702 = vpop.xlane.xlu0 %701
  %v703 = vsel %vm681, %v670, 0.0
  %704 = vadd.xlane.f32.xlu0 %v703
  %v705 = vpop.xlane.xlu0 %704
  %v706 = vsel %vm681, %v671, 0.0
  %707 = vadd.xlane.f32.xlu0 %v706
  %v708 = vpop.xlane.xlu0 %707
  %v709 = vsel %vm681, %v672, 0.0
  %710 = vadd.xlane.f32.xlu0 %v709
  %v711 = vpop.xlane.xlu0 %710
  %v712 = vsel %vm681, %v673, 0.0
  %713 = vadd.xlane.f32.xlu0 %v712
  %v714 = vpop.xlane.xlu0 %713
  %v715 = vsel %vm681, %v674, 0.0
  %716 = vadd.xlane.f32.xlu0 %v715
  %v717 = vpop.xlane.xlu0 %716
  %v718 = vsel %vm681, %v675, 0.0
  %719 = vadd.xlane.f32.xlu0 %v718
  %v720 = vpop.xlane.xlu0 %719
  %v721 = vsel %vm681, %v676, 0.0
  %722 = vadd.xlane.f32.xlu0 %v721
  %v723 = vpop.xlane.xlu0 %722
  %v724 = vsel %vm681, %v677, 0.0
  %725 = vadd.xlane.f32.xlu0 %v724
  %v726 = vpop.xlane.xlu0 %725
  %v727 = vsel %vm681, %v678, 0.0
  %728 = vadd.xlane.f32.xlu0 %v727
  %v729 = vpop.xlane.xlu0 %728
  %v730 = vrcp.pop 8.0
  %v731 = vmul.f32 %v684, %v730
  %v732 = vmul.f32 %v687, %v730
  %v733 = vmul.f32 %v690, %v730
  %v734 = vmul.f32 %v693, %v730
  %v735 = vmul.f32 %v696, %v730
  %v736 = vmul.f32 %v699, %v730
  %v737 = vmul.f32 %v702, %v730
  %v738 = vmul.f32 %v705, %v730
  %v739 = vmul.f32 %v708, %v730
  %v740 = vmul.f32 %v711, %v730
  %v741 = vmul.f32 %v714, %v730
  %v742 = vmul.f32 %v717, %v730
  %v743 = vmul.f32 %v720, %v730
  %v744 = vmul.f32 %v723, %v730
  %v745 = vmul.f32 %v726, %v730
  %v746 = vmul.f32 %v729, %v730
  %v747 = vsub.f32 %v663, %v731
  %v748 = vsub.f32 %v664, %v732
  %v749 = vsub.f32 %v665, %v733
  %v750 = vsub.f32 %v666, %v734
  %v751 = vsub.f32 %v667, %v735
  %v752 = vsub.f32 %v668, %v736
  %v753 = vsub.f32 %v669, %v737
  %v754 = vsub.f32 %v670, %v738
  %v755 = vsub.f32 %v671, %v739
  %v756 = vsub.f32 %v672, %v740
  %v757 = vsub.f32 %v673, %v741
  %v758 = vsub.f32 %v674, %v742
  %v759 = vsub.f32 %v675, %v743
  %v760 = vsub.f32 %v676, %v744
  %v761 = vsub.f32 %v677, %v745
  %v762 = vsub.f32 %v678, %v746
  %v763 = vmul.f32 %v747, %v747
  %v764 = vmul.f32 %v748, %v748
  %v765 = vmul.f32 %v749, %v749
  %v766 = vmul.f32 %v750, %v750
  %v767 = vmul.f32 %v751, %v751
  %v768 = vmul.f32 %v752, %v752
  %v769 = vmul.f32 %v753, %v753
  %v770 = vmul.f32 %v754, %v754
  %v771 = vmul.f32 %v755, %v755
  %v772 = vmul.f32 %v756, %v756
  %v773 = vmul.f32 %v757, %v757
  %v774 = vmul.f32 %v758, %v758
  %v775 = vmul.f32 %v759, %v759
  %v776 = vmul.f32 %v760, %v760
  %v777 = vmul.f32 %v761, %v761
  %v778 = vmul.f32 %v762, %v762
  %v779 = vsel %vm681, %v763, 0.0
  %780 = vadd.xlane.f32.xlu0 %v779
  %v781 = vpop.xlane.xlu0 %780
  %v782 = vsel %vm681, %v764, 0.0
  %783 = vadd.xlane.f32.xlu0 %v782
  %v784 = vpop.xlane.xlu0 %783
  %v785 = vsel %vm681, %v765, 0.0
  %786 = vadd.xlane.f32.xlu0 %v785
  %v787 = vpop.xlane.xlu0 %786
  %v788 = vsel %vm681, %v766, 0.0
  %789 = vadd.xlane.f32.xlu0 %v788
  %v790 = vpop.xlane.xlu0 %789
  %v791 = vsel %vm681, %v767, 0.0
  %792 = vadd.xlane.f32.xlu0 %v791
  %v793 = vpop.xlane.xlu0 %792
  %v794 = vsel %vm681, %v768, 0.0
  %795 = vadd.xlane.f32.xlu0 %v794
  %v796 = vpop.xlane.xlu0 %795
  %v797 = vsel %vm681, %v769, 0.0
  %798 = vadd.xlane.f32.xlu0 %v797
  %v799 = vpop.xlane.xlu0 %798
  %v800 = vsel %vm681, %v770, 0.0
  %801 = vadd.xlane.f32.xlu0 %v800
  %v802 = vpop.xlane.xlu0 %801
  %v803 = vsel %vm681, %v771, 0.0
  %804 = vadd.xlane.f32.xlu0 %v803
  %v805 = vpop.xlane.xlu0 %804
  %v806 = vsel %vm681, %v772, 0.0
  %807 = vadd.xlane.f32.xlu0 %v806
  %v808 = vpop.xlane.xlu0 %807
  %v809 = vsel %vm681, %v773, 0.0
  %810 = vadd.xlane.f32.xlu0 %v809
  %v811 = vpop.xlane.xlu0 %810
  %v812 = vsel %vm681, %v774, 0.0
  %813 = vadd.xlane.f32.xlu0 %v812
  %v814 = vpop.xlane.xlu0 %813
  %v815 = vsel %vm681, %v775, 0.0
  %816 = vadd.xlane.f32.xlu0 %v815
  %v817 = vpop.xlane.xlu0 %816
  %v818 = vsel %vm681, %v776, 0.0
  %819 = vadd.xlane.f32.xlu0 %v818
  %v820 = vpop.xlane.xlu0 %819
  %v821 = vsel %vm681, %v777, 0.0
  %822 = vadd.xlane.f32.xlu0 %v821
  %v823 = vpop.xlane.xlu0 %822
  %v824 = vsel %vm681, %v778, 0.0
  %825 = vadd.xlane.f32.xlu0 %v824
  %v826 = vpop.xlane.xlu0 %825
  %v827 = vmul.f32 %v781, %v730
  %v828 = vmul.f32 %v784, %v730
  %v829 = vmul.f32 %v787, %v730
  %v830 = vmul.f32 %v790, %v730
  %v831 = vmul.f32 %v793, %v730
  %v832 = vmul.f32 %v796, %v730
  %v833 = vmul.f32 %v799, %v730
  %v834 = vmul.f32 %v802, %v730
  %v835 = vmul.f32 %v805, %v730
  %v836 = vmul.f32 %v808, %v730
  %v837 = vmul.f32 %v811, %v730
  %v838 = vmul.f32 %v814, %v730
  %v839 = vmul.f32 %v817, %v730
  %v840 = vmul.f32 %v820, %v730
  %v841 = vmul.f32 %v823, %v730
  %v842 = vmul.f32 %v826, %v730
  %v843 = vadd.f32 %v827, 1e-05
  %v844 = vadd.f32 %v828, 1e-05
  %v845 = vadd.f32 %v829, 1e-05
  %v846 = vadd.f32 %v830, 1e-05
  %v847 = vadd.f32 %v831, 1e-05
  %v848 = vadd.f32 %v832, 1e-05
  %v849 = vadd.f32 %v833, 1e-05
  %v850 = vadd.f32 %v834, 1e-05
  %v851 = vadd.f32 %v835, 1e-05
  %v852 = vadd.f32 %v836, 1e-05
  %v853 = vadd.f32 %v837, 1e-05
  %v854 = vadd.f32 %v838, 1e-05
  %v855 = vadd.f32 %v839, 1e-05
  %v856 = vadd.f32 %v840, 1e-05
  %v857 = vadd.f32 %v841, 1e-05
  %v858 = vadd.f32 %v842, 1e-05
  %v859 = vrsqrt.pop %v843
  %v860 = vrsqrt.pop %v844
  %v861 = vrsqrt.pop %v845
  %v862 = vrsqrt.pop %v846
  %v863 = vrsqrt.pop %v847
  %v864 = vrsqrt.pop %v848
  %v865 = vrsqrt.pop %v849
  %v866 = vrsqrt.pop %v850
  %v867 = vrsqrt.pop %v851
  %v868 = vrsqrt.pop %v852
  %v869 = vrsqrt.pop %v853
  %v870 = vrsqrt.pop %v854
  %v871 = vrsqrt.pop %v855
  %v872 = vrsqrt.pop %v856
  %v873 = vrsqrt.pop %v857
  %v874 = vrsqrt.pop %v858
  %v875 = vmul.f32 %v747, %v859
  %v876 = vmul.f32 %v748, %v860
  %v877 = vmul.f32 %v749, %v861
  %v878 = vmul.f32 %v750, %v862
  %v879 = vmul.f32 %v751, %v863
  %v880 = vmul.f32 %v752, %v864
  %v881 = vmul.f32 %v753, %v865
  %v882 = vmul.f32 %v754, %v866
  %v883 = vmul.f32 %v755, %v867
  %v884 = vmul.f32 %v756, %v868
  %v885 = vmul.f32 %v757, %v869
  %v886 = vmul.f32 %v758, %v870
  %v887 = vmul.f32 %v759, %v871
  %v888 = vmul.f32 %v760, %v872
  %v889 = vmul.f32 %v761, %v873
  %v890 = vmul.f32 %v762, %v874
  %v891 = vlaneseq
  %v892 = vshrl.u32 %v891, 7
  %v893 = vsub.s32 0, %v892
  %v894 = vrot.slane %v679, %v893
  %v895 = vmul.f32 %v875, %v894
  %v896 = vmul.f32 %v876, %v894
  %v897 = vmul.f32 %v877, %v894
  %v898 = vmul.f32 %v878, %v894
  %v899 = vmul.f32 %v879, %v894
  %v900 = vmul.f32 %v880, %v894
  %v901 = vmul.f32 %v881, %v894
  %v902 = vmul.f32 %v882, %v894
  %v903 = vmul.f32 %v883, %v894
  %v904 = vmul.f32 %v884, %v894
  %v905 = vmul.f32 %v885, %v894
  %v906 = vmul.f32 %v886, %v894
  %v907 = vmul.f32 %v887, %v894
  %v908 = vmul.f32 %v888, %v894
  %v909 = vmul.f32 %v889, %v894
  %v910 = vmul.f32 %v890, %v894
  %v911 = vlaneseq
  %v912 = vshrl.u32 %v911, 7
  %v913 = vsub.s32 0, %v912
  %v914 = vrot.slane %v680, %v913
  %v915 = vadd.f32 %v895, %v914
  %v916 = vadd.f32 %v896, %v914
  %v917 = vadd.f32 %v897, %v914
  %v918 = vadd.f32 %v898, %v914
  %v919 = vadd.f32 %v899, %v914
  %v920 = vadd.f32 %v900, %v914
  %v921 = vadd.f32 %v901, %v914
  %v922 = vadd.f32 %v902, %v914
  %v923 = vadd.f32 %v903, %v914
  %v924 = vadd.f32 %v904, %v914
  %v925 = vadd.f32 %v905, %v914
  %v926 = vadd.f32 %v906, %v914
  %v927 = vadd.f32 %v907, %v914
  %v928 = vadd.f32 %v908, %v914
  %v929 = vadd.f32 %v909, %v914
  %v930 = vadd.f32 %v910, %v914
  %v931 = vmax.f32 %v915, 0.0
  %v932 = vmax.f32 %v916, 0.0
  %v933 = vmax.f32 %v917, 0.0
  %v934 = vmax.f32 %v918, 0.0
  %v935 = vmax.f32 %v919, 0.0
  %v936 = vmax.f32 %v920, 0.0
  %v937 = vmax.f32 %v921, 0.0
  %v938 = vmax.f32 %v922, 0.0
  %v939 = vmax.f32 %v923, 0.0
  %v940 = vmax.f32 %v924, 0.0
  %v941 = vmax.f32 %v925, 0.0
  %v942 = vmax.f32 %v926, 0.0
  %v943 = vmax.f32 %v927, 0.0
  %v944 = vmax.f32 %v928, 0.0
  %v945 = vmax.f32 %v929, 0.0
  %v946 = vmax.f32 %v930, 0.0
  %v947 = vld [vmem:[%s1 + $0x68] sm:$0xff]
  %v948 = vld [vmem:[%s1 + $0x70] sm:$0x1]
  %v949 = vlaneseq
  %v950 = vshrl.u32 %v949, 7
  %v951 = vsub.s32 0, %v950
  %v952 = vrot.slane %v948, %v951
  %v954 = vsel %vm681, %v931, 0
  %v957 = vsel %vm681, %v932, 0
  %v960 = vsel %vm681, %v933, 0
  %v963 = vsel %vm681, %v934, 0
  %v966 = vsel %vm681, %v935, 0
  %v969 = vsel %vm681, %v936, 0
  %v972 = vsel %vm681, %v937, 0
  %v975 = vsel %vm681, %v938, 0
  %v978 = vsel %vm681, %v939, 0
  %v981 = vsel %vm681, %v940, 0
  %v984 = vsel %vm681, %v941, 0
  %v987 = vsel %vm681, %v942, 0
  %v990 = vsel %vm681, %v943, 0
  %v993 = vsel %vm681, %v944, 0
  %v996 = vsel %vm681, %v945, 0
  %v999 = vsel %vm681, %v946, 0
  %1001 = vmatprep.subr.mxu0 0.0
  %1002 = vmatpush1.msra.mxu0 %v947
  %1003 = vmatprep.subr.mxu0 0.0
  %1004 = vmatpush1.msra.mxu0 0.0
  %1005 = vmatprep.subr.mxu0 0.0
  %1006 = vmatpush1.msra.mxu0 0.0
  %1007 = vmatprep.subr.mxu0 0.0
  %1008 = vmatpush1.msra.mxu0 0.0
  %1009 = vmatprep.subr.mxu0 0.0
  %1010 = vmatpush1.msra.mxu0 0.0
  %1011 = vmatprep.subr.mxu0 0.0
  %1012 = vmatpush1.msra.mxu0 0.0
  %1013 = vmatprep.subr.mxu0 0.0
  %1014 = vmatpush1.msra.mxu0 0.0
  %1015 = vmatprep.subr.mxu0 0.0
  %1016 = vmatpush1.msra.mxu0 0.0
  %1017 = vmatprep.subr.mxu0 0.0
  %1018 = vmatpush1.msra.mxu0 0.0
  %1019 = vmatprep.subr.mxu0 0.0
  %1020 = vmatpush1.msra.mxu0 0.0
  %1021 = vmatprep.subr.mxu0 0.0
  %1022 = vmatpush1.msra.mxu0 0.0
  %1023 = vmatprep.subr.mxu0 0.0
  %1024 = vmatpush1.msra.mxu0 0.0
  %1025 = vmatprep.subr.mxu0 0.0
  %1026 = vmatpush1.msra.mxu0 0.0
  %1027 = vmatprep.subr.mxu0 0.0
  %1028 = vmatpush1.msra.mxu0 0.0
  %1029 = vmatprep.subr.mxu0 0.0
  %1030 = vmatpush1.msra.mxu0 0.0
  %1031 = vmatprep.subr.mxu0 0.0
  %1032 = vmatpush1.msra.mxu0 0.0
  %1033 = vmatprep.subr.mxu0 0.0
  %1034 = vmatpush1.msra.mxu0 0.0
  %1035 = vmatprep.subr.mxu0 0.0
  %1036 = vmatpush1.msra.mxu0 0.0
  %1037 = vmatprep.subr.mxu0 0.0
  %1038 = vmatpush1.msra.mxu0 0.0
  %1039 = vmatprep.subr.mxu0 0.0
  %1040 = vmatpush1.msra.mxu0 0.0
  %1041 = vmatprep.subr.mxu0 0.0
  %1042 = vmatpush1.msra.mxu0 0.0
  %1043 = vmatprep.subr.mxu0 0.0
  %1044 = vmatpush1.msra.mxu0 0.0
  %1045 = vmatprep.subr.mxu0 0.0
  %1046 = vmatpush1.msra.mxu0 0.0
  %1047 = vmatprep.subr.mxu0 0.0
  %1048 = vmatpush1.msra.mxu0 0.0
  %1049 = vmatprep.subr.mxu0 0.0
  %1050 = vmatpush1.msra.mxu0 0.0
  %1051 = vmatprep.subr.mxu0 0.0
  %1052 = vmatpush1.msra.mxu0 0.0
  %1053 = vmatprep.subr.mxu0 0.0
  %1054 = vmatpush1.msra.mxu0 0.0
  %1055 = vmatprep.subr.mxu0 0.0
  %1056 = vmatpush1.msra.mxu0 0.0
  %1057 = vmatprep.subr.mxu0 0.0
  %1058 = vmatpush1.msra.mxu0 0.0
  %1059 = vmatprep.subr.mxu0 0.0
  %1060 = vmatpush1.msra.mxu0 0.0
  %1061 = vmatprep.subr.mxu0 0.0
  %1062 = vmatpush1.msra.mxu0 0.0
  %1063 = vmatprep.subr.mxu0 0.0
  %1064 = vmatpush1.msra.mxu0 0.0
  %1065 = vmatprep.mubr.f32.mxu0 0.0
  %1066 = vmatmul.mubr.f32.gmra.mrb[0].mxu0 %v954
  %v1067 = vpop.f32.mrb[0].mxu0
  %v1068 = vadd.f32 %v952, %v1067
  %v1069 = vpop.f32.mrb[0].mxu0
  %1070 = vmatprep.mubr.f32.mxu0 0.0
  %1071 = vmatmul.mubr.f32.gmra.mrb[0].mxu0 %v957
  %v1072 = vpop.f32.mrb[0].mxu0
  %v1073 = vadd.f32 %v952, %v1072
  %v1074 = vpop.f32.mrb[0].mxu0
  %1075 = vmatprep.mubr.f32.mxu0 0.0
  %1076 = vmatmul.mubr.f32.gmra.mrb[0].mxu0 %v960
  %v1077 = vpop.f32.mrb[0].mxu0
  %v1078 = vadd.f32 %v952, %v1077
  %v1079 = vpop.f32.mrb[0].mxu0
  %1080 = vmatprep.mubr.f32.mxu0 0.0
  %1081 = vmatmul.mubr.f32.gmra.mrb[0].mxu0 %v963
  %v1082 = vpop.f32.mrb[0].mxu0
  %v1083 = vadd.f32 %v952, %v1082
  %v1084 = vpop.f32.mrb[0].mxu0
  %1085 = vmatprep.mubr.f32.mxu0 0.0
  %1086 = vmatmul.mubr.f32.gmra.mrb[0].mxu0 %v966
  %v1087 = vpop.f32.mrb[0].mxu0
  %v1088 = vadd.f32 %v952, %v1087
  %v1089 = vpop.f32.mrb[0].mxu0
  %1090 = vmatprep.mubr.f32.mxu0 0.0
  %1091 = vmatmul.mubr.f32.gmra.mrb[0].mxu0 %v969
  %v1092 = vpop.f32.mrb[0].mxu0
  %v1093 = vadd.f32 %v952, %v1092
  %v1094 = vpop.f32.mrb[0].mxu0
  %1095 = vmatprep.mubr.f32.mxu0 0.0
  %1096 = vmatmul.mubr.f32.gmra.mrb[0].mxu0 %v972
  %v1097 = vpop.f32.mrb[0].mxu0
  %v1098 = vadd.f32 %v952, %v1097
  %v1099 = vpop.f32.mrb[0].mxu0
  %1100 = vmatprep.mubr.f32.mxu0 0.0
  %1101 = vmatmul.mubr.f32.gmra.mrb[0].mxu0 %v975
  %v1102 = vpop.f32.mrb[0].mxu0
  %v1103 = vadd.f32 %v952, %v1102
  %v1104 = vpop.f32.mrb[0].mxu0
  %1105 = vmatprep.mubr.f32.mxu0 0.0
  %1106 = vmatmul.mubr.f32.gmra.mrb[0].mxu0 %v978
  %v1107 = vpop.f32.mrb[0].mxu0
  %v1108 = vadd.f32 %v952, %v1107
  %v1109 = vpop.f32.mrb[0].mxu0
  %1110 = vmatprep.mubr.f32.mxu0 0.0
  %1111 = vmatmul.mubr.f32.gmra.mrb[0].mxu0 %v981
  %v1112 = vpop.f32.mrb[0].mxu0
  %v1113 = vadd.f32 %v952, %v1112
  %v1114 = vpop.f32.mrb[0].mxu0
  %1115 = vmatprep.mubr.f32.mxu0 0.0
  %1116 = vmatmul.mubr.f32.gmra.mrb[0].mxu0 %v984
  %v1117 = vpop.f32.mrb[0].mxu0
  %v1118 = vadd.f32 %v952, %v1117
  %v1119 = vpop.f32.mrb[0].mxu0
  %1120 = vmatprep.mubr.f32.mxu0 0.0
  %1121 = vmatmul.mubr.f32.gmra.mrb[0].mxu0 %v987
  %v1122 = vpop.f32.mrb[0].mxu0
  %v1123 = vadd.f32 %v952, %v1122
  %v1124 = vpop.f32.mrb[0].mxu0
  %1125 = vmatprep.mubr.f32.mxu0 0.0
  %1126 = vmatmul.mubr.f32.gmra.mrb[0].mxu0 %v990
  %v1127 = vpop.f32.mrb[0].mxu0
  %v1128 = vadd.f32 %v952, %v1127
  %v1129 = vpop.f32.mrb[0].mxu0
  %1130 = vmatprep.mubr.f32.mxu0 0.0
  %1131 = vmatmul.mubr.f32.gmra.mrb[0].mxu0 %v993
  %v1132 = vpop.f32.mrb[0].mxu0
  %v1133 = vadd.f32 %v952, %v1132
  %v1134 = vpop.f32.mrb[0].mxu0
  %1135 = vmatprep.mubr.f32.mxu0 0.0
  %1136 = vmatmul.mubr.f32.gmra.mrb[0].mxu0 %v996
  %v1137 = vpop.f32.mrb[0].mxu0
  %v1138 = vadd.f32 %v952, %v1137
  %v1139 = vpop.f32.mrb[0].mxu0
  %1140 = vmatprep.mubr.f32.mxu0 0.0
  %1141 = vmatmul.mubr.f32.gmra.mrb[0].mxu0 %v999
  %v1142 = vpop.f32.mrb[0].mxu0
  %v1143 = vadd.f32 %v952, %v1142
  %v1144 = vpop.f32.mrb[0].mxu0
  %1145 = vdwg.mxu0
  %v1146 = vld [vmem:[%s1 + $0x78] sm:$0x1]
  %v1147 = vld [vmem:[%s1 + $0x80] sm:$0x1]
  %vm1148 = vcmask 31744
  %v1149 = vsel %vm1148, %v1068, 0.0
  %1150 = vadd.xlane.f32.xlu0 %v1149
  %v1151 = vpop.xlane.xlu0 %1150
  %v1152 = vsel %vm1148, %v1073, 0.0
  %1153 = vadd.xlane.f32.xlu0 %v1152
  %v1154 = vpop.xlane.xlu0 %1153
  %v1155 = vsel %vm1148, %v1078, 0.0
  %1156 = vadd.xlane.f32.xlu0 %v1155
  %v1157 = vpop.xlane.xlu0 %1156
  %v1158 = vsel %vm1148, %v1083, 0.0
  %1159 = vadd.xlane.f32.xlu0 %v1158
  %v1160 = vpop.xlane.xlu0 %1159
  %v1161 = vsel %vm1148, %v1088, 0.0
  %1162 = vadd.xlane.f32.xlu0 %v1161
  %v1163 = vpop.xlane.xlu0 %1162
  %v1164 = vsel %vm1148, %v1093, 0.0
  %1165 = vadd.xlane.f32.xlu0 %v1164
  %v1166 = vpop.xlane.xlu0 %1165
  %v1167 = vsel %vm1148, %v1098, 0.0
  %1168 = vadd.xlane.f32.xlu0 %v1167
  %v1169 = vpop.xlane.xlu0 %1168
  %v1170 = vsel %vm1148, %v1103, 0.0
  %1171 = vadd.xlane.f32.xlu0 %v1170
  %v1172 = vpop.xlane.xlu0 %1171
  %v1173 = vsel %vm1148, %v1108, 0.0
  %1174 = vadd.xlane.f32.xlu0 %v1173
  %v1175 = vpop.xlane.xlu0 %1174
  %v1176 = vsel %vm1148, %v1113, 0.0
  %1177 = vadd.xlane.f32.xlu0 %v1176
  %v1178 = vpop.xlane.xlu0 %1177
  %v1179 = vsel %vm1148, %v1118, 0.0
  %1180 = vadd.xlane.f32.xlu0 %v1179
  %v1181 = vpop.xlane.xlu0 %1180
  %v1182 = vsel %vm1148, %v1123, 0.0
  %1183 = vadd.xlane.f32.xlu0 %v1182
  %v1184 = vpop.xlane.xlu0 %1183
  %v1185 = vsel %vm1148, %v1128, 0.0
  %1186 = vadd.xlane.f32.xlu0 %v1185
  %v1187 = vpop.xlane.xlu0 %1186
  %v1188 = vsel %vm1148, %v1133, 0.0
  %1189 = vadd.xlane.f32.xlu0 %v1188
  %v1190 = vpop.xlane.xlu0 %1189
  %v1191 = vsel %vm1148, %v1138, 0.0
  %1192 = vadd.xlane.f32.xlu0 %v1191
  %v1193 = vpop.xlane.xlu0 %1192
  %v1194 = vsel %vm1148, %v1143, 0.0
  %1195 = vadd.xlane.f32.xlu0 %v1194
  %v1196 = vpop.xlane.xlu0 %1195
  %v1197 = vrcp.pop 4.0
  %v1198 = vmul.f32 %v1151, %v1197
  %v1199 = vmul.f32 %v1154, %v1197
  %v1200 = vmul.f32 %v1157, %v1197
  %v1201 = vmul.f32 %v1160, %v1197
  %v1202 = vmul.f32 %v1163, %v1197
  %v1203 = vmul.f32 %v1166, %v1197
  %v1204 = vmul.f32 %v1169, %v1197
  %v1205 = vmul.f32 %v1172, %v1197
  %v1206 = vmul.f32 %v1175, %v1197
  %v1207 = vmul.f32 %v1178, %v1197
  %v1208 = vmul.f32 %v1181, %v1197
  %v1209 = vmul.f32 %v1184, %v1197
  %v1210 = vmul.f32 %v1187, %v1197
  %v1211 = vmul.f32 %v1190, %v1197
  %v1212 = vmul.f32 %v1193, %v1197
  %v1213 = vmul.f32 %v1196, %v1197
  %v1214 = vsub.f32 %v1068, %v1198
  %v1215 = vsub.f32 %v1073, %v1199
  %v1216 = vsub.f32 %v1078, %v1200
  %v1217 = vsub.f32 %v1083, %v1201
  %v1218 = vsub.f32 %v1088, %v1202
  %v1219 = vsub.f32 %v1093, %v1203
  %v1220 = vsub.f32 %v1098, %v1204
  %v1221 = vsub.f32 %v1103, %v1205
  %v1222 = vsub.f32 %v1108, %v1206
  %v1223 = vsub.f32 %v1113, %v1207
  %v1224 = vsub.f32 %v1118, %v1208
  %v1225 = vsub.f32 %v1123, %v1209
  %v1226 = vsub.f32 %v1128, %v1210
  %v1227 = vsub.f32 %v1133, %v1211
  %v1228 = vsub.f32 %v1138, %v1212
  %v1229 = vsub.f32 %v1143, %v1213
  %v1230 = vmul.f32 %v1214, %v1214
  %v1231 = vmul.f32 %v1215, %v1215
  %v1232 = vmul.f32 %v1216, %v1216
  %v1233 = vmul.f32 %v1217, %v1217
  %v1234 = vmul.f32 %v1218, %v1218
  %v1235 = vmul.f32 %v1219, %v1219
  %v1236 = vmul.f32 %v1220, %v1220
  %v1237 = vmul.f32 %v1221, %v1221
  %v1238 = vmul.f32 %v1222, %v1222
  %v1239 = vmul.f32 %v1223, %v1223
  %v1240 = vmul.f32 %v1224, %v1224
  %v1241 = vmul.f32 %v1225, %v1225
  %v1242 = vmul.f32 %v1226, %v1226
  %v1243 = vmul.f32 %v1227, %v1227
  %v1244 = vmul.f32 %v1228, %v1228
  %v1245 = vmul.f32 %v1229, %v1229
  %v1246 = vsel %vm1148, %v1230, 0.0
  %1247 = vadd.xlane.f32.xlu0 %v1246
  %v1248 = vpop.xlane.xlu0 %1247
  %v1249 = vsel %vm1148, %v1231, 0.0
  %1250 = vadd.xlane.f32.xlu0 %v1249
  %v1251 = vpop.xlane.xlu0 %1250
  %v1252 = vsel %vm1148, %v1232, 0.0
  %1253 = vadd.xlane.f32.xlu0 %v1252
  %v1254 = vpop.xlane.xlu0 %1253
  %v1255 = vsel %vm1148, %v1233, 0.0
  %1256 = vadd.xlane.f32.xlu0 %v1255
  %v1257 = vpop.xlane.xlu0 %1256
  %v1258 = vsel %vm1148, %v1234, 0.0
  %1259 = vadd.xlane.f32.xlu0 %v1258
  %v1260 = vpop.xlane.xlu0 %1259
  %v1261 = vsel %vm1148, %v1235, 0.0
  %1262 = vadd.xlane.f32.xlu0 %v1261
  %v1263 = vpop.xlane.xlu0 %1262
  %v1264 = vsel %vm1148, %v1236, 0.0
  %1265 = vadd.xlane.f32.xlu0 %v1264
  %v1266 = vpop.xlane.xlu0 %1265
  %v1267 = vsel %vm1148, %v1237, 0.0
  %1268 = vadd.xlane.f32.xlu0 %v1267
  %v1269 = vpop.xlane.xlu0 %1268
  %v1270 = vsel %vm1148, %v1238, 0.0
  %1271 = vadd.xlane.f32.xlu0 %v1270
  %v1272 = vpop.xlane.xlu0 %1271
  %v1273 = vsel %vm1148, %v1239, 0.0
  %1274 = vadd.xlane.f32.xlu0 %v1273
  %v1275 = vpop.xlane.xlu0 %1274
  %v1276 = vsel %vm1148, %v1240, 0.0
  %1277 = vadd.xlane.f32.xlu0 %v1276
  %v1278 = vpop.xlane.xlu0 %1277
  %v1279 = vsel %vm1148, %v1241, 0.0
  %1280 = vadd.xlane.f32.xlu0 %v1279
  %v1281 = vpop.xlane.xlu0 %1280
  %v1282 = vsel %vm1148, %v1242, 0.0
  %1283 = vadd.xlane.f32.xlu0 %v1282
  %v1284 = vpop.xlane.xlu0 %1283
  %v1285 = vsel %vm1148, %v1243, 0.0
  %1286 = vadd.xlane.f32.xlu0 %v1285
  %v1287 = vpop.xlane.xlu0 %1286
  %v1288 = vsel %vm1148, %v1244, 0.0
  %1289 = vadd.xlane.f32.xlu0 %v1288
  %v1290 = vpop.xlane.xlu0 %1289
  %v1291 = vsel %vm1148, %v1245, 0.0
  %1292 = vadd.xlane.f32.xlu0 %v1291
  %v1293 = vpop.xlane.xlu0 %1292
  %v1294 = vmul.f32 %v1248, %v1197
  %v1295 = vmul.f32 %v1251, %v1197
  %v1296 = vmul.f32 %v1254, %v1197
  %v1297 = vmul.f32 %v1257, %v1197
  %v1298 = vmul.f32 %v1260, %v1197
  %v1299 = vmul.f32 %v1263, %v1197
  %v1300 = vmul.f32 %v1266, %v1197
  %v1301 = vmul.f32 %v1269, %v1197
  %v1302 = vmul.f32 %v1272, %v1197
  %v1303 = vmul.f32 %v1275, %v1197
  %v1304 = vmul.f32 %v1278, %v1197
  %v1305 = vmul.f32 %v1281, %v1197
  %v1306 = vmul.f32 %v1284, %v1197
  %v1307 = vmul.f32 %v1287, %v1197
  %v1308 = vmul.f32 %v1290, %v1197
  %v1309 = vmul.f32 %v1293, %v1197
  %v1310 = vadd.f32 %v1294, 1e-05
  %v1311 = vadd.f32 %v1295, 1e-05
  %v1312 = vadd.f32 %v1296, 1e-05
  %v1313 = vadd.f32 %v1297, 1e-05
  %v1314 = vadd.f32 %v1298, 1e-05
  %v1315 = vadd.f32 %v1299, 1e-05
  %v1316 = vadd.f32 %v1300, 1e-05
  %v1317 = vadd.f32 %v1301, 1e-05
  %v1318 = vadd.f32 %v1302, 1e-05
  %v1319 = vadd.f32 %v1303, 1e-05
  %v1320 = vadd.f32 %v1304, 1e-05
  %v1321 = vadd.f32 %v1305, 1e-05
  %v1322 = vadd.f32 %v1306, 1e-05
  %v1323 = vadd.f32 %v1307, 1e-05
  %v1324 = vadd.f32 %v1308, 1e-05
  %v1325 = vadd.f32 %v1309, 1e-05
  %v1326 = vrsqrt.pop %v1310
  %v1327 = vrsqrt.pop %v1311
  %v1328 = vrsqrt.pop %v1312
  %v1329 = vrsqrt.pop %v1313
  %v1330 = vrsqrt.pop %v1314
  %v1331 = vrsqrt.pop %v1315
  %v1332 = vrsqrt.pop %v1316
  %v1333 = vrsqrt.pop %v1317
  %v1334 = vrsqrt.pop %v1318
  %v1335 = vrsqrt.pop %v1319
  %v1336 = vrsqrt.pop %v1320
  %v1337 = vrsqrt.pop %v1321
  %v1338 = vrsqrt.pop %v1322
  %v1339 = vrsqrt.pop %v1323
  %v1340 = vrsqrt.pop %v1324
  %v1341 = vrsqrt.pop %v1325
  %v1342 = vmul.f32 %v1214, %v1326
  %v1343 = vmul.f32 %v1215, %v1327
  %v1344 = vmul.f32 %v1216, %v1328
  %v1345 = vmul.f32 %v1217, %v1329
  %v1346 = vmul.f32 %v1218, %v1330
  %v1347 = vmul.f32 %v1219, %v1331
  %v1348 = vmul.f32 %v1220, %v1332
  %v1349 = vmul.f32 %v1221, %v1333
  %v1350 = vmul.f32 %v1222, %v1334
  %v1351 = vmul.f32 %v1223, %v1335
  %v1352 = vmul.f32 %v1224, %v1336
  %v1353 = vmul.f32 %v1225, %v1337
  %v1354 = vmul.f32 %v1226, %v1338
  %v1355 = vmul.f32 %v1227, %v1339
  %v1356 = vmul.f32 %v1228, %v1340
  %v1357 = vmul.f32 %v1229, %v1341
  %v1358 = vlaneseq
  %v1359 = vshrl.u32 %v1358, 7
  %v1360 = vsub.s32 0, %v1359
  %v1361 = vrot.slane %v1146, %v1360
  %v1362 = vmul.f32 %v1342, %v1361
  %v1363 = vmul.f32 %v1343, %v1361
  %v1364 = vmul.f32 %v1344, %v1361
  %v1365 = vmul.f32 %v1345, %v1361
  %v1366 = vmul.f32 %v1346, %v1361
  %v1367 = vmul.f32 %v1347, %v1361
  %v1368 = vmul.f32 %v1348, %v1361
  %v1369 = vmul.f32 %v1349, %v1361
  %v1370 = vmul.f32 %v1350, %v1361
  %v1371 = vmul.f32 %v1351, %v1361
  %v1372 = vmul.f32 %v1352, %v1361
  %v1373 = vmul.f32 %v1353, %v1361
  %v1374 = vmul.f32 %v1354, %v1361
  %v1375 = vmul.f32 %v1355, %v1361
  %v1376 = vmul.f32 %v1356, %v1361
  %v1377 = vmul.f32 %v1357, %v1361
  %v1378 = vlaneseq
  %v1379 = vshrl.u32 %v1378, 7
  %v1380 = vsub.s32 0, %v1379
  %v1381 = vrot.slane %v1147, %v1380
  %v1382 = vadd.f32 %v1362, %v1381
  %v1383 = vadd.f32 %v1363, %v1381
  %v1384 = vadd.f32 %v1364, %v1381
  %v1385 = vadd.f32 %v1365, %v1381
  %v1386 = vadd.f32 %v1366, %v1381
  %v1387 = vadd.f32 %v1367, %v1381
  %v1388 = vadd.f32 %v1368, %v1381
  %v1389 = vadd.f32 %v1369, %v1381
  %v1390 = vadd.f32 %v1370, %v1381
  %v1391 = vadd.f32 %v1371, %v1381
  %v1392 = vadd.f32 %v1372, %v1381
  %v1393 = vadd.f32 %v1373, %v1381
  %v1394 = vadd.f32 %v1374, %v1381
  %v1395 = vadd.f32 %v1375, %v1381
  %v1396 = vadd.f32 %v1376, %v1381
  %v1397 = vadd.f32 %v1377, %v1381
  %v1398 = vmax.f32 %v1382, 0.0
  %v1399 = vmax.f32 %v1383, 0.0
  %v1400 = vmax.f32 %v1384, 0.0
  %v1401 = vmax.f32 %v1385, 0.0
  %v1402 = vmax.f32 %v1386, 0.0
  %v1403 = vmax.f32 %v1387, 0.0
  %v1404 = vmax.f32 %v1388, 0.0
  %v1405 = vmax.f32 %v1389, 0.0
  %v1406 = vmax.f32 %v1390, 0.0
  %v1407 = vmax.f32 %v1391, 0.0
  %v1408 = vmax.f32 %v1392, 0.0
  %v1409 = vmax.f32 %v1393, 0.0
  %v1410 = vmax.f32 %v1394, 0.0
  %v1411 = vmax.f32 %v1395, 0.0
  %v1412 = vmax.f32 %v1396, 0.0
  %v1413 = vmax.f32 %v1397, 0.0
  %v1414 = vld [vmem:[%s1 + $0x88] sm:$0xf]
  %v1415 = vld [vmem:[%s1 + $0x90] sm:$0x1]
  %v1416 = vlaneseq
  %v1417 = vshrl.u32 %v1416, 7
  %v1418 = vsub.s32 0, %v1417
  %v1419 = vrot.slane %v1415, %v1418
  %v1421 = vsel %vm1148, %v1398, 0
  %v1424 = vsel %vm1148, %v1399, 0
  %v1427 = vsel %vm1148, %v1400, 0
  %v1430 = vsel %vm1148, %v1401, 0
  %v1433 = vsel %vm1148, %v1402, 0
  %v1436 = vsel %vm1148, %v1403, 0
  %v1439 = vsel %vm1148, %v1404, 0
  %v1442 = vsel %vm1148, %v1405, 0
  %v1445 = vsel %vm1148, %v1406, 0
  %v1448 = vsel %vm1148, %v1407, 0
  %v1451 = vsel %vm1148, %v1408, 0
  %v1454 = vsel %vm1148, %v1409, 0
  %v1457 = vsel %vm1148, %v1410, 0
  %v1460 = vsel %vm1148, %v1411, 0
  %v1463 = vsel %vm1148, %v1412, 0
  %v1466 = vsel %vm1148, %v1413, 0
  %vm1468 = vcmask 1043456
  %v1470 = vsel %vm1468, %v1414, 0
  %1472 = vmatprep.subr.mxu0 0.0
  %1473 = vmatpush1.msra.mxu0 %v1470
  %1474 = vmatprep.subr.mxu0 0.0
  %1475 = vmatpush1.msra.mxu0 0.0
  %1476 = vmatprep.subr.mxu0 0.0
  %1477 = vmatpush1.msra.mxu0 0.0
  %1478 = vmatprep.subr.mxu0 0.0
  %1479 = vmatpush1.msra.mxu0 0.0
  %1480 = vmatprep.subr.mxu0 0.0
  %1481 = vmatpush1.msra.mxu0 0.0
  %1482 = vmatprep.subr.mxu0 0.0
  %1483 = vmatpush1.msra.mxu0 0.0
  %1484 = vmatprep.subr.mxu0 0.0
  %1485 = vmatpush1.msra.mxu0 0.0
  %1486 = vmatprep.subr.mxu0 0.0
  %1487 = vmatpush1.msra.mxu0 0.0
  %1488 = vmatprep.subr.mxu0 0.0
  %1489 = vmatpush1.msra.mxu0 0.0
  %1490 = vmatprep.subr.mxu0 0.0
  %1491 = vmatpush1.msra.mxu0 0.0
  %1492 = vmatprep.subr.mxu0 0.0
  %1493 = vmatpush1.msra.mxu0 0.0
  %1494 = vmatprep.subr.mxu0 0.0
  %1495 = vmatpush1.msra.mxu0 0.0
  %1496 = vmatprep.subr.mxu0 0.0
  %1497 = vmatpush1.msra.mxu0 0.0
  %1498 = vmatprep.subr.mxu0 0.0
  %1499 = vmatpush1.msra.mxu0 0.0
  %1500 = vmatprep.subr.mxu0 0.0
  %1501 = vmatpush1.msra.mxu0 0.0
  %1502 = vmatprep.subr.mxu0 0.0
  %1503 = vmatpush1.msra.mxu0 0.0
  %1504 = vmatprep.subr.mxu0 0.0
  %1505 = vmatpush1.msra.mxu0 0.0
  %1506 = vmatprep.subr.mxu0 0.0
  %1507 = vmatpush1.msra.mxu0 0.0
  %1508 = vmatprep.subr.mxu0 0.0
  %1509 = vmatpush1.msra.mxu0 0.0
  %1510 = vmatprep.subr.mxu0 0.0
  %1511 = vmatpush1.msra.mxu0 0.0
  %1512 = vmatprep.subr.mxu0 0.0
  %1513 = vmatpush1.msra.mxu0 0.0
  %1514 = vmatprep.subr.mxu0 0.0
  %1515 = vmatpush1.msra.mxu0 0.0
  %1516 = vmatprep.subr.mxu0 0.0
  %1517 = vmatpush1.msra.mxu0 0.0
  %1518 = vmatprep.subr.mxu0 0.0
  %1519 = vmatpush1.msra.mxu0 0.0
  %1520 = vmatprep.subr.mxu0 0.0
  %1521 = vmatpush1.msra.mxu0 0.0
  %1522 = vmatprep.subr.mxu0 0.0
  %1523 = vmatpush1.msra.mxu0 0.0
  %1524 = vmatprep.subr.mxu0 0.0
  %1525 = vmatpush1.msra.mxu0 0.0
  %1526 = vmatprep.subr.mxu0 0.0
  %1527 = vmatpush1.msra.mxu0 0.0
  %1528 = vmatprep.subr.mxu0 0.0
  %1529 = vmatpush1.msra.mxu0 0.0
  %1530 = vmatprep.subr.mxu0 0.0
  %1531 = vmatpush1.msra.mxu0 0.0
  %1532 = vmatprep.subr.mxu0 0.0
  %1533 = vmatpush1.msra.mxu0 0.0
  %1534 = vmatprep.subr.mxu0 0.0
  %1535 = vmatpush1.msra.mxu0 0.0
  %1536 = vmatprep.mubr.f32.mxu0 0.0
  %1537 = vmatmul.mubr.f32.gmra.mrb[0].mxu0 %v1421
  %v1538 = vpop.f32.mrb[0].mxu0
  %v1539 = vadd.f32 %v1419, %v1538
  %v1540 = vpop.f32.mrb[0].mxu0
  %1541 = vmatprep.mubr.f32.mxu0 0.0
  %1542 = vmatmul.mubr.f32.gmra.mrb[0].mxu0 %v1424
  %v1543 = vpop.f32.mrb[0].mxu0
  %v1544 = vadd.f32 %v1419, %v1543
  %v1545 = vpop.f32.mrb[0].mxu0
  %1546 = vmatprep.mubr.f32.mxu0 0.0
  %1547 = vmatmul.mubr.f32.gmra.mrb[0].mxu0 %v1427
  %v1548 = vpop.f32.mrb[0].mxu0
  %v1549 = vadd.f32 %v1419, %v1548
  %v1550 = vpop.f32.mrb[0].mxu0
  %1551 = vmatprep.mubr.f32.mxu0 0.0
  %1552 = vmatmul.mubr.f32.gmra.mrb[0].mxu0 %v1430
  %v1553 = vpop.f32.mrb[0].mxu0
  %v1554 = vadd.f32 %v1419, %v1553
  %v1555 = vpop.f32.mrb[0].mxu0
  %1556 = vmatprep.mubr.f32.mxu0 0.0
  %1557 = vmatmul.mubr.f32.gmra.mrb[0].mxu0 %v1433
  %v1558 = vpop.f32.mrb[0].mxu0
  %v1559 = vadd.f32 %v1419, %v1558
  %v1560 = vpop.f32.mrb[0].mxu0
  %1561 = vmatprep.mubr.f32.mxu0 0.0
  %1562 = vmatmul.mubr.f32.gmra.mrb[0].mxu0 %v1436
  %v1563 = vpop.f32.mrb[0].mxu0
  %v1564 = vadd.f32 %v1419, %v1563
  %v1565 = vpop.f32.mrb[0].mxu0
  %1566 = vmatprep.mubr.f32.mxu0 0.0
  %1567 = vmatmul.mubr.f32.gmra.mrb[0].mxu0 %v1439
  %v1568 = vpop.f32.mrb[0].mxu0
  %v1569 = vadd.f32 %v1419, %v1568
  %v1570 = vpop.f32.mrb[0].mxu0
  %1571 = vmatprep.mubr.f32.mxu0 0.0
  %1572 = vmatmul.mubr.f32.gmra.mrb[0].mxu0 %v1442
  %v1573 = vpop.f32.mrb[0].mxu0
  %v1574 = vadd.f32 %v1419, %v1573
  %v1575 = vpop.f32.mrb[0].mxu0
  %1576 = vmatprep.mubr.f32.mxu0 0.0
  %1577 = vmatmul.mubr.f32.gmra.mrb[0].mxu0 %v1445
  %v1578 = vpop.f32.mrb[0].mxu0
  %v1579 = vadd.f32 %v1419, %v1578
  %v1580 = vpop.f32.mrb[0].mxu0
  %1581 = vmatprep.mubr.f32.mxu0 0.0
  %1582 = vmatmul.mubr.f32.gmra.mrb[0].mxu0 %v1448
  %v1583 = vpop.f32.mrb[0].mxu0
  %v1584 = vadd.f32 %v1419, %v1583
  %v1585 = vpop.f32.mrb[0].mxu0
  %1586 = vmatprep.mubr.f32.mxu0 0.0
  %1587 = vmatmul.mubr.f32.gmra.mrb[0].mxu0 %v1451
  %v1588 = vpop.f32.mrb[0].mxu0
  %v1589 = vadd.f32 %v1419, %v1588
  %v1590 = vpop.f32.mrb[0].mxu0
  %1591 = vmatprep.mubr.f32.mxu0 0.0
  %1592 = vmatmul.mubr.f32.gmra.mrb[0].mxu0 %v1454
  %v1593 = vpop.f32.mrb[0].mxu0
  %v1594 = vadd.f32 %v1419, %v1593
  %v1595 = vpop.f32.mrb[0].mxu0
  %1596 = vmatprep.mubr.f32.mxu0 0.0
  %1597 = vmatmul.mubr.f32.gmra.mrb[0].mxu0 %v1457
  %v1598 = vpop.f32.mrb[0].mxu0
  %v1599 = vadd.f32 %v1419, %v1598
  %v1600 = vpop.f32.mrb[0].mxu0
  %1601 = vmatprep.mubr.f32.mxu0 0.0
  %1602 = vmatmul.mubr.f32.gmra.mrb[0].mxu0 %v1460
  %v1603 = vpop.f32.mrb[0].mxu0
  %v1604 = vadd.f32 %v1419, %v1603
  %v1605 = vpop.f32.mrb[0].mxu0
  %1606 = vmatprep.mubr.f32.mxu0 0.0
  %1607 = vmatmul.mubr.f32.gmra.mrb[0].mxu0 %v1463
  %v1608 = vpop.f32.mrb[0].mxu0
  %v1609 = vadd.f32 %v1419, %v1608
  %v1610 = vpop.f32.mrb[0].mxu0
  %1611 = vmatprep.mubr.f32.mxu0 0.0
  %1612 = vmatmul.mubr.f32.gmra.mrb[0].mxu0 %v1466
  %v1613 = vpop.f32.mrb[0].mxu0
  %v1614 = vadd.f32 %v1419, %v1613
  %v1615 = vpop.f32.mrb[0].mxu0
  %1616 = vdwg.mxu0
  %1617 = vst.msk [vmem:[%s2] sm:$0xff] %vm1148, %v1539
  %1618 = vst.msk [vmem:[%s2 + $0x8] sm:$0xff] %vm1148, %v1544
  %1619 = vst.msk [vmem:[%s2 + $0x10] sm:$0xff] %vm1148, %v1549
  %1620 = vst.msk [vmem:[%s2 + $0x18] sm:$0xff] %vm1148, %v1554
  %1621 = vst.msk [vmem:[%s2 + $0x20] sm:$0xff] %vm1148, %v1559
  %1622 = vst.msk [vmem:[%s2 + $0x28] sm:$0xff] %vm1148, %v1564
  %1623 = vst.msk [vmem:[%s2 + $0x30] sm:$0xff] %vm1148, %v1569
  %1624 = vst.msk [vmem:[%s2 + $0x38] sm:$0xff] %vm1148, %v1574
  %1625 = vst.msk [vmem:[%s2 + $0x40] sm:$0xff] %vm1148, %v1579
  %1626 = vst.msk [vmem:[%s2 + $0x48] sm:$0xff] %vm1148, %v1584
  %1627 = vst.msk [vmem:[%s2 + $0x50] sm:$0xff] %vm1148, %v1589
  %1628 = vst.msk [vmem:[%s2 + $0x58] sm:$0xff] %vm1148, %v1594
  %1629 = vst.msk [vmem:[%s2 + $0x60] sm:$0xff] %vm1148, %v1599
  %1630 = vst.msk [vmem:[%s2 + $0x68] sm:$0xff] %vm1148, %v1604
  %1631 = vst.msk [vmem:[%s2 + $0x70] sm:$0xff] %vm1148, %v1609
  %1632 = vst.msk [vmem:[%s2 + $0x78] sm:$0xff] %vm1148, %v1614
  %v1633 = vsel %vm1148, %v1539, -inf
  %1634 = vmax.xlane.f32.xlu0 %v1633
  %v1635 = vpop.xlane.xlu0 %1634
  %v1636 = vsel %vm1148, %v1544, -inf
  %1637 = vmax.xlane.f32.xlu0 %v1636
  %v1638 = vpop.xlane.xlu0 %1637
  %v1639 = vsel %vm1148, %v1549, -inf
  %1640 = vmax.xlane.f32.xlu0 %v1639
  %v1641 = vpop.xlane.xlu0 %1640
  %v1642 = vsel %vm1148, %v1554, -inf
  %1643 = vmax.xlane.f32.xlu0 %v1642
  %v1644 = vpop.xlane.xlu0 %1643
  %v1645 = vsel %vm1148, %v1559, -inf
  %1646 = vmax.xlane.f32.xlu0 %v1645
  %v1647 = vpop.xlane.xlu0 %1646
  %v1648 = vsel %vm1148, %v1564, -inf
  %1649 = vmax.xlane.f32.xlu0 %v1648
  %v1650 = vpop.xlane.xlu0 %1649
  %v1651 = vsel %vm1148, %v1569, -inf
  %1652 = vmax.xlane.f32.xlu0 %v1651
  %v1653 = vpop.xlane.xlu0 %1652
  %v1654 = vsel %vm1148, %v1574, -inf
  %1655 = vmax.xlane.f32.xlu0 %v1654
  %v1656 = vpop.xlane.xlu0 %1655
  %v1657 = vsel %vm1148, %v1579, -inf
  %1658 = vmax.xlane.f32.xlu0 %v1657
  %v1659 = vpop.xlane.xlu0 %1658
  %v1660 = vsel %vm1148, %v1584, -inf
  %1661 = vmax.xlane.f32.xlu0 %v1660
  %v1662 = vpop.xlane.xlu0 %1661
  %v1663 = vsel %vm1148, %v1589, -inf
  %1664 = vmax.xlane.f32.xlu0 %v1663
  %v1665 = vpop.xlane.xlu0 %1664
  %v1666 = vsel %vm1148, %v1594, -inf
  %1667 = vmax.xlane.f32.xlu0 %v1666
  %v1668 = vpop.xlane.xlu0 %1667
  %v1669 = vsel %vm1148, %v1599, -inf
  %1670 = vmax.xlane.f32.xlu0 %v1669
  %v1671 = vpop.xlane.xlu0 %1670
  %v1672 = vsel %vm1148, %v1604, -inf
  %1673 = vmax.xlane.f32.xlu0 %v1672
  %v1674 = vpop.xlane.xlu0 %1673
  %v1675 = vsel %vm1148, %v1609, -inf
  %1676 = vmax.xlane.f32.xlu0 %v1675
  %v1677 = vpop.xlane.xlu0 %1676
  %v1678 = vsel %vm1148, %v1614, -inf
  %1679 = vmax.xlane.f32.xlu0 %v1678
  %v1680 = vpop.xlane.xlu0 %1679
  %v1681 = vsub.f32 %v1539, %v1635
  %v1682 = vsub.f32 %v1544, %v1638
  %v1683 = vsub.f32 %v1549, %v1641
  %v1684 = vsub.f32 %v1554, %v1644
  %v1685 = vsub.f32 %v1559, %v1647
  %v1686 = vsub.f32 %v1564, %v1650
  %v1687 = vsub.f32 %v1569, %v1653
  %v1688 = vsub.f32 %v1574, %v1656
  %v1689 = vsub.f32 %v1579, %v1659
  %v1690 = vsub.f32 %v1584, %v1662
  %v1691 = vsub.f32 %v1589, %v1665
  %v1692 = vsub.f32 %v1594, %v1668
  %v1693 = vsub.f32 %v1599, %v1671
  %v1694 = vsub.f32 %v1604, %v1674
  %v1695 = vsub.f32 %v1609, %v1677
  %v1696 = vsub.f32 %v1614, %v1680
  %v1697 = vmul.f32 %v1681, 1.442695
  %v1698 = vpow.pop %v1697
  %v1699 = vmul.f32 %v1682, 1.442695
  %v1700 = vpow.pop %v1699
  %v1701 = vmul.f32 %v1683, 1.442695
  %v1702 = vpow.pop %v1701
  %v1703 = vmul.f32 %v1684, 1.442695
  %v1704 = vpow.pop %v1703
  %v1705 = vmul.f32 %v1685, 1.442695
  %v1706 = vpow.pop %v1705
  %v1707 = vmul.f32 %v1686, 1.442695
  %v1708 = vpow.pop %v1707
  %v1709 = vmul.f32 %v1687, 1.442695
  %v1710 = vpow.pop %v1709
  %v1711 = vmul.f32 %v1688, 1.442695
  %v1712 = vpow.pop %v1711
  %v1713 = vmul.f32 %v1689, 1.442695
  %v1714 = vpow.pop %v1713
  %v1715 = vmul.f32 %v1690, 1.442695
  %v1716 = vpow.pop %v1715
  %v1717 = vmul.f32 %v1691, 1.442695
  %v1718 = vpow.pop %v1717
  %v1719 = vmul.f32 %v1692, 1.442695
  %v1720 = vpow.pop %v1719
  %v1721 = vmul.f32 %v1693, 1.442695
  %v1722 = vpow.pop %v1721
  %v1723 = vmul.f32 %v1694, 1.442695
  %v1724 = vpow.pop %v1723
  %v1725 = vmul.f32 %v1695, 1.442695
  %v1726 = vpow.pop %v1725
  %v1727 = vmul.f32 %v1696, 1.442695
  %v1728 = vpow.pop %v1727
  %v1729 = vsel %vm1148, %v1698, 0.0
  %1730 = vadd.xlane.f32.xlu0 %v1729
  %v1731 = vpop.xlane.xlu0 %1730
  %v1732 = vsel %vm1148, %v1700, 0.0
  %1733 = vadd.xlane.f32.xlu0 %v1732
  %v1734 = vpop.xlane.xlu0 %1733
  %v1735 = vsel %vm1148, %v1702, 0.0
  %1736 = vadd.xlane.f32.xlu0 %v1735
  %v1737 = vpop.xlane.xlu0 %1736
  %v1738 = vsel %vm1148, %v1704, 0.0
  %1739 = vadd.xlane.f32.xlu0 %v1738
  %v1740 = vpop.xlane.xlu0 %1739
  %v1741 = vsel %vm1148, %v1706, 0.0
  %1742 = vadd.xlane.f32.xlu0 %v1741
  %v1743 = vpop.xlane.xlu0 %1742
  %v1744 = vsel %vm1148, %v1708, 0.0
  %1745 = vadd.xlane.f32.xlu0 %v1744
  %v1746 = vpop.xlane.xlu0 %1745
  %v1747 = vsel %vm1148, %v1710, 0.0
  %1748 = vadd.xlane.f32.xlu0 %v1747
  %v1749 = vpop.xlane.xlu0 %1748
  %v1750 = vsel %vm1148, %v1712, 0.0
  %1751 = vadd.xlane.f32.xlu0 %v1750
  %v1752 = vpop.xlane.xlu0 %1751
  %v1753 = vsel %vm1148, %v1714, 0.0
  %1754 = vadd.xlane.f32.xlu0 %v1753
  %v1755 = vpop.xlane.xlu0 %1754
  %v1756 = vsel %vm1148, %v1716, 0.0
  %1757 = vadd.xlane.f32.xlu0 %v1756
  %v1758 = vpop.xlane.xlu0 %1757
  %v1759 = vsel %vm1148, %v1718, 0.0
  %1760 = vadd.xlane.f32.xlu0 %v1759
  %v1761 = vpop.xlane.xlu0 %1760
  %v1762 = vsel %vm1148, %v1720, 0.0
  %1763 = vadd.xlane.f32.xlu0 %v1762
  %v1764 = vpop.xlane.xlu0 %1763
  %v1765 = vsel %vm1148, %v1722, 0.0
  %1766 = vadd.xlane.f32.xlu0 %v1765
  %v1767 = vpop.xlane.xlu0 %1766
  %v1768 = vsel %vm1148, %v1724, 0.0
  %1769 = vadd.xlane.f32.xlu0 %v1768
  %v1770 = vpop.xlane.xlu0 %1769
  %v1771 = vsel %vm1148, %v1726, 0.0
  %1772 = vadd.xlane.f32.xlu0 %v1771
  %v1773 = vpop.xlane.xlu0 %1772
  %v1774 = vsel %vm1148, %v1728, 0.0
  %1775 = vadd.xlane.f32.xlu0 %v1774
  %v1776 = vpop.xlane.xlu0 %1775
  %v1777 = vrcp.pop %v1731
  %v1778 = vrcp.pop %v1734
  %v1779 = vrcp.pop %v1737
  %v1780 = vrcp.pop %v1740
  %v1781 = vrcp.pop %v1743
  %v1782 = vrcp.pop %v1746
  %v1783 = vrcp.pop %v1749
  %v1784 = vrcp.pop %v1752
  %v1785 = vrcp.pop %v1755
  %v1786 = vrcp.pop %v1758
  %v1787 = vrcp.pop %v1761
  %v1788 = vrcp.pop %v1764
  %v1789 = vrcp.pop %v1767
  %v1790 = vrcp.pop %v1770
  %v1791 = vrcp.pop %v1773
  %v1792 = vrcp.pop %v1776
  %v1793 = vmul.f32 %v1698, %v1777
  %v1794 = vmul.f32 %v1700, %v1778
  %v1795 = vmul.f32 %v1702, %v1779
  %v1796 = vmul.f32 %v1704, %v1780
  %v1797 = vmul.f32 %v1706, %v1781
  %v1798 = vmul.f32 %v1708, %v1782
  %v1799 = vmul.f32 %v1710, %v1783
  %v1800 = vmul.f32 %v1712, %v1784
  %v1801 = vmul.f32 %v1714, %v1785
  %v1802 = vmul.f32 %v1716, %v1786
  %v1803 = vmul.f32 %v1718, %v1787
  %v1804 = vmul.f32 %v1720, %v1788
  %v1805 = vmul.f32 %v1722, %v1789
  %v1806 = vmul.f32 %v1724, %v1790
  %v1807 = vmul.f32 %v1726, %v1791
  %v1808 = vmul.f32 %v1728, %v1792
  %v1809 = vsel %vm1148, %v1793, 0.0
  %1810 = vadd.xlane.f32.xlu0 %v1809
  %v1811 = vpop.xlane.xlu0 %1810
  %v1812 = vsel %vm1148, %v1794, 0.0
  %1813 = vadd.xlane.f32.xlu0 %v1812
  %v1814 = vpop.xlane.xlu0 %1813
  %v1815 = vsel %vm1148, %v1795, 0.0
  %1816 = vadd.xlane.f32.xlu0 %v1815
  %v1817 = vpop.xlane.xlu0 %1816
  %v1818 = vsel %vm1148, %v1796, 0.0
  %1819 = vadd.xlane.f32.xlu0 %v1818
  %v1820 = vpop.xlane.xlu0 %1819
  %v1821 = vsel %vm1148, %v1797, 0.0
  %1822 = vadd.xlane.f32.xlu0 %v1821
  %v1823 = vpop.xlane.xlu0 %1822
  %v1824 = vsel %vm1148, %v1798, 0.0
  %1825 = vadd.xlane.f32.xlu0 %v1824
  %v1826 = vpop.xlane.xlu0 %1825
  %v1827 = vsel %vm1148, %v1799, 0.0
  %1828 = vadd.xlane.f32.xlu0 %v1827
  %v1829 = vpop.xlane.xlu0 %1828
  %v1830 = vsel %vm1148, %v1800, 0.0
  %1831 = vadd.xlane.f32.xlu0 %v1830
  %v1832 = vpop.xlane.xlu0 %1831
  %v1833 = vsel %vm1148, %v1801, 0.0
  %1834 = vadd.xlane.f32.xlu0 %v1833
  %v1835 = vpop.xlane.xlu0 %1834
  %v1836 = vsel %vm1148, %v1802, 0.0
  %1837 = vadd.xlane.f32.xlu0 %v1836
  %v1838 = vpop.xlane.xlu0 %1837
  %v1839 = vsel %vm1148, %v1803, 0.0
  %1840 = vadd.xlane.f32.xlu0 %v1839
  %v1841 = vpop.xlane.xlu0 %1840
  %v1842 = vsel %vm1148, %v1804, 0.0
  %1843 = vadd.xlane.f32.xlu0 %v1842
  %v1844 = vpop.xlane.xlu0 %1843
  %v1845 = vsel %vm1148, %v1805, 0.0
  %1846 = vadd.xlane.f32.xlu0 %v1845
  %v1847 = vpop.xlane.xlu0 %1846
  %v1848 = vsel %vm1148, %v1806, 0.0
  %1849 = vadd.xlane.f32.xlu0 %v1848
  %v1850 = vpop.xlane.xlu0 %1849
  %v1851 = vsel %vm1148, %v1807, 0.0
  %1852 = vadd.xlane.f32.xlu0 %v1851
  %v1853 = vpop.xlane.xlu0 %1852
  %v1854 = vsel %vm1148, %v1808, 0.0
  %1855 = vadd.xlane.f32.xlu0 %v1854
  %v1856 = vpop.xlane.xlu0 %1855
  %v1857 = vadd.f32 %v684, %v1811
  %v1858 = vadd.f32 %v687, %v1814
  %v1859 = vadd.f32 %v690, %v1817
  %v1860 = vadd.f32 %v693, %v1820
  %v1861 = vadd.f32 %v696, %v1823
  %v1862 = vadd.f32 %v699, %v1826
  %v1863 = vadd.f32 %v702, %v1829
  %v1864 = vadd.f32 %v705, %v1832
  %v1865 = vadd.f32 %v708, %v1835
  %v1866 = vadd.f32 %v711, %v1838
  %v1867 = vadd.f32 %v714, %v1841
  %v1868 = vadd.f32 %v717, %v1844
  %v1869 = vadd.f32 %v720, %v1847
  %v1870 = vadd.f32 %v723, %v1850
  %v1871 = vadd.f32 %v726, %v1853
  %v1872 = vadd.f32 %v729, %v1856
  %v1873 = vrcp.pop 12.0
  %v1874 = vmul.f32 %v1857, %v1873
  %v1875 = vmul.f32 %v1858, %v1873
  %v1876 = vmul.f32 %v1859, %v1873
  %v1877 = vmul.f32 %v1860, %v1873
  %v1878 = vmul.f32 %v1861, %v1873
  %v1879 = vmul.f32 %v1862, %v1873
  %v1880 = vmul.f32 %v1863, %v1873
  %v1881 = vmul.f32 %v1864, %v1873
  %v1882 = vmul.f32 %v1865, %v1873
  %v1883 = vmul.f32 %v1866, %v1873
  %v1884 = vmul.f32 %v1867, %v1873
  %v1885 = vmul.f32 %v1868, %v1873
  %v1886 = vmul.f32 %v1869, %v1873
  %v1887 = vmul.f32 %v1870, %v1873
  %v1888 = vmul.f32 %v1871, %v1873
  %v1889 = vmul.f32 %v1872, %v1873
  %v1890 = vsub.f32 %v663, %v1874
  %v1891 = vsub.f32 %v664, %v1875
  %v1892 = vsub.f32 %v665, %v1876
  %v1893 = vsub.f32 %v666, %v1877
  %v1894 = vsub.f32 %v667, %v1878
  %v1895 = vsub.f32 %v668, %v1879
  %v1896 = vsub.f32 %v669, %v1880
  %v1897 = vsub.f32 %v670, %v1881
  %v1898 = vsub.f32 %v671, %v1882
  %v1899 = vsub.f32 %v672, %v1883
  %v1900 = vsub.f32 %v673, %v1884
  %v1901 = vsub.f32 %v674, %v1885
  %v1902 = vsub.f32 %v675, %v1886
  %v1903 = vsub.f32 %v676, %v1887
  %v1904 = vsub.f32 %v677, %v1888
  %v1905 = vsub.f32 %v678, %v1889
  %v1906 = vsub.f32 %v1793, %v1874
  %v1907 = vsub.f32 %v1794, %v1875
  %v1908 = vsub.f32 %v1795, %v1876
  %v1909 = vsub.f32 %v1796, %v1877
  %v1910 = vsub.f32 %v1797, %v1878
  %v1911 = vsub.f32 %v1798, %v1879
  %v1912 = vsub.f32 %v1799, %v1880
  %v1913 = vsub.f32 %v1800, %v1881
  %v1914 = vsub.f32 %v1801, %v1882
  %v1915 = vsub.f32 %v1802, %v1883
  %v1916 = vsub.f32 %v1803, %v1884
  %v1917 = vsub.f32 %v1804, %v1885
  %v1918 = vsub.f32 %v1805, %v1886
  %v1919 = vsub.f32 %v1806, %v1887
  %v1920 = vsub.f32 %v1807, %v1888
  %v1921 = vsub.f32 %v1808, %v1889
  %v1922 = vmul.f32 %v1890, %v1890
  %v1923 = vmul.f32 %v1891, %v1891
  %v1924 = vmul.f32 %v1892, %v1892
  %v1925 = vmul.f32 %v1893, %v1893
  %v1926 = vmul.f32 %v1894, %v1894
  %v1927 = vmul.f32 %v1895, %v1895
  %v1928 = vmul.f32 %v1896, %v1896
  %v1929 = vmul.f32 %v1897, %v1897
  %v1930 = vmul.f32 %v1898, %v1898
  %v1931 = vmul.f32 %v1899, %v1899
  %v1932 = vmul.f32 %v1900, %v1900
  %v1933 = vmul.f32 %v1901, %v1901
  %v1934 = vmul.f32 %v1902, %v1902
  %v1935 = vmul.f32 %v1903, %v1903
  %v1936 = vmul.f32 %v1904, %v1904
  %v1937 = vmul.f32 %v1905, %v1905
  %v1938 = vsel %vm681, %v1922, 0.0
  %1939 = vadd.xlane.f32.xlu0 %v1938
  %v1940 = vpop.xlane.xlu0 %1939
  %v1941 = vsel %vm681, %v1923, 0.0
  %1942 = vadd.xlane.f32.xlu0 %v1941
  %v1943 = vpop.xlane.xlu0 %1942
  %v1944 = vsel %vm681, %v1924, 0.0
  %1945 = vadd.xlane.f32.xlu0 %v1944
  %v1946 = vpop.xlane.xlu0 %1945
  %v1947 = vsel %vm681, %v1925, 0.0
  %1948 = vadd.xlane.f32.xlu0 %v1947
  %v1949 = vpop.xlane.xlu0 %1948
  %v1950 = vsel %vm681, %v1926, 0.0
  %1951 = vadd.xlane.f32.xlu0 %v1950
  %v1952 = vpop.xlane.xlu0 %1951
  %v1953 = vsel %vm681, %v1927, 0.0
  %1954 = vadd.xlane.f32.xlu0 %v1953
  %v1955 = vpop.xlane.xlu0 %1954
  %v1956 = vsel %vm681, %v1928, 0.0
  %1957 = vadd.xlane.f32.xlu0 %v1956
  %v1958 = vpop.xlane.xlu0 %1957
  %v1959 = vsel %vm681, %v1929, 0.0
  %1960 = vadd.xlane.f32.xlu0 %v1959
  %v1961 = vpop.xlane.xlu0 %1960
  %v1962 = vsel %vm681, %v1930, 0.0
  %1963 = vadd.xlane.f32.xlu0 %v1962
  %v1964 = vpop.xlane.xlu0 %1963
  %v1965 = vsel %vm681, %v1931, 0.0
  %1966 = vadd.xlane.f32.xlu0 %v1965
  %v1967 = vpop.xlane.xlu0 %1966
  %v1968 = vsel %vm681, %v1932, 0.0
  %1969 = vadd.xlane.f32.xlu0 %v1968
  %v1970 = vpop.xlane.xlu0 %1969
  %v1971 = vsel %vm681, %v1933, 0.0
  %1972 = vadd.xlane.f32.xlu0 %v1971
  %v1973 = vpop.xlane.xlu0 %1972
  %v1974 = vsel %vm681, %v1934, 0.0
  %1975 = vadd.xlane.f32.xlu0 %v1974
  %v1976 = vpop.xlane.xlu0 %1975
  %v1977 = vsel %vm681, %v1935, 0.0
  %1978 = vadd.xlane.f32.xlu0 %v1977
  %v1979 = vpop.xlane.xlu0 %1978
  %v1980 = vsel %vm681, %v1936, 0.0
  %1981 = vadd.xlane.f32.xlu0 %v1980
  %v1982 = vpop.xlane.xlu0 %1981
  %v1983 = vsel %vm681, %v1937, 0.0
  %1984 = vadd.xlane.f32.xlu0 %v1983
  %v1985 = vpop.xlane.xlu0 %1984
  %v1986 = vmul.f32 %v1906, %v1906
  %v1987 = vmul.f32 %v1907, %v1907
  %v1988 = vmul.f32 %v1908, %v1908
  %v1989 = vmul.f32 %v1909, %v1909
  %v1990 = vmul.f32 %v1910, %v1910
  %v1991 = vmul.f32 %v1911, %v1911
  %v1992 = vmul.f32 %v1912, %v1912
  %v1993 = vmul.f32 %v1913, %v1913
  %v1994 = vmul.f32 %v1914, %v1914
  %v1995 = vmul.f32 %v1915, %v1915
  %v1996 = vmul.f32 %v1916, %v1916
  %v1997 = vmul.f32 %v1917, %v1917
  %v1998 = vmul.f32 %v1918, %v1918
  %v1999 = vmul.f32 %v1919, %v1919
  %v2000 = vmul.f32 %v1920, %v1920
  %v2001 = vmul.f32 %v1921, %v1921
  %v2002 = vsel %vm1148, %v1986, 0.0
  %2003 = vadd.xlane.f32.xlu0 %v2002
  %v2004 = vpop.xlane.xlu0 %2003
  %v2005 = vsel %vm1148, %v1987, 0.0
  %2006 = vadd.xlane.f32.xlu0 %v2005
  %v2007 = vpop.xlane.xlu0 %2006
  %v2008 = vsel %vm1148, %v1988, 0.0
  %2009 = vadd.xlane.f32.xlu0 %v2008
  %v2010 = vpop.xlane.xlu0 %2009
  %v2011 = vsel %vm1148, %v1989, 0.0
  %2012 = vadd.xlane.f32.xlu0 %v2011
  %v2013 = vpop.xlane.xlu0 %2012
  %v2014 = vsel %vm1148, %v1990, 0.0
  %2015 = vadd.xlane.f32.xlu0 %v2014
  %v2016 = vpop.xlane.xlu0 %2015
  %v2017 = vsel %vm1148, %v1991, 0.0
  %2018 = vadd.xlane.f32.xlu0 %v2017
  %v2019 = vpop.xlane.xlu0 %2018
  %v2020 = vsel %vm1148, %v1992, 0.0
  %2021 = vadd.xlane.f32.xlu0 %v2020
  %v2022 = vpop.xlane.xlu0 %2021
  %v2023 = vsel %vm1148, %v1993, 0.0
  %2024 = vadd.xlane.f32.xlu0 %v2023
  %v2025 = vpop.xlane.xlu0 %2024
  %v2026 = vsel %vm1148, %v1994, 0.0
  %2027 = vadd.xlane.f32.xlu0 %v2026
  %v2028 = vpop.xlane.xlu0 %2027
  %v2029 = vsel %vm1148, %v1995, 0.0
  %2030 = vadd.xlane.f32.xlu0 %v2029
  %v2031 = vpop.xlane.xlu0 %2030
  %v2032 = vsel %vm1148, %v1996, 0.0
  %2033 = vadd.xlane.f32.xlu0 %v2032
  %v2034 = vpop.xlane.xlu0 %2033
  %v2035 = vsel %vm1148, %v1997, 0.0
  %2036 = vadd.xlane.f32.xlu0 %v2035
  %v2037 = vpop.xlane.xlu0 %2036
  %v2038 = vsel %vm1148, %v1998, 0.0
  %2039 = vadd.xlane.f32.xlu0 %v2038
  %v2040 = vpop.xlane.xlu0 %2039
  %v2041 = vsel %vm1148, %v1999, 0.0
  %2042 = vadd.xlane.f32.xlu0 %v2041
  %v2043 = vpop.xlane.xlu0 %2042
  %v2044 = vsel %vm1148, %v2000, 0.0
  %2045 = vadd.xlane.f32.xlu0 %v2044
  %v2046 = vpop.xlane.xlu0 %2045
  %v2047 = vsel %vm1148, %v2001, 0.0
  %2048 = vadd.xlane.f32.xlu0 %v2047
  %v2049 = vpop.xlane.xlu0 %2048
  %v2050 = vadd.f32 %v1940, %v2004
  %v2051 = vadd.f32 %v1943, %v2007
  %v2052 = vadd.f32 %v1946, %v2010
  %v2053 = vadd.f32 %v1949, %v2013
  %v2054 = vadd.f32 %v1952, %v2016
  %v2055 = vadd.f32 %v1955, %v2019
  %v2056 = vadd.f32 %v1958, %v2022
  %v2057 = vadd.f32 %v1961, %v2025
  %v2058 = vadd.f32 %v1964, %v2028
  %v2059 = vadd.f32 %v1967, %v2031
  %v2060 = vadd.f32 %v1970, %v2034
  %v2061 = vadd.f32 %v1973, %v2037
  %v2062 = vadd.f32 %v1976, %v2040
  %v2063 = vadd.f32 %v1979, %v2043
  %v2064 = vadd.f32 %v1982, %v2046
  %v2065 = vadd.f32 %v1985, %v2049
  %v2066 = vmul.f32 %v2050, %v1873
  %v2067 = vmul.f32 %v2051, %v1873
  %v2068 = vmul.f32 %v2052, %v1873
  %v2069 = vmul.f32 %v2053, %v1873
  %v2070 = vmul.f32 %v2054, %v1873
  %v2071 = vmul.f32 %v2055, %v1873
  %v2072 = vmul.f32 %v2056, %v1873
  %v2073 = vmul.f32 %v2057, %v1873
  %v2074 = vmul.f32 %v2058, %v1873
  %v2075 = vmul.f32 %v2059, %v1873
  %v2076 = vmul.f32 %v2060, %v1873
  %v2077 = vmul.f32 %v2061, %v1873
  %v2078 = vmul.f32 %v2062, %v1873
  %v2079 = vmul.f32 %v2063, %v1873
  %v2080 = vmul.f32 %v2064, %v1873
  %v2081 = vmul.f32 %v2065, %v1873
  %v2082 = vadd.f32 %v2066, 1e-05
  %v2083 = vadd.f32 %v2067, 1e-05
  %v2084 = vadd.f32 %v2068, 1e-05
  %v2085 = vadd.f32 %v2069, 1e-05
  %v2086 = vadd.f32 %v2070, 1e-05
  %v2087 = vadd.f32 %v2071, 1e-05
  %v2088 = vadd.f32 %v2072, 1e-05
  %v2089 = vadd.f32 %v2073, 1e-05
  %v2090 = vadd.f32 %v2074, 1e-05
  %v2091 = vadd.f32 %v2075, 1e-05
  %v2092 = vadd.f32 %v2076, 1e-05
  %v2093 = vadd.f32 %v2077, 1e-05
  %v2094 = vadd.f32 %v2078, 1e-05
  %v2095 = vadd.f32 %v2079, 1e-05
  %v2096 = vadd.f32 %v2080, 1e-05
  %v2097 = vadd.f32 %v2081, 1e-05
  %v2098 = vrsqrt.pop %v2082
  %v2099 = vrsqrt.pop %v2083
  %v2100 = vrsqrt.pop %v2084
  %v2101 = vrsqrt.pop %v2085
  %v2102 = vrsqrt.pop %v2086
  %v2103 = vrsqrt.pop %v2087
  %v2104 = vrsqrt.pop %v2088
  %v2105 = vrsqrt.pop %v2089
  %v2106 = vrsqrt.pop %v2090
  %v2107 = vrsqrt.pop %v2091
  %v2108 = vrsqrt.pop %v2092
  %v2109 = vrsqrt.pop %v2093
  %v2110 = vrsqrt.pop %v2094
  %v2111 = vrsqrt.pop %v2095
  %v2112 = vrsqrt.pop %v2096
  %v2113 = vrsqrt.pop %v2097
  %v2114 = vmul.f32 %v1890, %v2098
  %v2115 = vmul.f32 %v1891, %v2099
  %v2116 = vmul.f32 %v1892, %v2100
  %v2117 = vmul.f32 %v1893, %v2101
  %v2118 = vmul.f32 %v1894, %v2102
  %v2119 = vmul.f32 %v1895, %v2103
  %v2120 = vmul.f32 %v1896, %v2104
  %v2121 = vmul.f32 %v1897, %v2105
  %v2122 = vmul.f32 %v1898, %v2106
  %v2123 = vmul.f32 %v1899, %v2107
  %v2124 = vmul.f32 %v1900, %v2108
  %v2125 = vmul.f32 %v1901, %v2109
  %v2126 = vmul.f32 %v1902, %v2110
  %v2127 = vmul.f32 %v1903, %v2111
  %v2128 = vmul.f32 %v1904, %v2112
  %v2129 = vmul.f32 %v1905, %v2113
  %v2130 = vld [vmem:[%s1 + $0x98] sm:$0x1]
  %v2131 = vlaneseq
  %v2132 = vshrl.u32 %v2131, 7
  %v2133 = vsub.s32 0, %v2132
  %v2134 = vrot.slane %v2130, %v2133
  %v2135 = vmul.f32 %v2114, %v2134
  %v2136 = vmul.f32 %v2115, %v2134
  %v2137 = vmul.f32 %v2116, %v2134
  %v2138 = vmul.f32 %v2117, %v2134
  %v2139 = vmul.f32 %v2118, %v2134
  %v2140 = vmul.f32 %v2119, %v2134
  %v2141 = vmul.f32 %v2120, %v2134
  %v2142 = vmul.f32 %v2121, %v2134
  %v2143 = vmul.f32 %v2122, %v2134
  %v2144 = vmul.f32 %v2123, %v2134
  %v2145 = vmul.f32 %v2124, %v2134
  %v2146 = vmul.f32 %v2125, %v2134
  %v2147 = vmul.f32 %v2126, %v2134
  %v2148 = vmul.f32 %v2127, %v2134
  %v2149 = vmul.f32 %v2128, %v2134
  %v2150 = vmul.f32 %v2129, %v2134
  %v2151 = vld [vmem:[%s1 + $0xa8] sm:$0x1]
  %v2152 = vlaneseq
  %v2153 = vshrl.u32 %v2152, 7
  %v2154 = vsub.s32 0, %v2153
  %v2155 = vrot.slane %v2151, %v2154
  %v2156 = vadd.f32 %v2135, %v2155
  %v2157 = vadd.f32 %v2136, %v2155
  %v2158 = vadd.f32 %v2137, %v2155
  %v2159 = vadd.f32 %v2138, %v2155
  %v2160 = vadd.f32 %v2139, %v2155
  %v2161 = vadd.f32 %v2140, %v2155
  %v2162 = vadd.f32 %v2141, %v2155
  %v2163 = vadd.f32 %v2142, %v2155
  %v2164 = vadd.f32 %v2143, %v2155
  %v2165 = vadd.f32 %v2144, %v2155
  %v2166 = vadd.f32 %v2145, %v2155
  %v2167 = vadd.f32 %v2146, %v2155
  %v2168 = vadd.f32 %v2147, %v2155
  %v2169 = vadd.f32 %v2148, %v2155
  %v2170 = vadd.f32 %v2149, %v2155
  %v2171 = vadd.f32 %v2150, %v2155
  %v2172 = vmax.f32 %v2156, 0.0
  %v2173 = vmax.f32 %v2157, 0.0
  %v2174 = vmax.f32 %v2158, 0.0
  %v2175 = vmax.f32 %v2159, 0.0
  %v2176 = vmax.f32 %v2160, 0.0
  %v2177 = vmax.f32 %v2161, 0.0
  %v2178 = vmax.f32 %v2162, 0.0
  %v2179 = vmax.f32 %v2163, 0.0
  %v2180 = vmax.f32 %v2164, 0.0
  %v2181 = vmax.f32 %v2165, 0.0
  %v2182 = vmax.f32 %v2166, 0.0
  %v2183 = vmax.f32 %v2167, 0.0
  %v2184 = vmax.f32 %v2168, 0.0
  %v2185 = vmax.f32 %v2169, 0.0
  %v2186 = vmax.f32 %v2170, 0.0
  %v2187 = vmax.f32 %v2171, 0.0
  %v2188 = vmul.f32 %v1906, %v2098
  %v2189 = vmul.f32 %v1907, %v2099
  %v2190 = vmul.f32 %v1908, %v2100
  %v2191 = vmul.f32 %v1909, %v2101
  %v2192 = vmul.f32 %v1910, %v2102
  %v2193 = vmul.f32 %v1911, %v2103
  %v2194 = vmul.f32 %v1912, %v2104
  %v2195 = vmul.f32 %v1913, %v2105
  %v2196 = vmul.f32 %v1914, %v2106
  %v2197 = vmul.f32 %v1915, %v2107
  %v2198 = vmul.f32 %v1916, %v2108
  %v2199 = vmul.f32 %v1917, %v2109
  %v2200 = vmul.f32 %v1918, %v2110
  %v2201 = vmul.f32 %v1919, %v2111
  %v2202 = vmul.f32 %v1920, %v2112
  %v2203 = vmul.f32 %v1921, %v2113
  %v2204 = vld [vmem:[%s1 + $0xa0] sm:$0x1]
  %v2205 = vlaneseq
  %v2206 = vshrl.u32 %v2205, 7
  %v2207 = vsub.s32 0, %v2206
  %v2208 = vrot.slane %v2204, %v2207
  %v2209 = vmul.f32 %v2188, %v2208
  %v2210 = vmul.f32 %v2189, %v2208
  %v2211 = vmul.f32 %v2190, %v2208
  %v2212 = vmul.f32 %v2191, %v2208
  %v2213 = vmul.f32 %v2192, %v2208
  %v2214 = vmul.f32 %v2193, %v2208
  %v2215 = vmul.f32 %v2194, %v2208
  %v2216 = vmul.f32 %v2195, %v2208
  %v2217 = vmul.f32 %v2196, %v2208
  %v2218 = vmul.f32 %v2197, %v2208
  %v2219 = vmul.f32 %v2198, %v2208
  %v2220 = vmul.f32 %v2199, %v2208
  %v2221 = vmul.f32 %v2200, %v2208
  %v2222 = vmul.f32 %v2201, %v2208
  %v2223 = vmul.f32 %v2202, %v2208
  %v2224 = vmul.f32 %v2203, %v2208
  %v2225 = vld [vmem:[%s1 + $0xb0] sm:$0x1]
  %v2226 = vlaneseq
  %v2227 = vshrl.u32 %v2226, 7
  %v2228 = vsub.s32 0, %v2227
  %v2229 = vrot.slane %v2225, %v2228
  %v2230 = vadd.f32 %v2209, %v2229
  %v2231 = vadd.f32 %v2210, %v2229
  %v2232 = vadd.f32 %v2211, %v2229
  %v2233 = vadd.f32 %v2212, %v2229
  %v2234 = vadd.f32 %v2213, %v2229
  %v2235 = vadd.f32 %v2214, %v2229
  %v2236 = vadd.f32 %v2215, %v2229
  %v2237 = vadd.f32 %v2216, %v2229
  %v2238 = vadd.f32 %v2217, %v2229
  %v2239 = vadd.f32 %v2218, %v2229
  %v2240 = vadd.f32 %v2219, %v2229
  %v2241 = vadd.f32 %v2220, %v2229
  %v2242 = vadd.f32 %v2221, %v2229
  %v2243 = vadd.f32 %v2222, %v2229
  %v2244 = vadd.f32 %v2223, %v2229
  %v2245 = vadd.f32 %v2224, %v2229
  %v2246 = vmax.f32 %v2230, 0.0
  %v2247 = vmax.f32 %v2231, 0.0
  %v2248 = vmax.f32 %v2232, 0.0
  %v2249 = vmax.f32 %v2233, 0.0
  %v2250 = vmax.f32 %v2234, 0.0
  %v2251 = vmax.f32 %v2235, 0.0
  %v2252 = vmax.f32 %v2236, 0.0
  %v2253 = vmax.f32 %v2237, 0.0
  %v2254 = vmax.f32 %v2238, 0.0
  %v2255 = vmax.f32 %v2239, 0.0
  %v2256 = vmax.f32 %v2240, 0.0
  %v2257 = vmax.f32 %v2241, 0.0
  %v2258 = vmax.f32 %v2242, 0.0
  %v2259 = vmax.f32 %v2243, 0.0
  %v2260 = vmax.f32 %v2244, 0.0
  %v2261 = vmax.f32 %v2245, 0.0
  %v2262 = vld [vmem:[%s1 + $0xb8] sm:$0xff]
  %v2263 = vld [vmem:[%s1 + $0xc0] sm:$0xf]
  %v2265 = vsel %vm1148, %v2246, 0
  %v2268 = vsel %vm1148, %v2247, 0
  %v2271 = vsel %vm1148, %v2248, 0
  %v2274 = vsel %vm1148, %v2249, 0
  %v2277 = vsel %vm1148, %v2250, 0
  %v2280 = vsel %vm1148, %v2251, 0
  %v2283 = vsel %vm1148, %v2252, 0
  %v2286 = vsel %vm1148, %v2253, 0
  %v2289 = vsel %vm1148, %v2254, 0
  %v2292 = vsel %vm1148, %v2255, 0
  %v2295 = vsel %vm1148, %v2256, 0
  %v2298 = vsel %vm1148, %v2257, 0
  %v2301 = vsel %vm1148, %v2258, 0
  %v2304 = vsel %vm1148, %v2259, 0
  %v2307 = vsel %vm1148, %v2260, 0
  %v2310 = vsel %vm1148, %v2261, 0
  %v2313 = vsel %vm1468, %v2263, 0
  %2315 = vmatprep.subr.mxu0 0.0
  %2316 = vmatpush1.msra.mxu0 %v2313
  %2317 = vmatprep.subr.mxu0 0.0
  %2318 = vmatpush1.msra.mxu0 0.0
  %2319 = vmatprep.subr.mxu0 0.0
  %2320 = vmatpush1.msra.mxu0 0.0
  %2321 = vmatprep.subr.mxu0 0.0
  %2322 = vmatpush1.msra.mxu0 0.0
  %2323 = vmatprep.subr.mxu0 0.0
  %2324 = vmatpush1.msra.mxu0 0.0
  %2325 = vmatprep.subr.mxu0 0.0
  %2326 = vmatpush1.msra.mxu0 0.0
  %2327 = vmatprep.subr.mxu0 0.0
  %2328 = vmatpush1.msra.mxu0 0.0
  %2329 = vmatprep.subr.mxu0 0.0
  %2330 = vmatpush1.msra.mxu0 0.0
  %2331 = vmatprep.subr.mxu0 0.0
  %2332 = vmatpush1.msra.mxu0 0.0
  %2333 = vmatprep.subr.mxu0 0.0
  %2334 = vmatpush1.msra.mxu0 0.0
  %2335 = vmatprep.subr.mxu0 0.0
  %2336 = vmatpush1.msra.mxu0 0.0
  %2337 = vmatprep.subr.mxu0 0.0
  %2338 = vmatpush1.msra.mxu0 0.0
  %2339 = vmatprep.subr.mxu0 0.0
  %2340 = vmatpush1.msra.mxu0 0.0
  %2341 = vmatprep.subr.mxu0 0.0
  %2342 = vmatpush1.msra.mxu0 0.0
  %2343 = vmatprep.subr.mxu0 0.0
  %2344 = vmatpush1.msra.mxu0 0.0
  %2345 = vmatprep.subr.mxu0 0.0
  %2346 = vmatpush1.msra.mxu0 0.0
  %2347 = vmatprep.subr.mxu0 0.0
  %2348 = vmatpush1.msra.mxu0 0.0
  %2349 = vmatprep.subr.mxu0 0.0
  %2350 = vmatpush1.msra.mxu0 0.0
  %2351 = vmatprep.subr.mxu0 0.0
  %2352 = vmatpush1.msra.mxu0 0.0
  %2353 = vmatprep.subr.mxu0 0.0
  %2354 = vmatpush1.msra.mxu0 0.0
  %2355 = vmatprep.subr.mxu0 0.0
  %2356 = vmatpush1.msra.mxu0 0.0
  %2357 = vmatprep.subr.mxu0 0.0
  %2358 = vmatpush1.msra.mxu0 0.0
  %2359 = vmatprep.subr.mxu0 0.0
  %2360 = vmatpush1.msra.mxu0 0.0
  %2361 = vmatprep.subr.mxu0 0.0
  %2362 = vmatpush1.msra.mxu0 0.0
  %2363 = vmatprep.subr.mxu0 0.0
  %2364 = vmatpush1.msra.mxu0 0.0
  %2365 = vmatprep.subr.mxu0 0.0
  %2366 = vmatpush1.msra.mxu0 0.0
  %2367 = vmatprep.subr.mxu0 0.0
  %2368 = vmatpush1.msra.mxu0 0.0
  %2369 = vmatprep.subr.mxu0 0.0
  %2370 = vmatpush1.msra.mxu0 0.0
  %2371 = vmatprep.subr.mxu0 0.0
  %2372 = vmatpush1.msra.mxu0 0.0
  %2373 = vmatprep.subr.mxu0 0.0
  %2374 = vmatpush1.msra.mxu0 0.0
  %2375 = vmatprep.subr.mxu0 0.0
  %2376 = vmatpush1.msra.mxu0 0.0
  %2377 = vmatprep.subr.mxu0 0.0
  %2378 = vmatpush1.msra.mxu0 0.0
  %2379 = vmatprep.mubr.f32.mxu0 0.0
  %2380 = vmatmul.mubr.f32.gmra.mrb[0].mxu0 %v2265
  %v2381 = vpop.f32.mrb[0].mxu0
  %v2382 = vadd.f32 0.0, %v2381
  %v2383 = vpop.f32.mrb[0].mxu0
  %2384 = vmatprep.mubr.f32.mxu0 0.0
  %2385 = vmatmul.mubr.f32.gmra.mrb[0].mxu0 %v2268
  %v2386 = vpop.f32.mrb[0].mxu0
  %v2387 = vadd.f32 0.0, %v2386
  %v2388 = vpop.f32.mrb[0].mxu0
  %2389 = vmatprep.mubr.f32.mxu0 0.0
  %2390 = vmatmul.mubr.f32.gmra.mrb[0].mxu0 %v2271
  %v2391 = vpop.f32.mrb[0].mxu0
  %v2392 = vadd.f32 0.0, %v2391
  %v2393 = vpop.f32.mrb[0].mxu0
  %2394 = vmatprep.mubr.f32.mxu0 0.0
  %2395 = vmatmul.mubr.f32.gmra.mrb[0].mxu0 %v2274
  %v2396 = vpop.f32.mrb[0].mxu0
  %v2397 = vadd.f32 0.0, %v2396
  %v2398 = vpop.f32.mrb[0].mxu0
  %2399 = vmatprep.mubr.f32.mxu0 0.0
  %2400 = vmatmul.mubr.f32.gmra.mrb[0].mxu0 %v2277
  %v2401 = vpop.f32.mrb[0].mxu0
  %v2402 = vadd.f32 0.0, %v2401
  %v2403 = vpop.f32.mrb[0].mxu0
  %2404 = vmatprep.mubr.f32.mxu0 0.0
  %2405 = vmatmul.mubr.f32.gmra.mrb[0].mxu0 %v2280
  %v2406 = vpop.f32.mrb[0].mxu0
  %v2407 = vadd.f32 0.0, %v2406
  %v2408 = vpop.f32.mrb[0].mxu0
  %2409 = vmatprep.mubr.f32.mxu0 0.0
  %2410 = vmatmul.mubr.f32.gmra.mrb[0].mxu0 %v2283
  %v2411 = vpop.f32.mrb[0].mxu0
  %v2412 = vadd.f32 0.0, %v2411
  %v2413 = vpop.f32.mrb[0].mxu0
  %2414 = vmatprep.mubr.f32.mxu0 0.0
  %2415 = vmatmul.mubr.f32.gmra.mrb[0].mxu0 %v2286
  %v2416 = vpop.f32.mrb[0].mxu0
  %v2417 = vadd.f32 0.0, %v2416
  %v2418 = vpop.f32.mrb[0].mxu0
  %2419 = vmatprep.mubr.f32.mxu0 0.0
  %2420 = vmatmul.mubr.f32.gmra.mrb[0].mxu0 %v2289
  %v2421 = vpop.f32.mrb[0].mxu0
  %v2422 = vadd.f32 0.0, %v2421
  %v2423 = vpop.f32.mrb[0].mxu0
  %2424 = vmatprep.mubr.f32.mxu0 0.0
  %2425 = vmatmul.mubr.f32.gmra.mrb[0].mxu0 %v2292
  %v2426 = vpop.f32.mrb[0].mxu0
  %v2427 = vadd.f32 0.0, %v2426
  %v2428 = vpop.f32.mrb[0].mxu0
  %2429 = vmatprep.mubr.f32.mxu0 0.0
  %2430 = vmatmul.mubr.f32.gmra.mrb[0].mxu0 %v2295
  %v2431 = vpop.f32.mrb[0].mxu0
  %v2432 = vadd.f32 0.0, %v2431
  %v2433 = vpop.f32.mrb[0].mxu0
  %2434 = vmatprep.mubr.f32.mxu0 0.0
  %2435 = vmatmul.mubr.f32.gmra.mrb[0].mxu0 %v2298
  %v2436 = vpop.f32.mrb[0].mxu0
  %v2437 = vadd.f32 0.0, %v2436
  %v2438 = vpop.f32.mrb[0].mxu0
  %2439 = vmatprep.mubr.f32.mxu0 0.0
  %2440 = vmatmul.mubr.f32.gmra.mrb[0].mxu0 %v2301
  %v2441 = vpop.f32.mrb[0].mxu0
  %v2442 = vadd.f32 0.0, %v2441
  %v2443 = vpop.f32.mrb[0].mxu0
  %2444 = vmatprep.mubr.f32.mxu0 0.0
  %2445 = vmatmul.mubr.f32.gmra.mrb[0].mxu0 %v2304
  %v2446 = vpop.f32.mrb[0].mxu0
  %v2447 = vadd.f32 0.0, %v2446
  %v2448 = vpop.f32.mrb[0].mxu0
  %2449 = vmatprep.mubr.f32.mxu0 0.0
  %2450 = vmatmul.mubr.f32.gmra.mrb[0].mxu0 %v2307
  %v2451 = vpop.f32.mrb[0].mxu0
  %v2452 = vadd.f32 0.0, %v2451
  %v2453 = vpop.f32.mrb[0].mxu0
  %2454 = vmatprep.mubr.f32.mxu0 0.0
  %2455 = vmatmul.mubr.f32.gmra.mrb[0].mxu0 %v2310
  %v2456 = vpop.f32.mrb[0].mxu0
  %v2457 = vadd.f32 0.0, %v2456
  %v2458 = vpop.f32.mrb[0].mxu0
  %2459 = vdwg.mxu0
  %v2461 = vsel %vm681, %v2172, 0
  %v2464 = vsel %vm681, %v2173, 0
  %v2467 = vsel %vm681, %v2174, 0
  %v2470 = vsel %vm681, %v2175, 0
  %v2473 = vsel %vm681, %v2176, 0
  %v2476 = vsel %vm681, %v2177, 0
  %v2479 = vsel %vm681, %v2178, 0
  %v2482 = vsel %vm681, %v2179, 0
  %v2485 = vsel %vm681, %v2180, 0
  %v2488 = vsel %vm681, %v2181, 0
  %v2491 = vsel %vm681, %v2182, 0
  %v2494 = vsel %vm681, %v2183, 0
  %v2497 = vsel %vm681, %v2184, 0
  %v2500 = vsel %vm681, %v2185, 0
  %v2503 = vsel %vm681, %v2186, 0
  %v2506 = vsel %vm681, %v2187, 0
  %2508 = vmatprep.subr.mxu0 0.0
  %2509 = vmatpush1.msra.mxu0 %v2262
  %2510 = vmatprep.subr.mxu0 0.0
  %2511 = vmatpush1.msra.mxu0 0.0
  %2512 = vmatprep.subr.mxu0 0.0
  %2513 = vmatpush1.msra.mxu0 0.0
  %2514 = vmatprep.subr.mxu0 0.0
  %2515 = vmatpush1.msra.mxu0 0.0
  %2516 = vmatprep.subr.mxu0 0.0
  %2517 = vmatpush1.msra.mxu0 0.0
  %2518 = vmatprep.subr.mxu0 0.0
  %2519 = vmatpush1.msra.mxu0 0.0
  %2520 = vmatprep.subr.mxu0 0.0
  %2521 = vmatpush1.msra.mxu0 0.0
  %2522 = vmatprep.subr.mxu0 0.0
  %2523 = vmatpush1.msra.mxu0 0.0
  %2524 = vmatprep.subr.mxu0 0.0
  %2525 = vmatpush1.msra.mxu0 0.0
  %2526 = vmatprep.subr.mxu0 0.0
  %2527 = vmatpush1.msra.mxu0 0.0
  %2528 = vmatprep.subr.mxu0 0.0
  %2529 = vmatpush1.msra.mxu0 0.0
  %2530 = vmatprep.subr.mxu0 0.0
  %2531 = vmatpush1.msra.mxu0 0.0
  %2532 = vmatprep.subr.mxu0 0.0
  %2533 = vmatpush1.msra.mxu0 0.0
  %2534 = vmatprep.subr.mxu0 0.0
  %2535 = vmatpush1.msra.mxu0 0.0
  %2536 = vmatprep.subr.mxu0 0.0
  %2537 = vmatpush1.msra.mxu0 0.0
  %2538 = vmatprep.subr.mxu0 0.0
  %2539 = vmatpush1.msra.mxu0 0.0
  %2540 = vmatprep.subr.mxu0 0.0
  %2541 = vmatpush1.msra.mxu0 0.0
  %2542 = vmatprep.subr.mxu0 0.0
  %2543 = vmatpush1.msra.mxu0 0.0
  %2544 = vmatprep.subr.mxu0 0.0
  %2545 = vmatpush1.msra.mxu0 0.0
  %2546 = vmatprep.subr.mxu0 0.0
  %2547 = vmatpush1.msra.mxu0 0.0
  %2548 = vmatprep.subr.mxu0 0.0
  %2549 = vmatpush1.msra.mxu0 0.0
  %2550 = vmatprep.subr.mxu0 0.0
  %2551 = vmatpush1.msra.mxu0 0.0
  %2552 = vmatprep.subr.mxu0 0.0
  %2553 = vmatpush1.msra.mxu0 0.0
  %2554 = vmatprep.subr.mxu0 0.0
  %2555 = vmatpush1.msra.mxu0 0.0
  %2556 = vmatprep.subr.mxu0 0.0
  %2557 = vmatpush1.msra.mxu0 0.0
  %2558 = vmatprep.subr.mxu0 0.0
  %2559 = vmatpush1.msra.mxu0 0.0
  %2560 = vmatprep.subr.mxu0 0.0
  %2561 = vmatpush1.msra.mxu0 0.0
  %2562 = vmatprep.subr.mxu0 0.0
  %2563 = vmatpush1.msra.mxu0 0.0
  %2564 = vmatprep.subr.mxu0 0.0
  %2565 = vmatpush1.msra.mxu0 0.0
  %2566 = vmatprep.subr.mxu0 0.0
  %2567 = vmatpush1.msra.mxu0 0.0
  %2568 = vmatprep.subr.mxu0 0.0
  %2569 = vmatpush1.msra.mxu0 0.0
  %2570 = vmatprep.subr.mxu0 0.0
  %2571 = vmatpush1.msra.mxu0 0.0
  %2572 = vmatprep.mubr.f32.mxu0 0.0
  %2573 = vmatmul.mubr.f32.gmra.mrb[0].mxu0 %v2461
  %v2574 = vpop.f32.mrb[0].mxu0
  %v2575 = vadd.f32 %v2382, %v2574
  %v2576 = vpop.f32.mrb[0].mxu0
  %2577 = vmatprep.mubr.f32.mxu0 0.0
  %2578 = vmatmul.mubr.f32.gmra.mrb[0].mxu0 %v2464
  %v2579 = vpop.f32.mrb[0].mxu0
  %v2580 = vadd.f32 %v2387, %v2579
  %v2581 = vpop.f32.mrb[0].mxu0
  %2582 = vmatprep.mubr.f32.mxu0 0.0
  %2583 = vmatmul.mubr.f32.gmra.mrb[0].mxu0 %v2467
  %v2584 = vpop.f32.mrb[0].mxu0
  %v2585 = vadd.f32 %v2392, %v2584
  %v2586 = vpop.f32.mrb[0].mxu0
  %2587 = vmatprep.mubr.f32.mxu0 0.0
  %2588 = vmatmul.mubr.f32.gmra.mrb[0].mxu0 %v2470
  %v2589 = vpop.f32.mrb[0].mxu0
  %v2590 = vadd.f32 %v2397, %v2589
  %v2591 = vpop.f32.mrb[0].mxu0
  %2592 = vmatprep.mubr.f32.mxu0 0.0
  %2593 = vmatmul.mubr.f32.gmra.mrb[0].mxu0 %v2473
  %v2594 = vpop.f32.mrb[0].mxu0
  %v2595 = vadd.f32 %v2402, %v2594
  %v2596 = vpop.f32.mrb[0].mxu0
  %2597 = vmatprep.mubr.f32.mxu0 0.0
  %2598 = vmatmul.mubr.f32.gmra.mrb[0].mxu0 %v2476
  %v2599 = vpop.f32.mrb[0].mxu0
  %v2600 = vadd.f32 %v2407, %v2599
  %v2601 = vpop.f32.mrb[0].mxu0
  %2602 = vmatprep.mubr.f32.mxu0 0.0
  %2603 = vmatmul.mubr.f32.gmra.mrb[0].mxu0 %v2479
  %v2604 = vpop.f32.mrb[0].mxu0
  %v2605 = vadd.f32 %v2412, %v2604
  %v2606 = vpop.f32.mrb[0].mxu0
  %2607 = vmatprep.mubr.f32.mxu0 0.0
  %2608 = vmatmul.mubr.f32.gmra.mrb[0].mxu0 %v2482
  %v2609 = vpop.f32.mrb[0].mxu0
  %v2610 = vadd.f32 %v2417, %v2609
  %v2611 = vpop.f32.mrb[0].mxu0
  %2612 = vmatprep.mubr.f32.mxu0 0.0
  %2613 = vmatmul.mubr.f32.gmra.mrb[0].mxu0 %v2485
  %v2614 = vpop.f32.mrb[0].mxu0
  %v2615 = vadd.f32 %v2422, %v2614
  %v2616 = vpop.f32.mrb[0].mxu0
  %2617 = vmatprep.mubr.f32.mxu0 0.0
  %2618 = vmatmul.mubr.f32.gmra.mrb[0].mxu0 %v2488
  %v2619 = vpop.f32.mrb[0].mxu0
  %v2620 = vadd.f32 %v2427, %v2619
  %v2621 = vpop.f32.mrb[0].mxu0
  %2622 = vmatprep.mubr.f32.mxu0 0.0
  %2623 = vmatmul.mubr.f32.gmra.mrb[0].mxu0 %v2491
  %v2624 = vpop.f32.mrb[0].mxu0
  %v2625 = vadd.f32 %v2432, %v2624
  %v2626 = vpop.f32.mrb[0].mxu0
  %2627 = vmatprep.mubr.f32.mxu0 0.0
  %2628 = vmatmul.mubr.f32.gmra.mrb[0].mxu0 %v2494
  %v2629 = vpop.f32.mrb[0].mxu0
  %v2630 = vadd.f32 %v2437, %v2629
  %v2631 = vpop.f32.mrb[0].mxu0
  %2632 = vmatprep.mubr.f32.mxu0 0.0
  %2633 = vmatmul.mubr.f32.gmra.mrb[0].mxu0 %v2497
  %v2634 = vpop.f32.mrb[0].mxu0
  %v2635 = vadd.f32 %v2442, %v2634
  %v2636 = vpop.f32.mrb[0].mxu0
  %2637 = vmatprep.mubr.f32.mxu0 0.0
  %2638 = vmatmul.mubr.f32.gmra.mrb[0].mxu0 %v2500
  %v2639 = vpop.f32.mrb[0].mxu0
  %v2640 = vadd.f32 %v2447, %v2639
  %v2641 = vpop.f32.mrb[0].mxu0
  %2642 = vmatprep.mubr.f32.mxu0 0.0
  %2643 = vmatmul.mubr.f32.gmra.mrb[0].mxu0 %v2503
  %v2644 = vpop.f32.mrb[0].mxu0
  %v2645 = vadd.f32 %v2452, %v2644
  %v2646 = vpop.f32.mrb[0].mxu0
  %2647 = vmatprep.mubr.f32.mxu0 0.0
  %2648 = vmatmul.mubr.f32.gmra.mrb[0].mxu0 %v2506
  %v2649 = vpop.f32.mrb[0].mxu0
  %v2650 = vadd.f32 %v2457, %v2649
  %v2651 = vpop.f32.mrb[0].mxu0
  %2652 = vdwg.mxu0
  %v2653 = vld [vmem:[%s1 + $0xc8] sm:$0x1]
  %v2654 = vlaneseq
  %v2655 = vshrl.u32 %v2654, 7
  %v2656 = vsub.s32 0, %v2655
  %v2657 = vrot.slane %v2653, %v2656
  %v2658 = vadd.f32 %v2575, %v2657
  %v2659 = vadd.f32 %v2580, %v2657
  %v2660 = vadd.f32 %v2585, %v2657
  %v2661 = vadd.f32 %v2590, %v2657
  %v2662 = vadd.f32 %v2595, %v2657
  %v2663 = vadd.f32 %v2600, %v2657
  %v2664 = vadd.f32 %v2605, %v2657
  %v2665 = vadd.f32 %v2610, %v2657
  %v2666 = vadd.f32 %v2615, %v2657
  %v2667 = vadd.f32 %v2620, %v2657
  %v2668 = vadd.f32 %v2625, %v2657
  %v2669 = vadd.f32 %v2630, %v2657
  %v2670 = vadd.f32 %v2635, %v2657
  %v2671 = vadd.f32 %v2640, %v2657
  %v2672 = vadd.f32 %v2645, %v2657
  %v2673 = vadd.f32 %v2650, %v2657
  %v2674 = vld [vmem:[%s1 + $0xd0] sm:$0x1]
  %v2675 = vld [vmem:[%s1 + $0xd8] sm:$0x1]
  %v2676 = vsel %vm1148, %v2658, 0.0
  %2677 = vadd.xlane.f32.xlu0 %v2676
  %v2678 = vpop.xlane.xlu0 %2677
  %v2679 = vsel %vm1148, %v2659, 0.0
  %2680 = vadd.xlane.f32.xlu0 %v2679
  %v2681 = vpop.xlane.xlu0 %2680
  %v2682 = vsel %vm1148, %v2660, 0.0
  %2683 = vadd.xlane.f32.xlu0 %v2682
  %v2684 = vpop.xlane.xlu0 %2683
  %v2685 = vsel %vm1148, %v2661, 0.0
  %2686 = vadd.xlane.f32.xlu0 %v2685
  %v2687 = vpop.xlane.xlu0 %2686
  %v2688 = vsel %vm1148, %v2662, 0.0
  %2689 = vadd.xlane.f32.xlu0 %v2688
  %v2690 = vpop.xlane.xlu0 %2689
  %v2691 = vsel %vm1148, %v2663, 0.0
  %2692 = vadd.xlane.f32.xlu0 %v2691
  %v2693 = vpop.xlane.xlu0 %2692
  %v2694 = vsel %vm1148, %v2664, 0.0
  %2695 = vadd.xlane.f32.xlu0 %v2694
  %v2696 = vpop.xlane.xlu0 %2695
  %v2697 = vsel %vm1148, %v2665, 0.0
  %2698 = vadd.xlane.f32.xlu0 %v2697
  %v2699 = vpop.xlane.xlu0 %2698
  %v2700 = vsel %vm1148, %v2666, 0.0
  %2701 = vadd.xlane.f32.xlu0 %v2700
  %v2702 = vpop.xlane.xlu0 %2701
  %v2703 = vsel %vm1148, %v2667, 0.0
  %2704 = vadd.xlane.f32.xlu0 %v2703
  %v2705 = vpop.xlane.xlu0 %2704
  %v2706 = vsel %vm1148, %v2668, 0.0
  %2707 = vadd.xlane.f32.xlu0 %v2706
  %v2708 = vpop.xlane.xlu0 %2707
  %v2709 = vsel %vm1148, %v2669, 0.0
  %2710 = vadd.xlane.f32.xlu0 %v2709
  %v2711 = vpop.xlane.xlu0 %2710
  %v2712 = vsel %vm1148, %v2670, 0.0
  %2713 = vadd.xlane.f32.xlu0 %v2712
  %v2714 = vpop.xlane.xlu0 %2713
  %v2715 = vsel %vm1148, %v2671, 0.0
  %2716 = vadd.xlane.f32.xlu0 %v2715
  %v2717 = vpop.xlane.xlu0 %2716
  %v2718 = vsel %vm1148, %v2672, 0.0
  %2719 = vadd.xlane.f32.xlu0 %v2718
  %v2720 = vpop.xlane.xlu0 %2719
  %v2721 = vsel %vm1148, %v2673, 0.0
  %2722 = vadd.xlane.f32.xlu0 %v2721
  %v2723 = vpop.xlane.xlu0 %2722
  %v2724 = vmul.f32 %v2678, %v1197
  %v2725 = vmul.f32 %v2681, %v1197
  %v2726 = vmul.f32 %v2684, %v1197
  %v2727 = vmul.f32 %v2687, %v1197
  %v2728 = vmul.f32 %v2690, %v1197
  %v2729 = vmul.f32 %v2693, %v1197
  %v2730 = vmul.f32 %v2696, %v1197
  %v2731 = vmul.f32 %v2699, %v1197
  %v2732 = vmul.f32 %v2702, %v1197
  %v2733 = vmul.f32 %v2705, %v1197
  %v2734 = vmul.f32 %v2708, %v1197
  %v2735 = vmul.f32 %v2711, %v1197
  %v2736 = vmul.f32 %v2714, %v1197
  %v2737 = vmul.f32 %v2717, %v1197
  %v2738 = vmul.f32 %v2720, %v1197
  %v2739 = vmul.f32 %v2723, %v1197
  %v2740 = vsub.f32 %v2658, %v2724
  %v2741 = vsub.f32 %v2659, %v2725
  %v2742 = vsub.f32 %v2660, %v2726
  %v2743 = vsub.f32 %v2661, %v2727
  %v2744 = vsub.f32 %v2662, %v2728
  %v2745 = vsub.f32 %v2663, %v2729
  %v2746 = vsub.f32 %v2664, %v2730
  %v2747 = vsub.f32 %v2665, %v2731
  %v2748 = vsub.f32 %v2666, %v2732
  %v2749 = vsub.f32 %v2667, %v2733
  %v2750 = vsub.f32 %v2668, %v2734
  %v2751 = vsub.f32 %v2669, %v2735
  %v2752 = vsub.f32 %v2670, %v2736
  %v2753 = vsub.f32 %v2671, %v2737
  %v2754 = vsub.f32 %v2672, %v2738
  %v2755 = vsub.f32 %v2673, %v2739
  %v2756 = vmul.f32 %v2740, %v2740
  %v2757 = vmul.f32 %v2741, %v2741
  %v2758 = vmul.f32 %v2742, %v2742
  %v2759 = vmul.f32 %v2743, %v2743
  %v2760 = vmul.f32 %v2744, %v2744
  %v2761 = vmul.f32 %v2745, %v2745
  %v2762 = vmul.f32 %v2746, %v2746
  %v2763 = vmul.f32 %v2747, %v2747
  %v2764 = vmul.f32 %v2748, %v2748
  %v2765 = vmul.f32 %v2749, %v2749
  %v2766 = vmul.f32 %v2750, %v2750
  %v2767 = vmul.f32 %v2751, %v2751
  %v2768 = vmul.f32 %v2752, %v2752
  %v2769 = vmul.f32 %v2753, %v2753
  %v2770 = vmul.f32 %v2754, %v2754
  %v2771 = vmul.f32 %v2755, %v2755
  %v2772 = vsel %vm1148, %v2756, 0.0
  %2773 = vadd.xlane.f32.xlu0 %v2772
  %v2774 = vpop.xlane.xlu0 %2773
  %v2775 = vsel %vm1148, %v2757, 0.0
  %2776 = vadd.xlane.f32.xlu0 %v2775
  %v2777 = vpop.xlane.xlu0 %2776
  %v2778 = vsel %vm1148, %v2758, 0.0
  %2779 = vadd.xlane.f32.xlu0 %v2778
  %v2780 = vpop.xlane.xlu0 %2779
  %v2781 = vsel %vm1148, %v2759, 0.0
  %2782 = vadd.xlane.f32.xlu0 %v2781
  %v2783 = vpop.xlane.xlu0 %2782
  %v2784 = vsel %vm1148, %v2760, 0.0
  %2785 = vadd.xlane.f32.xlu0 %v2784
  %v2786 = vpop.xlane.xlu0 %2785
  %v2787 = vsel %vm1148, %v2761, 0.0
  %2788 = vadd.xlane.f32.xlu0 %v2787
  %v2789 = vpop.xlane.xlu0 %2788
  %v2790 = vsel %vm1148, %v2762, 0.0
  %2791 = vadd.xlane.f32.xlu0 %v2790
  %v2792 = vpop.xlane.xlu0 %2791
  %v2793 = vsel %vm1148, %v2763, 0.0
  %2794 = vadd.xlane.f32.xlu0 %v2793
  %v2795 = vpop.xlane.xlu0 %2794
  %v2796 = vsel %vm1148, %v2764, 0.0
  %2797 = vadd.xlane.f32.xlu0 %v2796
  %v2798 = vpop.xlane.xlu0 %2797
  %v2799 = vsel %vm1148, %v2765, 0.0
  %2800 = vadd.xlane.f32.xlu0 %v2799
  %v2801 = vpop.xlane.xlu0 %2800
  %v2802 = vsel %vm1148, %v2766, 0.0
  %2803 = vadd.xlane.f32.xlu0 %v2802
  %v2804 = vpop.xlane.xlu0 %2803
  %v2805 = vsel %vm1148, %v2767, 0.0
  %2806 = vadd.xlane.f32.xlu0 %v2805
  %v2807 = vpop.xlane.xlu0 %2806
  %v2808 = vsel %vm1148, %v2768, 0.0
  %2809 = vadd.xlane.f32.xlu0 %v2808
  %v2810 = vpop.xlane.xlu0 %2809
  %v2811 = vsel %vm1148, %v2769, 0.0
  %2812 = vadd.xlane.f32.xlu0 %v2811
  %v2813 = vpop.xlane.xlu0 %2812
  %v2814 = vsel %vm1148, %v2770, 0.0
  %2815 = vadd.xlane.f32.xlu0 %v2814
  %v2816 = vpop.xlane.xlu0 %2815
  %v2817 = vsel %vm1148, %v2771, 0.0
  %2818 = vadd.xlane.f32.xlu0 %v2817
  %v2819 = vpop.xlane.xlu0 %2818
  %v2820 = vmul.f32 %v2774, %v1197
  %v2821 = vmul.f32 %v2777, %v1197
  %v2822 = vmul.f32 %v2780, %v1197
  %v2823 = vmul.f32 %v2783, %v1197
  %v2824 = vmul.f32 %v2786, %v1197
  %v2825 = vmul.f32 %v2789, %v1197
  %v2826 = vmul.f32 %v2792, %v1197
  %v2827 = vmul.f32 %v2795, %v1197
  %v2828 = vmul.f32 %v2798, %v1197
  %v2829 = vmul.f32 %v2801, %v1197
  %v2830 = vmul.f32 %v2804, %v1197
  %v2831 = vmul.f32 %v2807, %v1197
  %v2832 = vmul.f32 %v2810, %v1197
  %v2833 = vmul.f32 %v2813, %v1197
  %v2834 = vmul.f32 %v2816, %v1197
  %v2835 = vmul.f32 %v2819, %v1197
  %v2836 = vadd.f32 %v2820, 1e-05
  %v2837 = vadd.f32 %v2821, 1e-05
  %v2838 = vadd.f32 %v2822, 1e-05
  %v2839 = vadd.f32 %v2823, 1e-05
  %v2840 = vadd.f32 %v2824, 1e-05
  %v2841 = vadd.f32 %v2825, 1e-05
  %v2842 = vadd.f32 %v2826, 1e-05
  %v2843 = vadd.f32 %v2827, 1e-05
  %v2844 = vadd.f32 %v2828, 1e-05
  %v2845 = vadd.f32 %v2829, 1e-05
  %v2846 = vadd.f32 %v2830, 1e-05
  %v2847 = vadd.f32 %v2831, 1e-05
  %v2848 = vadd.f32 %v2832, 1e-05
  %v2849 = vadd.f32 %v2833, 1e-05
  %v2850 = vadd.f32 %v2834, 1e-05
  %v2851 = vadd.f32 %v2835, 1e-05
  %v2852 = vrsqrt.pop %v2836
  %v2853 = vrsqrt.pop %v2837
  %v2854 = vrsqrt.pop %v2838
  %v2855 = vrsqrt.pop %v2839
  %v2856 = vrsqrt.pop %v2840
  %v2857 = vrsqrt.pop %v2841
  %v2858 = vrsqrt.pop %v2842
  %v2859 = vrsqrt.pop %v2843
  %v2860 = vrsqrt.pop %v2844
  %v2861 = vrsqrt.pop %v2845
  %v2862 = vrsqrt.pop %v2846
  %v2863 = vrsqrt.pop %v2847
  %v2864 = vrsqrt.pop %v2848
  %v2865 = vrsqrt.pop %v2849
  %v2866 = vrsqrt.pop %v2850
  %v2867 = vrsqrt.pop %v2851
  %v2868 = vmul.f32 %v2740, %v2852
  %v2869 = vmul.f32 %v2741, %v2853
  %v2870 = vmul.f32 %v2742, %v2854
  %v2871 = vmul.f32 %v2743, %v2855
  %v2872 = vmul.f32 %v2744, %v2856
  %v2873 = vmul.f32 %v2745, %v2857
  %v2874 = vmul.f32 %v2746, %v2858
  %v2875 = vmul.f32 %v2747, %v2859
  %v2876 = vmul.f32 %v2748, %v2860
  %v2877 = vmul.f32 %v2749, %v2861
  %v2878 = vmul.f32 %v2750, %v2862
  %v2879 = vmul.f32 %v2751, %v2863
  %v2880 = vmul.f32 %v2752, %v2864
  %v2881 = vmul.f32 %v2753, %v2865
  %v2882 = vmul.f32 %v2754, %v2866
  %v2883 = vmul.f32 %v2755, %v2867
  %v2884 = vlaneseq
  %v2885 = vshrl.u32 %v2884, 7
  %v2886 = vsub.s32 0, %v2885
  %v2887 = vrot.slane %v2674, %v2886
  %v2888 = vmul.f32 %v2868, %v2887
  %v2889 = vmul.f32 %v2869, %v2887
  %v2890 = vmul.f32 %v2870, %v2887
  %v2891 = vmul.f32 %v2871, %v2887
  %v2892 = vmul.f32 %v2872, %v2887
  %v2893 = vmul.f32 %v2873, %v2887
  %v2894 = vmul.f32 %v2874, %v2887
  %v2895 = vmul.f32 %v2875, %v2887
  %v2896 = vmul.f32 %v2876, %v2887
  %v2897 = vmul.f32 %v2877, %v2887
  %v2898 = vmul.f32 %v2878, %v2887
  %v2899 = vmul.f32 %v2879, %v2887
  %v2900 = vmul.f32 %v2880, %v2887
  %v2901 = vmul.f32 %v2881, %v2887
  %v2902 = vmul.f32 %v2882, %v2887
  %v2903 = vmul.f32 %v2883, %v2887
  %v2904 = vlaneseq
  %v2905 = vshrl.u32 %v2904, 7
  %v2906 = vsub.s32 0, %v2905
  %v2907 = vrot.slane %v2675, %v2906
  %v2908 = vadd.f32 %v2888, %v2907
  %v2909 = vadd.f32 %v2889, %v2907
  %v2910 = vadd.f32 %v2890, %v2907
  %v2911 = vadd.f32 %v2891, %v2907
  %v2912 = vadd.f32 %v2892, %v2907
  %v2913 = vadd.f32 %v2893, %v2907
  %v2914 = vadd.f32 %v2894, %v2907
  %v2915 = vadd.f32 %v2895, %v2907
  %v2916 = vadd.f32 %v2896, %v2907
  %v2917 = vadd.f32 %v2897, %v2907
  %v2918 = vadd.f32 %v2898, %v2907
  %v2919 = vadd.f32 %v2899, %v2907
  %v2920 = vadd.f32 %v2900, %v2907
  %v2921 = vadd.f32 %v2901, %v2907
  %v2922 = vadd.f32 %v2902, %v2907
  %v2923 = vadd.f32 %v2903, %v2907
  %v2924 = vmax.f32 %v2908, 0.0
  %v2925 = vmax.f32 %v2909, 0.0
  %v2926 = vmax.f32 %v2910, 0.0
  %v2927 = vmax.f32 %v2911, 0.0
  %v2928 = vmax.f32 %v2912, 0.0
  %v2929 = vmax.f32 %v2913, 0.0
  %v2930 = vmax.f32 %v2914, 0.0
  %v2931 = vmax.f32 %v2915, 0.0
  %v2932 = vmax.f32 %v2916, 0.0
  %v2933 = vmax.f32 %v2917, 0.0
  %v2934 = vmax.f32 %v2918, 0.0
  %v2935 = vmax.f32 %v2919, 0.0
  %v2936 = vmax.f32 %v2920, 0.0
  %v2937 = vmax.f32 %v2921, 0.0
  %v2938 = vmax.f32 %v2922, 0.0
  %v2939 = vmax.f32 %v2923, 0.0
  %v2940 = vld [vmem:[%s1 + $0xe0] sm:$0xf]
  %v2941 = vld [vmem:[%s1 + $0xe8] sm:$0x1]
  %v2942 = vlaneseq
  %v2943 = vshrl.u32 %v2942, 7
  %v2944 = vsub.s32 0, %v2943
  %v2945 = vrot.slane %v2941, %v2944
  %v2947 = vsel %vm1148, %v2924, 0
  %v2950 = vsel %vm1148, %v2925, 0
  %v2953 = vsel %vm1148, %v2926, 0
  %v2956 = vsel %vm1148, %v2927, 0
  %v2959 = vsel %vm1148, %v2928, 0
  %v2962 = vsel %vm1148, %v2929, 0
  %v2965 = vsel %vm1148, %v2930, 0
  %v2968 = vsel %vm1148, %v2931, 0
  %v2971 = vsel %vm1148, %v2932, 0
  %v2974 = vsel %vm1148, %v2933, 0
  %v2977 = vsel %vm1148, %v2934, 0
  %v2980 = vsel %vm1148, %v2935, 0
  %v2983 = vsel %vm1148, %v2936, 0
  %v2986 = vsel %vm1148, %v2937, 0
  %v2989 = vsel %vm1148, %v2938, 0
  %v2992 = vsel %vm1148, %v2939, 0
  %v2995 = vsel %vm1468, %v2940, 0
  %2997 = vmatprep.subr.mxu0 0.0
  %2998 = vmatpush1.msra.mxu0 %v2995
  %2999 = vmatprep.subr.mxu0 0.0
  %3000 = vmatpush1.msra.mxu0 0.0
  %3001 = vmatprep.subr.mxu0 0.0
  %3002 = vmatpush1.msra.mxu0 0.0
  %3003 = vmatprep.subr.mxu0 0.0
  %3004 = vmatpush1.msra.mxu0 0.0
  %3005 = vmatprep.subr.mxu0 0.0
  %3006 = vmatpush1.msra.mxu0 0.0
  %3007 = vmatprep.subr.mxu0 0.0
  %3008 = vmatpush1.msra.mxu0 0.0
  %3009 = vmatprep.subr.mxu0 0.0
  %3010 = vmatpush1.msra.mxu0 0.0
  %3011 = vmatprep.subr.mxu0 0.0
  %3012 = vmatpush1.msra.mxu0 0.0
  %3013 = vmatprep.subr.mxu0 0.0
  %3014 = vmatpush1.msra.mxu0 0.0
  %3015 = vmatprep.subr.mxu0 0.0
  %3016 = vmatpush1.msra.mxu0 0.0
  %3017 = vmatprep.subr.mxu0 0.0
  %3018 = vmatpush1.msra.mxu0 0.0
  %3019 = vmatprep.subr.mxu0 0.0
  %3020 = vmatpush1.msra.mxu0 0.0
  %3021 = vmatprep.subr.mxu0 0.0
  %3022 = vmatpush1.msra.mxu0 0.0
  %3023 = vmatprep.subr.mxu0 0.0
  %3024 = vmatpush1.msra.mxu0 0.0
  %3025 = vmatprep.subr.mxu0 0.0
  %3026 = vmatpush1.msra.mxu0 0.0
  %3027 = vmatprep.subr.mxu0 0.0
  %3028 = vmatpush1.msra.mxu0 0.0
  %3029 = vmatprep.subr.mxu0 0.0
  %3030 = vmatpush1.msra.mxu0 0.0
  %3031 = vmatprep.subr.mxu0 0.0
  %3032 = vmatpush1.msra.mxu0 0.0
  %3033 = vmatprep.subr.mxu0 0.0
  %3034 = vmatpush1.msra.mxu0 0.0
  %3035 = vmatprep.subr.mxu0 0.0
  %3036 = vmatpush1.msra.mxu0 0.0
  %3037 = vmatprep.subr.mxu0 0.0
  %3038 = vmatpush1.msra.mxu0 0.0
  %3039 = vmatprep.subr.mxu0 0.0
  %3040 = vmatpush1.msra.mxu0 0.0
  %3041 = vmatprep.subr.mxu0 0.0
  %3042 = vmatpush1.msra.mxu0 0.0
  %3043 = vmatprep.subr.mxu0 0.0
  %3044 = vmatpush1.msra.mxu0 0.0
  %3045 = vmatprep.subr.mxu0 0.0
  %3046 = vmatpush1.msra.mxu0 0.0
  %3047 = vmatprep.subr.mxu0 0.0
  %3048 = vmatpush1.msra.mxu0 0.0
  %3049 = vmatprep.subr.mxu0 0.0
  %3050 = vmatpush1.msra.mxu0 0.0
  %3051 = vmatprep.subr.mxu0 0.0
  %3052 = vmatpush1.msra.mxu0 0.0
  %3053 = vmatprep.subr.mxu0 0.0
  %3054 = vmatpush1.msra.mxu0 0.0
  %3055 = vmatprep.subr.mxu0 0.0
  %3056 = vmatpush1.msra.mxu0 0.0
  %3057 = vmatprep.subr.mxu0 0.0
  %3058 = vmatpush1.msra.mxu0 0.0
  %3059 = vmatprep.subr.mxu0 0.0
  %3060 = vmatpush1.msra.mxu0 0.0
  %3061 = vmatprep.mubr.f32.mxu0 0.0
  %3062 = vmatmul.mubr.f32.gmra.mrb[0].mxu0 %v2947
  %v3063 = vpop.f32.mrb[0].mxu0
  %v3064 = vadd.f32 %v2945, %v3063
  %v3065 = vpop.f32.mrb[0].mxu0
  %3066 = vmatprep.mubr.f32.mxu0 0.0
  %3067 = vmatmul.mubr.f32.gmra.mrb[0].mxu0 %v2950
  %v3068 = vpop.f32.mrb[0].mxu0
  %v3069 = vadd.f32 %v2945, %v3068
  %v3070 = vpop.f32.mrb[0].mxu0
  %3071 = vmatprep.mubr.f32.mxu0 0.0
  %3072 = vmatmul.mubr.f32.gmra.mrb[0].mxu0 %v2953
  %v3073 = vpop.f32.mrb[0].mxu0
  %v3074 = vadd.f32 %v2945, %v3073
  %v3075 = vpop.f32.mrb[0].mxu0
  %3076 = vmatprep.mubr.f32.mxu0 0.0
  %3077 = vmatmul.mubr.f32.gmra.mrb[0].mxu0 %v2956
  %v3078 = vpop.f32.mrb[0].mxu0
  %v3079 = vadd.f32 %v2945, %v3078
  %v3080 = vpop.f32.mrb[0].mxu0
  %3081 = vmatprep.mubr.f32.mxu0 0.0
  %3082 = vmatmul.mubr.f32.gmra.mrb[0].mxu0 %v2959
  %v3083 = vpop.f32.mrb[0].mxu0
  %v3084 = vadd.f32 %v2945, %v3083
  %v3085 = vpop.f32.mrb[0].mxu0
  %3086 = vmatprep.mubr.f32.mxu0 0.0
  %3087 = vmatmul.mubr.f32.gmra.mrb[0].mxu0 %v2962
  %v3088 = vpop.f32.mrb[0].mxu0
  %v3089 = vadd.f32 %v2945, %v3088
  %v3090 = vpop.f32.mrb[0].mxu0
  %3091 = vmatprep.mubr.f32.mxu0 0.0
  %3092 = vmatmul.mubr.f32.gmra.mrb[0].mxu0 %v2965
  %v3093 = vpop.f32.mrb[0].mxu0
  %v3094 = vadd.f32 %v2945, %v3093
  %v3095 = vpop.f32.mrb[0].mxu0
  %3096 = vmatprep.mubr.f32.mxu0 0.0
  %3097 = vmatmul.mubr.f32.gmra.mrb[0].mxu0 %v2968
  %v3098 = vpop.f32.mrb[0].mxu0
  %v3099 = vadd.f32 %v2945, %v3098
  %v3100 = vpop.f32.mrb[0].mxu0
  %3101 = vmatprep.mubr.f32.mxu0 0.0
  %3102 = vmatmul.mubr.f32.gmra.mrb[0].mxu0 %v2971
  %v3103 = vpop.f32.mrb[0].mxu0
  %v3104 = vadd.f32 %v2945, %v3103
  %v3105 = vpop.f32.mrb[0].mxu0
  %3106 = vmatprep.mubr.f32.mxu0 0.0
  %3107 = vmatmul.mubr.f32.gmra.mrb[0].mxu0 %v2974
  %v3108 = vpop.f32.mrb[0].mxu0
  %v3109 = vadd.f32 %v2945, %v3108
  %v3110 = vpop.f32.mrb[0].mxu0
  %3111 = vmatprep.mubr.f32.mxu0 0.0
  %3112 = vmatmul.mubr.f32.gmra.mrb[0].mxu0 %v2977
  %v3113 = vpop.f32.mrb[0].mxu0
  %v3114 = vadd.f32 %v2945, %v3113
  %v3115 = vpop.f32.mrb[0].mxu0
  %3116 = vmatprep.mubr.f32.mxu0 0.0
  %3117 = vmatmul.mubr.f32.gmra.mrb[0].mxu0 %v2980
  %v3118 = vpop.f32.mrb[0].mxu0
  %v3119 = vadd.f32 %v2945, %v3118
  %v3120 = vpop.f32.mrb[0].mxu0
  %3121 = vmatprep.mubr.f32.mxu0 0.0
  %3122 = vmatmul.mubr.f32.gmra.mrb[0].mxu0 %v2983
  %v3123 = vpop.f32.mrb[0].mxu0
  %v3124 = vadd.f32 %v2945, %v3123
  %v3125 = vpop.f32.mrb[0].mxu0
  %3126 = vmatprep.mubr.f32.mxu0 0.0
  %3127 = vmatmul.mubr.f32.gmra.mrb[0].mxu0 %v2986
  %v3128 = vpop.f32.mrb[0].mxu0
  %v3129 = vadd.f32 %v2945, %v3128
  %v3130 = vpop.f32.mrb[0].mxu0
  %3131 = vmatprep.mubr.f32.mxu0 0.0
  %3132 = vmatmul.mubr.f32.gmra.mrb[0].mxu0 %v2989
  %v3133 = vpop.f32.mrb[0].mxu0
  %v3134 = vadd.f32 %v2945, %v3133
  %v3135 = vpop.f32.mrb[0].mxu0
  %3136 = vmatprep.mubr.f32.mxu0 0.0
  %3137 = vmatmul.mubr.f32.gmra.mrb[0].mxu0 %v2992
  %v3138 = vpop.f32.mrb[0].mxu0
  %v3139 = vadd.f32 %v2945, %v3138
  %v3140 = vpop.f32.mrb[0].mxu0
  %3141 = vdwg.mxu0
  %3158 = vrot.lane.b32.xlu0 %v3064, 4
  %v3159 = vpop.permute.xlu0 %3158
  %3160 = vrot.lane.b32.xlu0 %v3069, 4
  %v3161 = vpop.permute.xlu0 %3160
  %3162 = vrot.lane.b32.xlu0 %v3074, 4
  %v3163 = vpop.permute.xlu0 %3162
  %3164 = vrot.lane.b32.xlu0 %v3079, 4
  %v3165 = vpop.permute.xlu0 %3164
  %3166 = vrot.lane.b32.xlu0 %v3084, 4
  %v3167 = vpop.permute.xlu0 %3166
  %3168 = vrot.lane.b32.xlu0 %v3089, 4
  %v3169 = vpop.permute.xlu0 %3168
  %3170 = vrot.lane.b32.xlu0 %v3094, 4
  %v3171 = vpop.permute.xlu0 %3170
  %3172 = vrot.lane.b32.xlu0 %v3099, 4
  %v3173 = vpop.permute.xlu0 %3172
  %3174 = vrot.lane.b32.xlu0 %v3104, 4
  %v3175 = vpop.permute.xlu0 %3174
  %3176 = vrot.lane.b32.xlu0 %v3109, 4
  %v3177 = vpop.permute.xlu0 %3176
  %3178 = vrot.lane.b32.xlu0 %v3114, 4
  %v3179 = vpop.permute.xlu0 %3178
  %3180 = vrot.lane.b32.xlu0 %v3119, 4
  %v3181 = vpop.permute.xlu0 %3180
  %3182 = vrot.lane.b32.xlu0 %v3124, 4
  %v3183 = vpop.permute.xlu0 %3182
  %3184 = vrot.lane.b32.xlu0 %v3129, 4
  %v3185 = vpop.permute.xlu0 %3184
  %3186 = vrot.lane.b32.xlu0 %v3134, 4
  %v3187 = vpop.permute.xlu0 %3186
  %3188 = vrot.lane.b32.xlu0 %v3139, 4
  %v3189 = vpop.permute.xlu0 %3188
  %vm3206 = vcmask 39968
  %3207 = vst.msk [vmem:[%s2] sm:$0xff] %vm3206, %v3159
  %3208 = vst.msk [vmem:[%s2 + $0x8] sm:$0xff] %vm3206, %v3161
  %3209 = vst.msk [vmem:[%s2 + $0x10] sm:$0xff] %vm3206, %v3163
  %3210 = vst.msk [vmem:[%s2 + $0x18] sm:$0xff] %vm3206, %v3165
  %3211 = vst.msk [vmem:[%s2 + $0x20] sm:$0xff] %vm3206, %v3167
  %3212 = vst.msk [vmem:[%s2 + $0x28] sm:$0xff] %vm3206, %v3169
  %3213 = vst.msk [vmem:[%s2 + $0x30] sm:$0xff] %vm3206, %v3171
  %3214 = vst.msk [vmem:[%s2 + $0x38] sm:$0xff] %vm3206, %v3173
  %3215 = vst.msk [vmem:[%s2 + $0x40] sm:$0xff] %vm3206, %v3175
  %3216 = vst.msk [vmem:[%s2 + $0x48] sm:$0xff] %vm3206, %v3177
  %3217 = vst.msk [vmem:[%s2 + $0x50] sm:$0xff] %vm3206, %v3179
  %3218 = vst.msk [vmem:[%s2 + $0x58] sm:$0xff] %vm3206, %v3181
  %3219 = vst.msk [vmem:[%s2 + $0x60] sm:$0xff] %vm3206, %v3183
  %3220 = vst.msk [vmem:[%s2 + $0x68] sm:$0xff] %vm3206, %v3185
  %3221 = vst.msk [vmem:[%s2 + $0x70] sm:$0xff] %vm3206, %v3187
  %3222 = vst.msk [vmem:[%s2 + $0x78] sm:$0xff] %vm3206, %v3189
  %v3223 = vadd.f32 %v1857, %v3064
  %v3224 = vadd.f32 %v1858, %v3069
  %v3225 = vadd.f32 %v1859, %v3074
  %v3226 = vadd.f32 %v1860, %v3079
  %v3227 = vadd.f32 %v1861, %v3084
  %v3228 = vadd.f32 %v1862, %v3089
  %v3229 = vadd.f32 %v1863, %v3094
  %v3230 = vadd.f32 %v1864, %v3099
  %v3231 = vadd.f32 %v1865, %v3104
  %v3232 = vadd.f32 %v1866, %v3109
  %v3233 = vadd.f32 %v1867, %v3114
  %v3234 = vadd.f32 %v1868, %v3119
  %v3235 = vadd.f32 %v1869, %v3124
  %v3236 = vadd.f32 %v1870, %v3129
  %v3237 = vadd.f32 %v1871, %v3134
  %v3238 = vadd.f32 %v1872, %v3139
  %v3239 = vrcp.pop 13.0
  %v3240 = vmul.f32 %v3223, %v3239
  %v3241 = vmul.f32 %v3224, %v3239
  %v3242 = vmul.f32 %v3225, %v3239
  %v3243 = vmul.f32 %v3226, %v3239
  %v3244 = vmul.f32 %v3227, %v3239
  %v3245 = vmul.f32 %v3228, %v3239
  %v3246 = vmul.f32 %v3229, %v3239
  %v3247 = vmul.f32 %v3230, %v3239
  %v3248 = vmul.f32 %v3231, %v3239
  %v3249 = vmul.f32 %v3232, %v3239
  %v3250 = vmul.f32 %v3233, %v3239
  %v3251 = vmul.f32 %v3234, %v3239
  %v3252 = vmul.f32 %v3235, %v3239
  %v3253 = vmul.f32 %v3236, %v3239
  %v3254 = vmul.f32 %v3237, %v3239
  %v3255 = vmul.f32 %v3238, %v3239
  %3257 = vset.pattern.permute.xlu0 0
  %3258 = vperm.xlu0 %3257, %v3240
  %v3259 = vpop.permute.xlu0 %3258
  %3262 = vset.pattern.permute.xlu0 0
  %3263 = vperm.xlu0 %3262, %v3241
  %v3264 = vpop.permute.xlu0 %3263
  %3267 = vset.pattern.permute.xlu0 0
  %3268 = vperm.xlu0 %3267, %v3242
  %v3269 = vpop.permute.xlu0 %3268
  %3272 = vset.pattern.permute.xlu0 0
  %3273 = vperm.xlu0 %3272, %v3243
  %v3274 = vpop.permute.xlu0 %3273
  %3277 = vset.pattern.permute.xlu0 0
  %3278 = vperm.xlu0 %3277, %v3244
  %v3279 = vpop.permute.xlu0 %3278
  %3282 = vset.pattern.permute.xlu0 0
  %3283 = vperm.xlu0 %3282, %v3245
  %v3284 = vpop.permute.xlu0 %3283
  %3287 = vset.pattern.permute.xlu0 0
  %3288 = vperm.xlu0 %3287, %v3246
  %v3289 = vpop.permute.xlu0 %3288
  %3292 = vset.pattern.permute.xlu0 0
  %3293 = vperm.xlu0 %3292, %v3247
  %v3294 = vpop.permute.xlu0 %3293
  %3297 = vset.pattern.permute.xlu0 0
  %3298 = vperm.xlu0 %3297, %v3248
  %v3299 = vpop.permute.xlu0 %3298
  %3302 = vset.pattern.permute.xlu0 0
  %3303 = vperm.xlu0 %3302, %v3249
  %v3304 = vpop.permute.xlu0 %3303
  %3307 = vset.pattern.permute.xlu0 0
  %3308 = vperm.xlu0 %3307, %v3250
  %v3309 = vpop.permute.xlu0 %3308
  %3312 = vset.pattern.permute.xlu0 0
  %3313 = vperm.xlu0 %3312, %v3251
  %v3314 = vpop.permute.xlu0 %3313
  %3317 = vset.pattern.permute.xlu0 0
  %3318 = vperm.xlu0 %3317, %v3252
  %v3319 = vpop.permute.xlu0 %3318
  %3322 = vset.pattern.permute.xlu0 0
  %3323 = vperm.xlu0 %3322, %v3253
  %v3324 = vpop.permute.xlu0 %3323
  %3327 = vset.pattern.permute.xlu0 0
  %3328 = vperm.xlu0 %3327, %v3254
  %v3329 = vpop.permute.xlu0 %3328
  %3332 = vset.pattern.permute.xlu0 0
  %3333 = vperm.xlu0 %3332, %v3255
  %v3334 = vpop.permute.xlu0 %3333
  %v3336 = vsub.f32 %v663, %v3259
  %v3337 = vsub.f32 %v664, %v3264
  %v3338 = vsub.f32 %v665, %v3269
  %v3339 = vsub.f32 %v666, %v3274
  %v3340 = vsub.f32 %v667, %v3279
  %v3341 = vsub.f32 %v668, %v3284
  %v3342 = vsub.f32 %v669, %v3289
  %v3343 = vsub.f32 %v670, %v3294
  %v3344 = vsub.f32 %v671, %v3299
  %v3345 = vsub.f32 %v672, %v3304
  %v3346 = vsub.f32 %v673, %v3309
  %v3347 = vsub.f32 %v674, %v3314
  %v3348 = vsub.f32 %v675, %v3319
  %v3349 = vsub.f32 %v676, %v3324
  %v3350 = vsub.f32 %v677, %v3329
  %v3351 = vsub.f32 %v678, %v3334
  %v3352 = vsub.f32 %v1793, %v3259
  %v3353 = vsub.f32 %v1794, %v3264
  %v3354 = vsub.f32 %v1795, %v3269
  %v3355 = vsub.f32 %v1796, %v3274
  %v3356 = vsub.f32 %v1797, %v3279
  %v3357 = vsub.f32 %v1798, %v3284
  %v3358 = vsub.f32 %v1799, %v3289
  %v3359 = vsub.f32 %v1800, %v3294
  %v3360 = vsub.f32 %v1801, %v3299
  %v3361 = vsub.f32 %v1802, %v3304
  %v3362 = vsub.f32 %v1803, %v3309
  %v3363 = vsub.f32 %v1804, %v3314
  %v3364 = vsub.f32 %v1805, %v3319
  %v3365 = vsub.f32 %v1806, %v3324
  %v3366 = vsub.f32 %v1807, %v3329
  %v3367 = vsub.f32 %v1808, %v3334
  %v3368 = vsub.f32 %v3064, %v3240
  %v3369 = vsub.f32 %v3069, %v3241
  %v3370 = vsub.f32 %v3074, %v3242
  %v3371 = vsub.f32 %v3079, %v3243
  %v3372 = vsub.f32 %v3084, %v3244
  %v3373 = vsub.f32 %v3089, %v3245
  %v3374 = vsub.f32 %v3094, %v3246
  %v3375 = vsub.f32 %v3099, %v3247
  %v3376 = vsub.f32 %v3104, %v3248
  %v3377 = vsub.f32 %v3109, %v3249
  %v3378 = vsub.f32 %v3114, %v3250
  %v3379 = vsub.f32 %v3119, %v3251
  %v3380 = vsub.f32 %v3124, %v3252
  %v3381 = vsub.f32 %v3129, %v3253
  %v3382 = vsub.f32 %v3134, %v3254
  %v3383 = vsub.f32 %v3139, %v3255
  %v3384 = vmul.f32 %v3336, %v3336
  %v3385 = vmul.f32 %v3337, %v3337
  %v3386 = vmul.f32 %v3338, %v3338
  %v3387 = vmul.f32 %v3339, %v3339
  %v3388 = vmul.f32 %v3340, %v3340
  %v3389 = vmul.f32 %v3341, %v3341
  %v3390 = vmul.f32 %v3342, %v3342
  %v3391 = vmul.f32 %v3343, %v3343
  %v3392 = vmul.f32 %v3344, %v3344
  %v3393 = vmul.f32 %v3345, %v3345
  %v3394 = vmul.f32 %v3346, %v3346
  %v3395 = vmul.f32 %v3347, %v3347
  %v3396 = vmul.f32 %v3348, %v3348
  %v3397 = vmul.f32 %v3349, %v3349
  %v3398 = vmul.f32 %v3350, %v3350
  %v3399 = vmul.f32 %v3351, %v3351
  %v3400 = vsel %vm681, %v3384, 0.0
  %3401 = vadd.xlane.f32.xlu0 %v3400
  %v3402 = vpop.xlane.xlu0 %3401
  %v3403 = vsel %vm681, %v3385, 0.0
  %3404 = vadd.xlane.f32.xlu0 %v3403
  %v3405 = vpop.xlane.xlu0 %3404
  %v3406 = vsel %vm681, %v3386, 0.0
  %3407 = vadd.xlane.f32.xlu0 %v3406
  %v3408 = vpop.xlane.xlu0 %3407
  %v3409 = vsel %vm681, %v3387, 0.0
  %3410 = vadd.xlane.f32.xlu0 %v3409
  %v3411 = vpop.xlane.xlu0 %3410
  %v3412 = vsel %vm681, %v3388, 0.0
  %3413 = vadd.xlane.f32.xlu0 %v3412
  %v3414 = vpop.xlane.xlu0 %3413
  %v3415 = vsel %vm681, %v3389, 0.0
  %3416 = vadd.xlane.f32.xlu0 %v3415
  %v3417 = vpop.xlane.xlu0 %3416
  %v3418 = vsel %vm681, %v3390, 0.0
  %3419 = vadd.xlane.f32.xlu0 %v3418
  %v3420 = vpop.xlane.xlu0 %3419
  %v3421 = vsel %vm681, %v3391, 0.0
  %3422 = vadd.xlane.f32.xlu0 %v3421
  %v3423 = vpop.xlane.xlu0 %3422
  %v3424 = vsel %vm681, %v3392, 0.0
  %3425 = vadd.xlane.f32.xlu0 %v3424
  %v3426 = vpop.xlane.xlu0 %3425
  %v3427 = vsel %vm681, %v3393, 0.0
  %3428 = vadd.xlane.f32.xlu0 %v3427
  %v3429 = vpop.xlane.xlu0 %3428
  %v3430 = vsel %vm681, %v3394, 0.0
  %3431 = vadd.xlane.f32.xlu0 %v3430
  %v3432 = vpop.xlane.xlu0 %3431
  %v3433 = vsel %vm681, %v3395, 0.0
  %3434 = vadd.xlane.f32.xlu0 %v3433
  %v3435 = vpop.xlane.xlu0 %3434
  %v3436 = vsel %vm681, %v3396, 0.0
  %3437 = vadd.xlane.f32.xlu0 %v3436
  %v3438 = vpop.xlane.xlu0 %3437
  %v3439 = vsel %vm681, %v3397, 0.0
  %3440 = vadd.xlane.f32.xlu0 %v3439
  %v3441 = vpop.xlane.xlu0 %3440
  %v3442 = vsel %vm681, %v3398, 0.0
  %3443 = vadd.xlane.f32.xlu0 %v3442
  %v3444 = vpop.xlane.xlu0 %3443
  %v3445 = vsel %vm681, %v3399, 0.0
  %3446 = vadd.xlane.f32.xlu0 %v3445
  %v3447 = vpop.xlane.xlu0 %3446
  %v3448 = vmul.f32 %v3352, %v3352
  %v3449 = vmul.f32 %v3353, %v3353
  %v3450 = vmul.f32 %v3354, %v3354
  %v3451 = vmul.f32 %v3355, %v3355
  %v3452 = vmul.f32 %v3356, %v3356
  %v3453 = vmul.f32 %v3357, %v3357
  %v3454 = vmul.f32 %v3358, %v3358
  %v3455 = vmul.f32 %v3359, %v3359
  %v3456 = vmul.f32 %v3360, %v3360
  %v3457 = vmul.f32 %v3361, %v3361
  %v3458 = vmul.f32 %v3362, %v3362
  %v3459 = vmul.f32 %v3363, %v3363
  %v3460 = vmul.f32 %v3364, %v3364
  %v3461 = vmul.f32 %v3365, %v3365
  %v3462 = vmul.f32 %v3366, %v3366
  %v3463 = vmul.f32 %v3367, %v3367
  %v3464 = vsel %vm1148, %v3448, 0.0
  %3465 = vadd.xlane.f32.xlu0 %v3464
  %v3466 = vpop.xlane.xlu0 %3465
  %v3467 = vsel %vm1148, %v3449, 0.0
  %3468 = vadd.xlane.f32.xlu0 %v3467
  %v3469 = vpop.xlane.xlu0 %3468
  %v3470 = vsel %vm1148, %v3450, 0.0
  %3471 = vadd.xlane.f32.xlu0 %v3470
  %v3472 = vpop.xlane.xlu0 %3471
  %v3473 = vsel %vm1148, %v3451, 0.0
  %3474 = vadd.xlane.f32.xlu0 %v3473
  %v3475 = vpop.xlane.xlu0 %3474
  %v3476 = vsel %vm1148, %v3452, 0.0
  %3477 = vadd.xlane.f32.xlu0 %v3476
  %v3478 = vpop.xlane.xlu0 %3477
  %v3479 = vsel %vm1148, %v3453, 0.0
  %3480 = vadd.xlane.f32.xlu0 %v3479
  %v3481 = vpop.xlane.xlu0 %3480
  %v3482 = vsel %vm1148, %v3454, 0.0
  %3483 = vadd.xlane.f32.xlu0 %v3482
  %v3484 = vpop.xlane.xlu0 %3483
  %v3485 = vsel %vm1148, %v3455, 0.0
  %3486 = vadd.xlane.f32.xlu0 %v3485
  %v3487 = vpop.xlane.xlu0 %3486
  %v3488 = vsel %vm1148, %v3456, 0.0
  %3489 = vadd.xlane.f32.xlu0 %v3488
  %v3490 = vpop.xlane.xlu0 %3489
  %v3491 = vsel %vm1148, %v3457, 0.0
  %3492 = vadd.xlane.f32.xlu0 %v3491
  %v3493 = vpop.xlane.xlu0 %3492
  %v3494 = vsel %vm1148, %v3458, 0.0
  %3495 = vadd.xlane.f32.xlu0 %v3494
  %v3496 = vpop.xlane.xlu0 %3495
  %v3497 = vsel %vm1148, %v3459, 0.0
  %3498 = vadd.xlane.f32.xlu0 %v3497
  %v3499 = vpop.xlane.xlu0 %3498
  %v3500 = vsel %vm1148, %v3460, 0.0
  %3501 = vadd.xlane.f32.xlu0 %v3500
  %v3502 = vpop.xlane.xlu0 %3501
  %v3503 = vsel %vm1148, %v3461, 0.0
  %3504 = vadd.xlane.f32.xlu0 %v3503
  %v3505 = vpop.xlane.xlu0 %3504
  %v3506 = vsel %vm1148, %v3462, 0.0
  %3507 = vadd.xlane.f32.xlu0 %v3506
  %v3508 = vpop.xlane.xlu0 %3507
  %v3509 = vsel %vm1148, %v3463, 0.0
  %3510 = vadd.xlane.f32.xlu0 %v3509
  %v3511 = vpop.xlane.xlu0 %3510
  %v3512 = vadd.f32 %v3402, %v3466
  %v3513 = vadd.f32 %v3405, %v3469
  %v3514 = vadd.f32 %v3408, %v3472
  %v3515 = vadd.f32 %v3411, %v3475
  %v3516 = vadd.f32 %v3414, %v3478
  %v3517 = vadd.f32 %v3417, %v3481
  %v3518 = vadd.f32 %v3420, %v3484
  %v3519 = vadd.f32 %v3423, %v3487
  %v3520 = vadd.f32 %v3426, %v3490
  %v3521 = vadd.f32 %v3429, %v3493
  %v3522 = vadd.f32 %v3432, %v3496
  %v3523 = vadd.f32 %v3435, %v3499
  %v3524 = vadd.f32 %v3438, %v3502
  %v3525 = vadd.f32 %v3441, %v3505
  %v3526 = vadd.f32 %v3444, %v3508
  %v3527 = vadd.f32 %v3447, %v3511
  %v3528 = vmul.f32 %v3368, %v3368
  %v3529 = vmul.f32 %v3369, %v3369
  %v3530 = vmul.f32 %v3370, %v3370
  %v3531 = vmul.f32 %v3371, %v3371
  %v3532 = vmul.f32 %v3372, %v3372
  %v3533 = vmul.f32 %v3373, %v3373
  %v3534 = vmul.f32 %v3374, %v3374
  %v3535 = vmul.f32 %v3375, %v3375
  %v3536 = vmul.f32 %v3376, %v3376
  %v3537 = vmul.f32 %v3377, %v3377
  %v3538 = vmul.f32 %v3378, %v3378
  %v3539 = vmul.f32 %v3379, %v3379
  %v3540 = vmul.f32 %v3380, %v3380
  %v3541 = vmul.f32 %v3381, %v3381
  %v3542 = vmul.f32 %v3382, %v3382
  %v3543 = vmul.f32 %v3383, %v3383
  %v3544 = vadd.f32 %v3512, %v3528
  %v3545 = vadd.f32 %v3513, %v3529
  %v3546 = vadd.f32 %v3514, %v3530
  %v3547 = vadd.f32 %v3515, %v3531
  %v3548 = vadd.f32 %v3516, %v3532
  %v3549 = vadd.f32 %v3517, %v3533
  %v3550 = vadd.f32 %v3518, %v3534
  %v3551 = vadd.f32 %v3519, %v3535
  %v3552 = vadd.f32 %v3520, %v3536
  %v3553 = vadd.f32 %v3521, %v3537
  %v3554 = vadd.f32 %v3522, %v3538
  %v3555 = vadd.f32 %v3523, %v3539
  %v3556 = vadd.f32 %v3524, %v3540
  %v3557 = vadd.f32 %v3525, %v3541
  %v3558 = vadd.f32 %v3526, %v3542
  %v3559 = vadd.f32 %v3527, %v3543
  %v3560 = vmul.f32 %v3544, %v3239
  %v3561 = vmul.f32 %v3545, %v3239
  %v3562 = vmul.f32 %v3546, %v3239
  %v3563 = vmul.f32 %v3547, %v3239
  %v3564 = vmul.f32 %v3548, %v3239
  %v3565 = vmul.f32 %v3549, %v3239
  %v3566 = vmul.f32 %v3550, %v3239
  %v3567 = vmul.f32 %v3551, %v3239
  %v3568 = vmul.f32 %v3552, %v3239
  %v3569 = vmul.f32 %v3553, %v3239
  %v3570 = vmul.f32 %v3554, %v3239
  %v3571 = vmul.f32 %v3555, %v3239
  %v3572 = vmul.f32 %v3556, %v3239
  %v3573 = vmul.f32 %v3557, %v3239
  %v3574 = vmul.f32 %v3558, %v3239
  %v3575 = vmul.f32 %v3559, %v3239
  %v3576 = vadd.f32 %v3560, 1e-05
  %v3577 = vadd.f32 %v3561, 1e-05
  %v3578 = vadd.f32 %v3562, 1e-05
  %v3579 = vadd.f32 %v3563, 1e-05
  %v3580 = vadd.f32 %v3564, 1e-05
  %v3581 = vadd.f32 %v3565, 1e-05
  %v3582 = vadd.f32 %v3566, 1e-05
  %v3583 = vadd.f32 %v3567, 1e-05
  %v3584 = vadd.f32 %v3568, 1e-05
  %v3585 = vadd.f32 %v3569, 1e-05
  %v3586 = vadd.f32 %v3570, 1e-05
  %v3587 = vadd.f32 %v3571, 1e-05
  %v3588 = vadd.f32 %v3572, 1e-05
  %v3589 = vadd.f32 %v3573, 1e-05
  %v3590 = vadd.f32 %v3574, 1e-05
  %v3591 = vadd.f32 %v3575, 1e-05
  %v3592 = vrsqrt.pop %v3576
  %v3593 = vrsqrt.pop %v3577
  %v3594 = vrsqrt.pop %v3578
  %v3595 = vrsqrt.pop %v3579
  %v3596 = vrsqrt.pop %v3580
  %v3597 = vrsqrt.pop %v3581
  %v3598 = vrsqrt.pop %v3582
  %v3599 = vrsqrt.pop %v3583
  %v3600 = vrsqrt.pop %v3584
  %v3601 = vrsqrt.pop %v3585
  %v3602 = vrsqrt.pop %v3586
  %v3603 = vrsqrt.pop %v3587
  %v3604 = vrsqrt.pop %v3588
  %v3605 = vrsqrt.pop %v3589
  %v3606 = vrsqrt.pop %v3590
  %v3607 = vrsqrt.pop %v3591
  %3609 = vset.pattern.permute.xlu0 0
  %3610 = vperm.xlu0 %3609, %v3592
  %v3611 = vpop.permute.xlu0 %3610
  %3614 = vset.pattern.permute.xlu0 0
  %3615 = vperm.xlu0 %3614, %v3593
  %v3616 = vpop.permute.xlu0 %3615
  %3619 = vset.pattern.permute.xlu0 0
  %3620 = vperm.xlu0 %3619, %v3594
  %v3621 = vpop.permute.xlu0 %3620
  %3624 = vset.pattern.permute.xlu0 0
  %3625 = vperm.xlu0 %3624, %v3595
  %v3626 = vpop.permute.xlu0 %3625
  %3629 = vset.pattern.permute.xlu0 0
  %3630 = vperm.xlu0 %3629, %v3596
  %v3631 = vpop.permute.xlu0 %3630
  %3634 = vset.pattern.permute.xlu0 0
  %3635 = vperm.xlu0 %3634, %v3597
  %v3636 = vpop.permute.xlu0 %3635
  %3639 = vset.pattern.permute.xlu0 0
  %3640 = vperm.xlu0 %3639, %v3598
  %v3641 = vpop.permute.xlu0 %3640
  %3644 = vset.pattern.permute.xlu0 0
  %3645 = vperm.xlu0 %3644, %v3599
  %v3646 = vpop.permute.xlu0 %3645
  %3649 = vset.pattern.permute.xlu0 0
  %3650 = vperm.xlu0 %3649, %v3600
  %v3651 = vpop.permute.xlu0 %3650
  %3654 = vset.pattern.permute.xlu0 0
  %3655 = vperm.xlu0 %3654, %v3601
  %v3656 = vpop.permute.xlu0 %3655
  %3659 = vset.pattern.permute.xlu0 0
  %3660 = vperm.xlu0 %3659, %v3602
  %v3661 = vpop.permute.xlu0 %3660
  %3664 = vset.pattern.permute.xlu0 0
  %3665 = vperm.xlu0 %3664, %v3603
  %v3666 = vpop.permute.xlu0 %3665
  %3669 = vset.pattern.permute.xlu0 0
  %3670 = vperm.xlu0 %3669, %v3604
  %v3671 = vpop.permute.xlu0 %3670
  %3674 = vset.pattern.permute.xlu0 0
  %3675 = vperm.xlu0 %3674, %v3605
  %v3676 = vpop.permute.xlu0 %3675
  %3679 = vset.pattern.permute.xlu0 0
  %3680 = vperm.xlu0 %3679, %v3606
  %v3681 = vpop.permute.xlu0 %3680
  %3684 = vset.pattern.permute.xlu0 0
  %3685 = vperm.xlu0 %3684, %v3607
  %v3686 = vpop.permute.xlu0 %3685
  %v3688 = vmul.f32 %v3336, %v3611
  %v3689 = vmul.f32 %v3337, %v3616
  %v3690 = vmul.f32 %v3338, %v3621
  %v3691 = vmul.f32 %v3339, %v3626
  %v3692 = vmul.f32 %v3340, %v3631
  %v3693 = vmul.f32 %v3341, %v3636
  %v3694 = vmul.f32 %v3342, %v3641
  %v3695 = vmul.f32 %v3343, %v3646
  %v3696 = vmul.f32 %v3344, %v3651
  %v3697 = vmul.f32 %v3345, %v3656
  %v3698 = vmul.f32 %v3346, %v3661
  %v3699 = vmul.f32 %v3347, %v3666
  %v3700 = vmul.f32 %v3348, %v3671
  %v3701 = vmul.f32 %v3349, %v3676
  %v3702 = vmul.f32 %v3350, %v3681
  %v3703 = vmul.f32 %v3351, %v3686
  %v3704 = vld [vmem:[%s1 + $0xf0] sm:$0x1]
  %v3705 = vlaneseq
  %v3706 = vshrl.u32 %v3705, 7
  %v3707 = vsub.s32 0, %v3706
  %v3708 = vrot.slane %v3704, %v3707
  %v3709 = vmul.f32 %v3688, %v3708
  %v3710 = vmul.f32 %v3689, %v3708
  %v3711 = vmul.f32 %v3690, %v3708
  %v3712 = vmul.f32 %v3691, %v3708
  %v3713 = vmul.f32 %v3692, %v3708
  %v3714 = vmul.f32 %v3693, %v3708
  %v3715 = vmul.f32 %v3694, %v3708
  %v3716 = vmul.f32 %v3695, %v3708
  %v3717 = vmul.f32 %v3696, %v3708
  %v3718 = vmul.f32 %v3697, %v3708
  %v3719 = vmul.f32 %v3698, %v3708
  %v3720 = vmul.f32 %v3699, %v3708
  %v3721 = vmul.f32 %v3700, %v3708
  %v3722 = vmul.f32 %v3701, %v3708
  %v3723 = vmul.f32 %v3702, %v3708
  %v3724 = vmul.f32 %v3703, %v3708
  %v3725 = vld [vmem:[%s1 + $0x108] sm:$0x1]
  %v3726 = vlaneseq
  %v3727 = vshrl.u32 %v3726, 7
  %v3728 = vsub.s32 0, %v3727
  %v3729 = vrot.slane %v3725, %v3728
  %v3730 = vadd.f32 %v3709, %v3729
  %v3731 = vadd.f32 %v3710, %v3729
  %v3732 = vadd.f32 %v3711, %v3729
  %v3733 = vadd.f32 %v3712, %v3729
  %v3734 = vadd.f32 %v3713, %v3729
  %v3735 = vadd.f32 %v3714, %v3729
  %v3736 = vadd.f32 %v3715, %v3729
  %v3737 = vadd.f32 %v3716, %v3729
  %v3738 = vadd.f32 %v3717, %v3729
  %v3739 = vadd.f32 %v3718, %v3729
  %v3740 = vadd.f32 %v3719, %v3729
  %v3741 = vadd.f32 %v3720, %v3729
  %v3742 = vadd.f32 %v3721, %v3729
  %v3743 = vadd.f32 %v3722, %v3729
  %v3744 = vadd.f32 %v3723, %v3729
  %v3745 = vadd.f32 %v3724, %v3729
  %v3746 = vmax.f32 %v3730, 0.0
  %v3747 = vmax.f32 %v3731, 0.0
  %v3748 = vmax.f32 %v3732, 0.0
  %v3749 = vmax.f32 %v3733, 0.0
  %v3750 = vmax.f32 %v3734, 0.0
  %v3751 = vmax.f32 %v3735, 0.0
  %v3752 = vmax.f32 %v3736, 0.0
  %v3753 = vmax.f32 %v3737, 0.0
  %v3754 = vmax.f32 %v3738, 0.0
  %v3755 = vmax.f32 %v3739, 0.0
  %v3756 = vmax.f32 %v3740, 0.0
  %v3757 = vmax.f32 %v3741, 0.0
  %v3758 = vmax.f32 %v3742, 0.0
  %v3759 = vmax.f32 %v3743, 0.0
  %v3760 = vmax.f32 %v3744, 0.0
  %v3761 = vmax.f32 %v3745, 0.0
  %v3762 = vmul.f32 %v3352, %v3611
  %v3763 = vmul.f32 %v3353, %v3616
  %v3764 = vmul.f32 %v3354, %v3621
  %v3765 = vmul.f32 %v3355, %v3626
  %v3766 = vmul.f32 %v3356, %v3631
  %v3767 = vmul.f32 %v3357, %v3636
  %v3768 = vmul.f32 %v3358, %v3641
  %v3769 = vmul.f32 %v3359, %v3646
  %v3770 = vmul.f32 %v3360, %v3651
  %v3771 = vmul.f32 %v3361, %v3656
  %v3772 = vmul.f32 %v3362, %v3661
  %v3773 = vmul.f32 %v3363, %v3666
  %v3774 = vmul.f32 %v3364, %v3671
  %v3775 = vmul.f32 %v3365, %v3676
  %v3776 = vmul.f32 %v3366, %v3681
  %v3777 = vmul.f32 %v3367, %v3686
  %v3778 = vld [vmem:[%s1 + $0xf8] sm:$0x1]
  %v3779 = vlaneseq
  %v3780 = vshrl.u32 %v3779, 7
  %v3781 = vsub.s32 0, %v3780
  %v3782 = vrot.slane %v3778, %v3781
  %v3783 = vmul.f32 %v3762, %v3782
  %v3784 = vmul.f32 %v3763, %v3782
  %v3785 = vmul.f32 %v3764, %v3782
  %v3786 = vmul.f32 %v3765, %v3782
  %v3787 = vmul.f32 %v3766, %v3782
  %v3788 = vmul.f32 %v3767, %v3782
  %v3789 = vmul.f32 %v3768, %v3782
  %v3790 = vmul.f32 %v3769, %v3782
  %v3791 = vmul.f32 %v3770, %v3782
  %v3792 = vmul.f32 %v3771, %v3782
  %v3793 = vmul.f32 %v3772, %v3782
  %v3794 = vmul.f32 %v3773, %v3782
  %v3795 = vmul.f32 %v3774, %v3782
  %v3796 = vmul.f32 %v3775, %v3782
  %v3797 = vmul.f32 %v3776, %v3782
  %v3798 = vmul.f32 %v3777, %v3782
  %v3799 = vld [vmem:[%s1 + $0x110] sm:$0x1]
  %v3800 = vlaneseq
  %v3801 = vshrl.u32 %v3800, 7
  %v3802 = vsub.s32 0, %v3801
  %v3803 = vrot.slane %v3799, %v3802
  %v3804 = vadd.f32 %v3783, %v3803
  %v3805 = vadd.f32 %v3784, %v3803
  %v3806 = vadd.f32 %v3785, %v3803
  %v3807 = vadd.f32 %v3786, %v3803
  %v3808 = vadd.f32 %v3787, %v3803
  %v3809 = vadd.f32 %v3788, %v3803
  %v3810 = vadd.f32 %v3789, %v3803
  %v3811 = vadd.f32 %v3790, %v3803
  %v3812 = vadd.f32 %v3791, %v3803
  %v3813 = vadd.f32 %v3792, %v3803
  %v3814 = vadd.f32 %v3793, %v3803
  %v3815 = vadd.f32 %v3794, %v3803
  %v3816 = vadd.f32 %v3795, %v3803
  %v3817 = vadd.f32 %v3796, %v3803
  %v3818 = vadd.f32 %v3797, %v3803
  %v3819 = vadd.f32 %v3798, %v3803
  %v3820 = vmax.f32 %v3804, 0.0
  %v3821 = vmax.f32 %v3805, 0.0
  %v3822 = vmax.f32 %v3806, 0.0
  %v3823 = vmax.f32 %v3807, 0.0
  %v3824 = vmax.f32 %v3808, 0.0
  %v3825 = vmax.f32 %v3809, 0.0
  %v3826 = vmax.f32 %v3810, 0.0
  %v3827 = vmax.f32 %v3811, 0.0
  %v3828 = vmax.f32 %v3812, 0.0
  %v3829 = vmax.f32 %v3813, 0.0
  %v3830 = vmax.f32 %v3814, 0.0
  %v3831 = vmax.f32 %v3815, 0.0
  %v3832 = vmax.f32 %v3816, 0.0
  %v3833 = vmax.f32 %v3817, 0.0
  %v3834 = vmax.f32 %v3818, 0.0
  %v3835 = vmax.f32 %v3819, 0.0
  %v3836 = vmul.f32 %v3368, %v3592
  %v3837 = vmul.f32 %v3369, %v3593
  %v3838 = vmul.f32 %v3370, %v3594
  %v3839 = vmul.f32 %v3371, %v3595
  %v3840 = vmul.f32 %v3372, %v3596
  %v3841 = vmul.f32 %v3373, %v3597
  %v3842 = vmul.f32 %v3374, %v3598
  %v3843 = vmul.f32 %v3375, %v3599
  %v3844 = vmul.f32 %v3376, %v3600
  %v3845 = vmul.f32 %v3377, %v3601
  %v3846 = vmul.f32 %v3378, %v3602
  %v3847 = vmul.f32 %v3379, %v3603
  %v3848 = vmul.f32 %v3380, %v3604
  %v3849 = vmul.f32 %v3381, %v3605
  %v3850 = vmul.f32 %v3382, %v3606
  %v3851 = vmul.f32 %v3383, %v3607
  %v3852 = vld [vmem:[%s1 + $0x100] sm:$0x1]
  %v3853 = vlaneseq
  %v3854 = vshrl.u32 %v3853, 7
  %v3855 = vsub.s32 0, %v3854
  %v3856 = vrot.slane %v3852, %v3855
  %v3857 = vmul.f32 %v3836, %v3856
  %v3858 = vmul.f32 %v3837, %v3856
  %v3859 = vmul.f32 %v3838, %v3856
  %v3860 = vmul.f32 %v3839, %v3856
  %v3861 = vmul.f32 %v3840, %v3856
  %v3862 = vmul.f32 %v3841, %v3856
  %v3863 = vmul.f32 %v3842, %v3856
  %v3864 = vmul.f32 %v3843, %v3856
  %v3865 = vmul.f32 %v3844, %v3856
  %v3866 = vmul.f32 %v3845, %v3856
  %v3867 = vmul.f32 %v3846, %v3856
  %v3868 = vmul.f32 %v3847, %v3856
  %v3869 = vmul.f32 %v3848, %v3856
  %v3870 = vmul.f32 %v3849, %v3856
  %v3871 = vmul.f32 %v3850, %v3856
  %v3872 = vmul.f32 %v3851, %v3856
  %v3873 = vld [vmem:[%s1 + $0x118] sm:$0x1]
  %v3874 = vlaneseq
  %v3875 = vshrl.u32 %v3874, 7
  %v3876 = vsub.s32 0, %v3875
  %v3877 = vrot.slane %v3873, %v3876
  %v3878 = vadd.f32 %v3857, %v3877
  %v3879 = vadd.f32 %v3858, %v3877
  %v3880 = vadd.f32 %v3859, %v3877
  %v3881 = vadd.f32 %v3860, %v3877
  %v3882 = vadd.f32 %v3861, %v3877
  %v3883 = vadd.f32 %v3862, %v3877
  %v3884 = vadd.f32 %v3863, %v3877
  %v3885 = vadd.f32 %v3864, %v3877
  %v3886 = vadd.f32 %v3865, %v3877
  %v3887 = vadd.f32 %v3866, %v3877
  %v3888 = vadd.f32 %v3867, %v3877
  %v3889 = vadd.f32 %v3868, %v3877
  %v3890 = vadd.f32 %v3869, %v3877
  %v3891 = vadd.f32 %v3870, %v3877
  %v3892 = vadd.f32 %v3871, %v3877
  %v3893 = vadd.f32 %v3872, %v3877
  %v3894 = vmax.f32 %v3878, 0.0
  %v3895 = vmax.f32 %v3879, 0.0
  %v3896 = vmax.f32 %v3880, 0.0
  %v3897 = vmax.f32 %v3881, 0.0
  %v3898 = vmax.f32 %v3882, 0.0
  %v3899 = vmax.f32 %v3883, 0.0
  %v3900 = vmax.f32 %v3884, 0.0
  %v3901 = vmax.f32 %v3885, 0.0
  %v3902 = vmax.f32 %v3886, 0.0
  %v3903 = vmax.f32 %v3887, 0.0
  %v3904 = vmax.f32 %v3888, 0.0
  %v3905 = vmax.f32 %v3889, 0.0
  %v3906 = vmax.f32 %v3890, 0.0
  %v3907 = vmax.f32 %v3891, 0.0
  %v3908 = vmax.f32 %v3892, 0.0
  %v3909 = vmax.f32 %v3893, 0.0
  %v3910 = vld [vmem:[%s1 + $0x120] sm:$0xff]
  %v3911 = vld [vmem:[%s1 + $0x128] sm:$0xf]
  %v3913 = vsel %vm1148, %v3820, 0
  %v3916 = vsel %vm1148, %v3821, 0
  %v3919 = vsel %vm1148, %v3822, 0
  %v3922 = vsel %vm1148, %v3823, 0
  %v3925 = vsel %vm1148, %v3824, 0
  %v3928 = vsel %vm1148, %v3825, 0
  %v3931 = vsel %vm1148, %v3826, 0
  %v3934 = vsel %vm1148, %v3827, 0
  %v3937 = vsel %vm1148, %v3828, 0
  %v3940 = vsel %vm1148, %v3829, 0
  %v3943 = vsel %vm1148, %v3830, 0
  %v3946 = vsel %vm1148, %v3831, 0
  %v3949 = vsel %vm1148, %v3832, 0
  %v3952 = vsel %vm1148, %v3833, 0
  %v3955 = vsel %vm1148, %v3834, 0
  %v3958 = vsel %vm1148, %v3835, 0
  %v3961 = vsel %vm1468, %v3911, 0
  %3963 = vmatprep.subr.mxu0 0.0
  %3964 = vmatpush1.msra.mxu0 %v3961
  %3965 = vmatprep.subr.mxu0 0.0
  %3966 = vmatpush1.msra.mxu0 0.0
  %3967 = vmatprep.subr.mxu0 0.0
  %3968 = vmatpush1.msra.mxu0 0.0
  %3969 = vmatprep.subr.mxu0 0.0
  %3970 = vmatpush1.msra.mxu0 0.0
  %3971 = vmatprep.subr.mxu0 0.0
  %3972 = vmatpush1.msra.mxu0 0.0
  %3973 = vmatprep.subr.mxu0 0.0
  %3974 = vmatpush1.msra.mxu0 0.0
  %3975 = vmatprep.subr.mxu0 0.0
  %3976 = vmatpush1.msra.mxu0 0.0
  %3977 = vmatprep.subr.mxu0 0.0
  %3978 = vmatpush1.msra.mxu0 0.0
  %3979 = vmatprep.subr.mxu0 0.0
  %3980 = vmatpush1.msra.mxu0 0.0
  %3981 = vmatprep.subr.mxu0 0.0
  %3982 = vmatpush1.msra.mxu0 0.0
  %3983 = vmatprep.subr.mxu0 0.0
  %3984 = vmatpush1.msra.mxu0 0.0
  %3985 = vmatprep.subr.mxu0 0.0
  %3986 = vmatpush1.msra.mxu0 0.0
  %3987 = vmatprep.subr.mxu0 0.0
  %3988 = vmatpush1.msra.mxu0 0.0
  %3989 = vmatprep.subr.mxu0 0.0
  %3990 = vmatpush1.msra.mxu0 0.0
  %3991 = vmatprep.subr.mxu0 0.0
  %3992 = vmatpush1.msra.mxu0 0.0
  %3993 = vmatprep.subr.mxu0 0.0
  %3994 = vmatpush1.msra.mxu0 0.0
  %3995 = vmatprep.subr.mxu0 0.0
  %3996 = vmatpush1.msra.mxu0 0.0
  %3997 = vmatprep.subr.mxu0 0.0
  %3998 = vmatpush1.msra.mxu0 0.0
  %3999 = vmatprep.subr.mxu0 0.0
  %4000 = vmatpush1.msra.mxu0 0.0
  %4001 = vmatprep.subr.mxu0 0.0
  %4002 = vmatpush1.msra.mxu0 0.0
  %4003 = vmatprep.subr.mxu0 0.0
  %4004 = vmatpush1.msra.mxu0 0.0
  %4005 = vmatprep.subr.mxu0 0.0
  %4006 = vmatpush1.msra.mxu0 0.0
  %4007 = vmatprep.subr.mxu0 0.0
  %4008 = vmatpush1.msra.mxu0 0.0
  %4009 = vmatprep.subr.mxu0 0.0
  %4010 = vmatpush1.msra.mxu0 0.0
  %4011 = vmatprep.subr.mxu0 0.0
  %4012 = vmatpush1.msra.mxu0 0.0
  %4013 = vmatprep.subr.mxu0 0.0
  %4014 = vmatpush1.msra.mxu0 0.0
  %4015 = vmatprep.subr.mxu0 0.0
  %4016 = vmatpush1.msra.mxu0 0.0
  %4017 = vmatprep.subr.mxu0 0.0
  %4018 = vmatpush1.msra.mxu0 0.0
  %4019 = vmatprep.subr.mxu0 0.0
  %4020 = vmatpush1.msra.mxu0 0.0
  %4021 = vmatprep.subr.mxu0 0.0
  %4022 = vmatpush1.msra.mxu0 0.0
  %4023 = vmatprep.subr.mxu0 0.0
  %4024 = vmatpush1.msra.mxu0 0.0
  %4025 = vmatprep.subr.mxu0 0.0
  %4026 = vmatpush1.msra.mxu0 0.0
  %4027 = vmatprep.mubr.f32.mxu0 0.0
  %4028 = vmatmul.mubr.f32.gmra.mrb[0].mxu0 %v3913
  %v4029 = vpop.f32.mrb[0].mxu0
  %v4030 = vadd.f32 0.0, %v4029
  %v4031 = vpop.f32.mrb[0].mxu0
  %4032 = vmatprep.mubr.f32.mxu0 0.0
  %4033 = vmatmul.mubr.f32.gmra.mrb[0].mxu0 %v3916
  %v4034 = vpop.f32.mrb[0].mxu0
  %v4035 = vadd.f32 0.0, %v4034
  %v4036 = vpop.f32.mrb[0].mxu0
  %4037 = vmatprep.mubr.f32.mxu0 0.0
  %4038 = vmatmul.mubr.f32.gmra.mrb[0].mxu0 %v3919
  %v4039 = vpop.f32.mrb[0].mxu0
  %v4040 = vadd.f32 0.0, %v4039
  %v4041 = vpop.f32.mrb[0].mxu0
  %4042 = vmatprep.mubr.f32.mxu0 0.0
  %4043 = vmatmul.mubr.f32.gmra.mrb[0].mxu0 %v3922
  %v4044 = vpop.f32.mrb[0].mxu0
  %v4045 = vadd.f32 0.0, %v4044
  %v4046 = vpop.f32.mrb[0].mxu0
  %4047 = vmatprep.mubr.f32.mxu0 0.0
  %4048 = vmatmul.mubr.f32.gmra.mrb[0].mxu0 %v3925
  %v4049 = vpop.f32.mrb[0].mxu0
  %v4050 = vadd.f32 0.0, %v4049
  %v4051 = vpop.f32.mrb[0].mxu0
  %4052 = vmatprep.mubr.f32.mxu0 0.0
  %4053 = vmatmul.mubr.f32.gmra.mrb[0].mxu0 %v3928
  %v4054 = vpop.f32.mrb[0].mxu0
  %v4055 = vadd.f32 0.0, %v4054
  %v4056 = vpop.f32.mrb[0].mxu0
  %4057 = vmatprep.mubr.f32.mxu0 0.0
  %4058 = vmatmul.mubr.f32.gmra.mrb[0].mxu0 %v3931
  %v4059 = vpop.f32.mrb[0].mxu0
  %v4060 = vadd.f32 0.0, %v4059
  %v4061 = vpop.f32.mrb[0].mxu0
  %4062 = vmatprep.mubr.f32.mxu0 0.0
  %4063 = vmatmul.mubr.f32.gmra.mrb[0].mxu0 %v3934
  %v4064 = vpop.f32.mrb[0].mxu0
  %v4065 = vadd.f32 0.0, %v4064
  %v4066 = vpop.f32.mrb[0].mxu0
  %4067 = vmatprep.mubr.f32.mxu0 0.0
  %4068 = vmatmul.mubr.f32.gmra.mrb[0].mxu0 %v3937
  %v4069 = vpop.f32.mrb[0].mxu0
  %v4070 = vadd.f32 0.0, %v4069
  %v4071 = vpop.f32.mrb[0].mxu0
  %4072 = vmatprep.mubr.f32.mxu0 0.0
  %4073 = vmatmul.mubr.f32.gmra.mrb[0].mxu0 %v3940
  %v4074 = vpop.f32.mrb[0].mxu0
  %v4075 = vadd.f32 0.0, %v4074
  %v4076 = vpop.f32.mrb[0].mxu0
  %4077 = vmatprep.mubr.f32.mxu0 0.0
  %4078 = vmatmul.mubr.f32.gmra.mrb[0].mxu0 %v3943
  %v4079 = vpop.f32.mrb[0].mxu0
  %v4080 = vadd.f32 0.0, %v4079
  %v4081 = vpop.f32.mrb[0].mxu0
  %4082 = vmatprep.mubr.f32.mxu0 0.0
  %4083 = vmatmul.mubr.f32.gmra.mrb[0].mxu0 %v3946
  %v4084 = vpop.f32.mrb[0].mxu0
  %v4085 = vadd.f32 0.0, %v4084
  %v4086 = vpop.f32.mrb[0].mxu0
  %4087 = vmatprep.mubr.f32.mxu0 0.0
  %4088 = vmatmul.mubr.f32.gmra.mrb[0].mxu0 %v3949
  %v4089 = vpop.f32.mrb[0].mxu0
  %v4090 = vadd.f32 0.0, %v4089
  %v4091 = vpop.f32.mrb[0].mxu0
  %4092 = vmatprep.mubr.f32.mxu0 0.0
  %4093 = vmatmul.mubr.f32.gmra.mrb[0].mxu0 %v3952
  %v4094 = vpop.f32.mrb[0].mxu0
  %v4095 = vadd.f32 0.0, %v4094
  %v4096 = vpop.f32.mrb[0].mxu0
  %4097 = vmatprep.mubr.f32.mxu0 0.0
  %4098 = vmatmul.mubr.f32.gmra.mrb[0].mxu0 %v3955
  %v4099 = vpop.f32.mrb[0].mxu0
  %v4100 = vadd.f32 0.0, %v4099
  %v4101 = vpop.f32.mrb[0].mxu0
  %4102 = vmatprep.mubr.f32.mxu0 0.0
  %4103 = vmatmul.mubr.f32.gmra.mrb[0].mxu0 %v3958
  %v4104 = vpop.f32.mrb[0].mxu0
  %v4105 = vadd.f32 0.0, %v4104
  %v4106 = vpop.f32.mrb[0].mxu0
  %4107 = vdwg.mxu0
  %v4109 = vsel %vm681, %v3746, 0
  %v4112 = vsel %vm681, %v3747, 0
  %v4115 = vsel %vm681, %v3748, 0
  %v4118 = vsel %vm681, %v3749, 0
  %v4121 = vsel %vm681, %v3750, 0
  %v4124 = vsel %vm681, %v3751, 0
  %v4127 = vsel %vm681, %v3752, 0
  %v4130 = vsel %vm681, %v3753, 0
  %v4133 = vsel %vm681, %v3754, 0
  %v4136 = vsel %vm681, %v3755, 0
  %v4139 = vsel %vm681, %v3756, 0
  %v4142 = vsel %vm681, %v3757, 0
  %v4145 = vsel %vm681, %v3758, 0
  %v4148 = vsel %vm681, %v3759, 0
  %v4151 = vsel %vm681, %v3760, 0
  %v4154 = vsel %vm681, %v3761, 0
  %4156 = vmatprep.subr.mxu0 0.0
  %4157 = vmatpush1.msra.mxu0 %v3910
  %4158 = vmatprep.subr.mxu0 0.0
  %4159 = vmatpush1.msra.mxu0 0.0
  %4160 = vmatprep.subr.mxu0 0.0
  %4161 = vmatpush1.msra.mxu0 0.0
  %4162 = vmatprep.subr.mxu0 0.0
  %4163 = vmatpush1.msra.mxu0 0.0
  %4164 = vmatprep.subr.mxu0 0.0
  %4165 = vmatpush1.msra.mxu0 0.0
  %4166 = vmatprep.subr.mxu0 0.0
  %4167 = vmatpush1.msra.mxu0 0.0
  %4168 = vmatprep.subr.mxu0 0.0
  %4169 = vmatpush1.msra.mxu0 0.0
  %4170 = vmatprep.subr.mxu0 0.0
  %4171 = vmatpush1.msra.mxu0 0.0
  %4172 = vmatprep.subr.mxu0 0.0
  %4173 = vmatpush1.msra.mxu0 0.0
  %4174 = vmatprep.subr.mxu0 0.0
  %4175 = vmatpush1.msra.mxu0 0.0
  %4176 = vmatprep.subr.mxu0 0.0
  %4177 = vmatpush1.msra.mxu0 0.0
  %4178 = vmatprep.subr.mxu0 0.0
  %4179 = vmatpush1.msra.mxu0 0.0
  %4180 = vmatprep.subr.mxu0 0.0
  %4181 = vmatpush1.msra.mxu0 0.0
  %4182 = vmatprep.subr.mxu0 0.0
  %4183 = vmatpush1.msra.mxu0 0.0
  %4184 = vmatprep.subr.mxu0 0.0
  %4185 = vmatpush1.msra.mxu0 0.0
  %4186 = vmatprep.subr.mxu0 0.0
  %4187 = vmatpush1.msra.mxu0 0.0
  %4188 = vmatprep.subr.mxu0 0.0
  %4189 = vmatpush1.msra.mxu0 0.0
  %4190 = vmatprep.subr.mxu0 0.0
  %4191 = vmatpush1.msra.mxu0 0.0
  %4192 = vmatprep.subr.mxu0 0.0
  %4193 = vmatpush1.msra.mxu0 0.0
  %4194 = vmatprep.subr.mxu0 0.0
  %4195 = vmatpush1.msra.mxu0 0.0
  %4196 = vmatprep.subr.mxu0 0.0
  %4197 = vmatpush1.msra.mxu0 0.0
  %4198 = vmatprep.subr.mxu0 0.0
  %4199 = vmatpush1.msra.mxu0 0.0
  %4200 = vmatprep.subr.mxu0 0.0
  %4201 = vmatpush1.msra.mxu0 0.0
  %4202 = vmatprep.subr.mxu0 0.0
  %4203 = vmatpush1.msra.mxu0 0.0
  %4204 = vmatprep.subr.mxu0 0.0
  %4205 = vmatpush1.msra.mxu0 0.0
  %4206 = vmatprep.subr.mxu0 0.0
  %4207 = vmatpush1.msra.mxu0 0.0
  %4208 = vmatprep.subr.mxu0 0.0
  %4209 = vmatpush1.msra.mxu0 0.0
  %4210 = vmatprep.subr.mxu0 0.0
  %4211 = vmatpush1.msra.mxu0 0.0
  %4212 = vmatprep.subr.mxu0 0.0
  %4213 = vmatpush1.msra.mxu0 0.0
  %4214 = vmatprep.subr.mxu0 0.0
  %4215 = vmatpush1.msra.mxu0 0.0
  %4216 = vmatprep.subr.mxu0 0.0
  %4217 = vmatpush1.msra.mxu0 0.0
  %4218 = vmatprep.subr.mxu0 0.0
  %4219 = vmatpush1.msra.mxu0 0.0
  %4220 = vmatprep.mubr.f32.mxu0 0.0
  %4221 = vmatmul.mubr.f32.gmra.mrb[0].mxu0 %v4109
  %v4222 = vpop.f32.mrb[0].mxu0
  %v4223 = vadd.f32 %v4030, %v4222
  %v4224 = vpop.f32.mrb[0].mxu0
  %4225 = vmatprep.mubr.f32.mxu0 0.0
  %4226 = vmatmul.mubr.f32.gmra.mrb[0].mxu0 %v4112
  %v4227 = vpop.f32.mrb[0].mxu0
  %v4228 = vadd.f32 %v4035, %v4227
  %v4229 = vpop.f32.mrb[0].mxu0
  %4230 = vmatprep.mubr.f32.mxu0 0.0
  %4231 = vmatmul.mubr.f32.gmra.mrb[0].mxu0 %v4115
  %v4232 = vpop.f32.mrb[0].mxu0
  %v4233 = vadd.f32 %v4040, %v4232
  %v4234 = vpop.f32.mrb[0].mxu0
  %4235 = vmatprep.mubr.f32.mxu0 0.0
  %4236 = vmatmul.mubr.f32.gmra.mrb[0].mxu0 %v4118
  %v4237 = vpop.f32.mrb[0].mxu0
  %v4238 = vadd.f32 %v4045, %v4237
  %v4239 = vpop.f32.mrb[0].mxu0
  %4240 = vmatprep.mubr.f32.mxu0 0.0
  %4241 = vmatmul.mubr.f32.gmra.mrb[0].mxu0 %v4121
  %v4242 = vpop.f32.mrb[0].mxu0
  %v4243 = vadd.f32 %v4050, %v4242
  %v4244 = vpop.f32.mrb[0].mxu0
  %4245 = vmatprep.mubr.f32.mxu0 0.0
  %4246 = vmatmul.mubr.f32.gmra.mrb[0].mxu0 %v4124
  %v4247 = vpop.f32.mrb[0].mxu0
  %v4248 = vadd.f32 %v4055, %v4247
  %v4249 = vpop.f32.mrb[0].mxu0
  %4250 = vmatprep.mubr.f32.mxu0 0.0
  %4251 = vmatmul.mubr.f32.gmra.mrb[0].mxu0 %v4127
  %v4252 = vpop.f32.mrb[0].mxu0
  %v4253 = vadd.f32 %v4060, %v4252
  %v4254 = vpop.f32.mrb[0].mxu0
  %4255 = vmatprep.mubr.f32.mxu0 0.0
  %4256 = vmatmul.mubr.f32.gmra.mrb[0].mxu0 %v4130
  %v4257 = vpop.f32.mrb[0].mxu0
  %v4258 = vadd.f32 %v4065, %v4257
  %v4259 = vpop.f32.mrb[0].mxu0
  %4260 = vmatprep.mubr.f32.mxu0 0.0
  %4261 = vmatmul.mubr.f32.gmra.mrb[0].mxu0 %v4133
  %v4262 = vpop.f32.mrb[0].mxu0
  %v4263 = vadd.f32 %v4070, %v4262
  %v4264 = vpop.f32.mrb[0].mxu0
  %4265 = vmatprep.mubr.f32.mxu0 0.0
  %4266 = vmatmul.mubr.f32.gmra.mrb[0].mxu0 %v4136
  %v4267 = vpop.f32.mrb[0].mxu0
  %v4268 = vadd.f32 %v4075, %v4267
  %v4269 = vpop.f32.mrb[0].mxu0
  %4270 = vmatprep.mubr.f32.mxu0 0.0
  %4271 = vmatmul.mubr.f32.gmra.mrb[0].mxu0 %v4139
  %v4272 = vpop.f32.mrb[0].mxu0
  %v4273 = vadd.f32 %v4080, %v4272
  %v4274 = vpop.f32.mrb[0].mxu0
  %4275 = vmatprep.mubr.f32.mxu0 0.0
  %4276 = vmatmul.mubr.f32.gmra.mrb[0].mxu0 %v4142
  %v4277 = vpop.f32.mrb[0].mxu0
  %v4278 = vadd.f32 %v4085, %v4277
  %v4279 = vpop.f32.mrb[0].mxu0
  %4280 = vmatprep.mubr.f32.mxu0 0.0
  %4281 = vmatmul.mubr.f32.gmra.mrb[0].mxu0 %v4145
  %v4282 = vpop.f32.mrb[0].mxu0
  %v4283 = vadd.f32 %v4090, %v4282
  %v4284 = vpop.f32.mrb[0].mxu0
  %4285 = vmatprep.mubr.f32.mxu0 0.0
  %4286 = vmatmul.mubr.f32.gmra.mrb[0].mxu0 %v4148
  %v4287 = vpop.f32.mrb[0].mxu0
  %v4288 = vadd.f32 %v4095, %v4287
  %v4289 = vpop.f32.mrb[0].mxu0
  %4290 = vmatprep.mubr.f32.mxu0 0.0
  %4291 = vmatmul.mubr.f32.gmra.mrb[0].mxu0 %v4151
  %v4292 = vpop.f32.mrb[0].mxu0
  %v4293 = vadd.f32 %v4100, %v4292
  %v4294 = vpop.f32.mrb[0].mxu0
  %4295 = vmatprep.mubr.f32.mxu0 0.0
  %4296 = vmatmul.mubr.f32.gmra.mrb[0].mxu0 %v4154
  %v4297 = vpop.f32.mrb[0].mxu0
  %v4298 = vadd.f32 %v4105, %v4297
  %v4299 = vpop.f32.mrb[0].mxu0
  %4300 = vdwg.mxu0
  %v4301 = vld [vmem:[%s1 + $0x130] sm:$0x1]
  %4303 = vset.pattern.permute.xlu0 0
  %4304 = vperm.xlu0 %4303, %v3894
  %v4305 = vpop.permute.xlu0 %4304
  %4308 = vset.pattern.permute.xlu0 0
  %4309 = vperm.xlu0 %4308, %v3895
  %v4310 = vpop.permute.xlu0 %4309
  %4313 = vset.pattern.permute.xlu0 0
  %4314 = vperm.xlu0 %4313, %v3896
  %v4315 = vpop.permute.xlu0 %4314
  %4318 = vset.pattern.permute.xlu0 0
  %4319 = vperm.xlu0 %4318, %v3897
  %v4320 = vpop.permute.xlu0 %4319
  %4323 = vset.pattern.permute.xlu0 0
  %4324 = vperm.xlu0 %4323, %v3898
  %v4325 = vpop.permute.xlu0 %4324
  %4328 = vset.pattern.permute.xlu0 0
  %4329 = vperm.xlu0 %4328, %v3899
  %v4330 = vpop.permute.xlu0 %4329
  %4333 = vset.pattern.permute.xlu0 0
  %4334 = vperm.xlu0 %4333, %v3900
  %v4335 = vpop.permute.xlu0 %4334
  %4338 = vset.pattern.permute.xlu0 0
  %4339 = vperm.xlu0 %4338, %v3901
  %v4340 = vpop.permute.xlu0 %4339
  %4343 = vset.pattern.permute.xlu0 0
  %4344 = vperm.xlu0 %4343, %v3902
  %v4345 = vpop.permute.xlu0 %4344
  %4348 = vset.pattern.permute.xlu0 0
  %4349 = vperm.xlu0 %4348, %v3903
  %v4350 = vpop.permute.xlu0 %4349
  %4353 = vset.pattern.permute.xlu0 0
  %4354 = vperm.xlu0 %4353, %v3904
  %v4355 = vpop.permute.xlu0 %4354
  %4358 = vset.pattern.permute.xlu0 0
  %4359 = vperm.xlu0 %4358, %v3905
  %v4360 = vpop.permute.xlu0 %4359
  %4363 = vset.pattern.permute.xlu0 0
  %4364 = vperm.xlu0 %4363, %v3906
  %v4365 = vpop.permute.xlu0 %4364
  %4368 = vset.pattern.permute.xlu0 0
  %4369 = vperm.xlu0 %4368, %v3907
  %v4370 = vpop.permute.xlu0 %4369
  %4373 = vset.pattern.permute.xlu0 0
  %4374 = vperm.xlu0 %4373, %v3908
  %v4375 = vpop.permute.xlu0 %4374
  %4378 = vset.pattern.permute.xlu0 0
  %4379 = vperm.xlu0 %4378, %v3909
  %v4380 = vpop.permute.xlu0 %4379
  %v4382 = vlaneseq
  %v4383 = vshrl.u32 %v4382, 7
  %v4384 = vsub.s32 0, %v4383
  %v4385 = vrot.slane %v4301, %v4384
  %v4386 = vmul.f32 %v4305, %v4385
  %v4387 = vmul.f32 %v4310, %v4385
  %v4388 = vmul.f32 %v4315, %v4385
  %v4389 = vmul.f32 %v4320, %v4385
  %v4390 = vmul.f32 %v4325, %v4385
  %v4391 = vmul.f32 %v4330, %v4385
  %v4392 = vmul.f32 %v4335, %v4385
  %v4393 = vmul.f32 %v4340, %v4385
  %v4394 = vmul.f32 %v4345, %v4385
  %v4395 = vmul.f32 %v4350, %v4385
  %v4396 = vmul.f32 %v4355, %v4385
  %v4397 = vmul.f32 %v4360, %v4385
  %v4398 = vmul.f32 %v4365, %v4385
  %v4399 = vmul.f32 %v4370, %v4385
  %v4400 = vmul.f32 %v4375, %v4385
  %v4401 = vmul.f32 %v4380, %v4385
  %v4402 = vadd.f32 %v4223, %v4386
  %v4403 = vadd.f32 %v4228, %v4387
  %v4404 = vadd.f32 %v4233, %v4388
  %v4405 = vadd.f32 %v4238, %v4389
  %v4406 = vadd.f32 %v4243, %v4390
  %v4407 = vadd.f32 %v4248, %v4391
  %v4408 = vadd.f32 %v4253, %v4392
  %v4409 = vadd.f32 %v4258, %v4393
  %v4410 = vadd.f32 %v4263, %v4394
  %v4411 = vadd.f32 %v4268, %v4395
  %v4412 = vadd.f32 %v4273, %v4396
  %v4413 = vadd.f32 %v4278, %v4397
  %v4414 = vadd.f32 %v4283, %v4398
  %v4415 = vadd.f32 %v4288, %v4399
  %v4416 = vadd.f32 %v4293, %v4400
  %v4417 = vadd.f32 %v4298, %v4401
  %v4418 = vld [vmem:[%s1 + $0x138] sm:$0x1]
  %v4419 = vlaneseq
  %v4420 = vshrl.u32 %v4419, 7
  %v4421 = vsub.s32 0, %v4420
  %v4422 = vrot.slane %v4418, %v4421
  %v4423 = vadd.f32 %v4402, %v4422
  %v4424 = vadd.f32 %v4403, %v4422
  %v4425 = vadd.f32 %v4404, %v4422
  %v4426 = vadd.f32 %v4405, %v4422
  %v4427 = vadd.f32 %v4406, %v4422
  %v4428 = vadd.f32 %v4407, %v4422
  %v4429 = vadd.f32 %v4408, %v4422
  %v4430 = vadd.f32 %v4409, %v4422
  %v4431 = vadd.f32 %v4410, %v4422
  %v4432 = vadd.f32 %v4411, %v4422
  %v4433 = vadd.f32 %v4412, %v4422
  %v4434 = vadd.f32 %v4413, %v4422
  %v4435 = vadd.f32 %v4414, %v4422
  %v4436 = vadd.f32 %v4415, %v4422
  %v4437 = vadd.f32 %v4416, %v4422
  %v4438 = vadd.f32 %v4417, %v4422
  %v4439 = vld [vmem:[%s1 + $0x140] sm:$0x1]
  %v4440 = vld [vmem:[%s1 + $0x148] sm:$0x1]
  %v4441 = vsel %vm1148, %v4423, 0.0
  %4442 = vadd.xlane.f32.xlu0 %v4441
  %v4443 = vpop.xlane.xlu0 %4442
  %v4444 = vsel %vm1148, %v4424, 0.0
  %4445 = vadd.xlane.f32.xlu0 %v4444
  %v4446 = vpop.xlane.xlu0 %4445
  %v4447 = vsel %vm1148, %v4425, 0.0
  %4448 = vadd.xlane.f32.xlu0 %v4447
  %v4449 = vpop.xlane.xlu0 %4448
  %v4450 = vsel %vm1148, %v4426, 0.0
  %4451 = vadd.xlane.f32.xlu0 %v4450
  %v4452 = vpop.xlane.xlu0 %4451
  %v4453 = vsel %vm1148, %v4427, 0.0
  %4454 = vadd.xlane.f32.xlu0 %v4453
  %v4455 = vpop.xlane.xlu0 %4454
  %v4456 = vsel %vm1148, %v4428, 0.0
  %4457 = vadd.xlane.f32.xlu0 %v4456
  %v4458 = vpop.xlane.xlu0 %4457
  %v4459 = vsel %vm1148, %v4429, 0.0
  %4460 = vadd.xlane.f32.xlu0 %v4459
  %v4461 = vpop.xlane.xlu0 %4460
  %v4462 = vsel %vm1148, %v4430, 0.0
  %4463 = vadd.xlane.f32.xlu0 %v4462
  %v4464 = vpop.xlane.xlu0 %4463
  %v4465 = vsel %vm1148, %v4431, 0.0
  %4466 = vadd.xlane.f32.xlu0 %v4465
  %v4467 = vpop.xlane.xlu0 %4466
  %v4468 = vsel %vm1148, %v4432, 0.0
  %4469 = vadd.xlane.f32.xlu0 %v4468
  %v4470 = vpop.xlane.xlu0 %4469
  %v4471 = vsel %vm1148, %v4433, 0.0
  %4472 = vadd.xlane.f32.xlu0 %v4471
  %v4473 = vpop.xlane.xlu0 %4472
  %v4474 = vsel %vm1148, %v4434, 0.0
  %4475 = vadd.xlane.f32.xlu0 %v4474
  %v4476 = vpop.xlane.xlu0 %4475
  %v4477 = vsel %vm1148, %v4435, 0.0
  %4478 = vadd.xlane.f32.xlu0 %v4477
  %v4479 = vpop.xlane.xlu0 %4478
  %v4480 = vsel %vm1148, %v4436, 0.0
  %4481 = vadd.xlane.f32.xlu0 %v4480
  %v4482 = vpop.xlane.xlu0 %4481
  %v4483 = vsel %vm1148, %v4437, 0.0
  %4484 = vadd.xlane.f32.xlu0 %v4483
  %v4485 = vpop.xlane.xlu0 %4484
  %v4486 = vsel %vm1148, %v4438, 0.0
  %4487 = vadd.xlane.f32.xlu0 %v4486
  %v4488 = vpop.xlane.xlu0 %4487
  %v4489 = vmul.f32 %v4443, %v1197
  %v4490 = vmul.f32 %v4446, %v1197
  %v4491 = vmul.f32 %v4449, %v1197
  %v4492 = vmul.f32 %v4452, %v1197
  %v4493 = vmul.f32 %v4455, %v1197
  %v4494 = vmul.f32 %v4458, %v1197
  %v4495 = vmul.f32 %v4461, %v1197
  %v4496 = vmul.f32 %v4464, %v1197
  %v4497 = vmul.f32 %v4467, %v1197
  %v4498 = vmul.f32 %v4470, %v1197
  %v4499 = vmul.f32 %v4473, %v1197
  %v4500 = vmul.f32 %v4476, %v1197
  %v4501 = vmul.f32 %v4479, %v1197
  %v4502 = vmul.f32 %v4482, %v1197
  %v4503 = vmul.f32 %v4485, %v1197
  %v4504 = vmul.f32 %v4488, %v1197
  %v4505 = vsub.f32 %v4423, %v4489
  %v4506 = vsub.f32 %v4424, %v4490
  %v4507 = vsub.f32 %v4425, %v4491
  %v4508 = vsub.f32 %v4426, %v4492
  %v4509 = vsub.f32 %v4427, %v4493
  %v4510 = vsub.f32 %v4428, %v4494
  %v4511 = vsub.f32 %v4429, %v4495
  %v4512 = vsub.f32 %v4430, %v4496
  %v4513 = vsub.f32 %v4431, %v4497
  %v4514 = vsub.f32 %v4432, %v4498
  %v4515 = vsub.f32 %v4433, %v4499
  %v4516 = vsub.f32 %v4434, %v4500
  %v4517 = vsub.f32 %v4435, %v4501
  %v4518 = vsub.f32 %v4436, %v4502
  %v4519 = vsub.f32 %v4437, %v4503
  %v4520 = vsub.f32 %v4438, %v4504
  %v4521 = vmul.f32 %v4505, %v4505
  %v4522 = vmul.f32 %v4506, %v4506
  %v4523 = vmul.f32 %v4507, %v4507
  %v4524 = vmul.f32 %v4508, %v4508
  %v4525 = vmul.f32 %v4509, %v4509
  %v4526 = vmul.f32 %v4510, %v4510
  %v4527 = vmul.f32 %v4511, %v4511
  %v4528 = vmul.f32 %v4512, %v4512
  %v4529 = vmul.f32 %v4513, %v4513
  %v4530 = vmul.f32 %v4514, %v4514
  %v4531 = vmul.f32 %v4515, %v4515
  %v4532 = vmul.f32 %v4516, %v4516
  %v4533 = vmul.f32 %v4517, %v4517
  %v4534 = vmul.f32 %v4518, %v4518
  %v4535 = vmul.f32 %v4519, %v4519
  %v4536 = vmul.f32 %v4520, %v4520
  %v4537 = vsel %vm1148, %v4521, 0.0
  %4538 = vadd.xlane.f32.xlu0 %v4537
  %v4539 = vpop.xlane.xlu0 %4538
  %v4540 = vsel %vm1148, %v4522, 0.0
  %4541 = vadd.xlane.f32.xlu0 %v4540
  %v4542 = vpop.xlane.xlu0 %4541
  %v4543 = vsel %vm1148, %v4523, 0.0
  %4544 = vadd.xlane.f32.xlu0 %v4543
  %v4545 = vpop.xlane.xlu0 %4544
  %v4546 = vsel %vm1148, %v4524, 0.0
  %4547 = vadd.xlane.f32.xlu0 %v4546
  %v4548 = vpop.xlane.xlu0 %4547
  %v4549 = vsel %vm1148, %v4525, 0.0
  %4550 = vadd.xlane.f32.xlu0 %v4549
  %v4551 = vpop.xlane.xlu0 %4550
  %v4552 = vsel %vm1148, %v4526, 0.0
  %4553 = vadd.xlane.f32.xlu0 %v4552
  %v4554 = vpop.xlane.xlu0 %4553
  %v4555 = vsel %vm1148, %v4527, 0.0
  %4556 = vadd.xlane.f32.xlu0 %v4555
  %v4557 = vpop.xlane.xlu0 %4556
  %v4558 = vsel %vm1148, %v4528, 0.0
  %4559 = vadd.xlane.f32.xlu0 %v4558
  %v4560 = vpop.xlane.xlu0 %4559
  %v4561 = vsel %vm1148, %v4529, 0.0
  %4562 = vadd.xlane.f32.xlu0 %v4561
  %v4563 = vpop.xlane.xlu0 %4562
  %v4564 = vsel %vm1148, %v4530, 0.0
  %4565 = vadd.xlane.f32.xlu0 %v4564
  %v4566 = vpop.xlane.xlu0 %4565
  %v4567 = vsel %vm1148, %v4531, 0.0
  %4568 = vadd.xlane.f32.xlu0 %v4567
  %v4569 = vpop.xlane.xlu0 %4568
  %v4570 = vsel %vm1148, %v4532, 0.0
  %4571 = vadd.xlane.f32.xlu0 %v4570
  %v4572 = vpop.xlane.xlu0 %4571
  %v4573 = vsel %vm1148, %v4533, 0.0
  %4574 = vadd.xlane.f32.xlu0 %v4573
  %v4575 = vpop.xlane.xlu0 %4574
  %v4576 = vsel %vm1148, %v4534, 0.0
  %4577 = vadd.xlane.f32.xlu0 %v4576
  %v4578 = vpop.xlane.xlu0 %4577
  %v4579 = vsel %vm1148, %v4535, 0.0
  %4580 = vadd.xlane.f32.xlu0 %v4579
  %v4581 = vpop.xlane.xlu0 %4580
  %v4582 = vsel %vm1148, %v4536, 0.0
  %4583 = vadd.xlane.f32.xlu0 %v4582
  %v4584 = vpop.xlane.xlu0 %4583
  %v4585 = vmul.f32 %v4539, %v1197
  %v4586 = vmul.f32 %v4542, %v1197
  %v4587 = vmul.f32 %v4545, %v1197
  %v4588 = vmul.f32 %v4548, %v1197
  %v4589 = vmul.f32 %v4551, %v1197
  %v4590 = vmul.f32 %v4554, %v1197
  %v4591 = vmul.f32 %v4557, %v1197
  %v4592 = vmul.f32 %v4560, %v1197
  %v4593 = vmul.f32 %v4563, %v1197
  %v4594 = vmul.f32 %v4566, %v1197
  %v4595 = vmul.f32 %v4569, %v1197
  %v4596 = vmul.f32 %v4572, %v1197
  %v4597 = vmul.f32 %v4575, %v1197
  %v4598 = vmul.f32 %v4578, %v1197
  %v4599 = vmul.f32 %v4581, %v1197
  %v4600 = vmul.f32 %v4584, %v1197
  %v4601 = vadd.f32 %v4585, 1e-05
  %v4602 = vadd.f32 %v4586, 1e-05
  %v4603 = vadd.f32 %v4587, 1e-05
  %v4604 = vadd.f32 %v4588, 1e-05
  %v4605 = vadd.f32 %v4589, 1e-05
  %v4606 = vadd.f32 %v4590, 1e-05
  %v4607 = vadd.f32 %v4591, 1e-05
  %v4608 = vadd.f32 %v4592, 1e-05
  %v4609 = vadd.f32 %v4593, 1e-05
  %v4610 = vadd.f32 %v4594, 1e-05
  %v4611 = vadd.f32 %v4595, 1e-05
  %v4612 = vadd.f32 %v4596, 1e-05
  %v4613 = vadd.f32 %v4597, 1e-05
  %v4614 = vadd.f32 %v4598, 1e-05
  %v4615 = vadd.f32 %v4599, 1e-05
  %v4616 = vadd.f32 %v4600, 1e-05
  %v4617 = vrsqrt.pop %v4601
  %v4618 = vrsqrt.pop %v4602
  %v4619 = vrsqrt.pop %v4603
  %v4620 = vrsqrt.pop %v4604
  %v4621 = vrsqrt.pop %v4605
  %v4622 = vrsqrt.pop %v4606
  %v4623 = vrsqrt.pop %v4607
  %v4624 = vrsqrt.pop %v4608
  %v4625 = vrsqrt.pop %v4609
  %v4626 = vrsqrt.pop %v4610
  %v4627 = vrsqrt.pop %v4611
  %v4628 = vrsqrt.pop %v4612
  %v4629 = vrsqrt.pop %v4613
  %v4630 = vrsqrt.pop %v4614
  %v4631 = vrsqrt.pop %v4615
  %v4632 = vrsqrt.pop %v4616
  %v4633 = vmul.f32 %v4505, %v4617
  %v4634 = vmul.f32 %v4506, %v4618
  %v4635 = vmul.f32 %v4507, %v4619
  %v4636 = vmul.f32 %v4508, %v4620
  %v4637 = vmul.f32 %v4509, %v4621
  %v4638 = vmul.f32 %v4510, %v4622
  %v4639 = vmul.f32 %v4511, %v4623
  %v4640 = vmul.f32 %v4512, %v4624
  %v4641 = vmul.f32 %v4513, %v4625
  %v4642 = vmul.f32 %v4514, %v4626
  %v4643 = vmul.f32 %v4515, %v4627
  %v4644 = vmul.f32 %v4516, %v4628
  %v4645 = vmul.f32 %v4517, %v4629
  %v4646 = vmul.f32 %v4518, %v4630
  %v4647 = vmul.f32 %v4519, %v4631
  %v4648 = vmul.f32 %v4520, %v4632
  %v4649 = vlaneseq
  %v4650 = vshrl.u32 %v4649, 7
  %v4651 = vsub.s32 0, %v4650
  %v4652 = vrot.slane %v4439, %v4651
  %v4653 = vmul.f32 %v4633, %v4652
  %v4654 = vmul.f32 %v4634, %v4652
  %v4655 = vmul.f32 %v4635, %v4652
  %v4656 = vmul.f32 %v4636, %v4652
  %v4657 = vmul.f32 %v4637, %v4652
  %v4658 = vmul.f32 %v4638, %v4652
  %v4659 = vmul.f32 %v4639, %v4652
  %v4660 = vmul.f32 %v4640, %v4652
  %v4661 = vmul.f32 %v4641, %v4652
  %v4662 = vmul.f32 %v4642, %v4652
  %v4663 = vmul.f32 %v4643, %v4652
  %v4664 = vmul.f32 %v4644, %v4652
  %v4665 = vmul.f32 %v4645, %v4652
  %v4666 = vmul.f32 %v4646, %v4652
  %v4667 = vmul.f32 %v4647, %v4652
  %v4668 = vmul.f32 %v4648, %v4652
  %v4669 = vlaneseq
  %v4670 = vshrl.u32 %v4669, 7
  %v4671 = vsub.s32 0, %v4670
  %v4672 = vrot.slane %v4440, %v4671
  %v4673 = vadd.f32 %v4653, %v4672
  %v4674 = vadd.f32 %v4654, %v4672
  %v4675 = vadd.f32 %v4655, %v4672
  %v4676 = vadd.f32 %v4656, %v4672
  %v4677 = vadd.f32 %v4657, %v4672
  %v4678 = vadd.f32 %v4658, %v4672
  %v4679 = vadd.f32 %v4659, %v4672
  %v4680 = vadd.f32 %v4660, %v4672
  %v4681 = vadd.f32 %v4661, %v4672
  %v4682 = vadd.f32 %v4662, %v4672
  %v4683 = vadd.f32 %v4663, %v4672
  %v4684 = vadd.f32 %v4664, %v4672
  %v4685 = vadd.f32 %v4665, %v4672
  %v4686 = vadd.f32 %v4666, %v4672
  %v4687 = vadd.f32 %v4667, %v4672
  %v4688 = vadd.f32 %v4668, %v4672
  %v4689 = vmax.f32 %v4673, 0.0
  %v4690 = vmax.f32 %v4674, 0.0
  %v4691 = vmax.f32 %v4675, 0.0
  %v4692 = vmax.f32 %v4676, 0.0
  %v4693 = vmax.f32 %v4677, 0.0
  %v4694 = vmax.f32 %v4678, 0.0
  %v4695 = vmax.f32 %v4679, 0.0
  %v4696 = vmax.f32 %v4680, 0.0
  %v4697 = vmax.f32 %v4681, 0.0
  %v4698 = vmax.f32 %v4682, 0.0
  %v4699 = vmax.f32 %v4683, 0.0
  %v4700 = vmax.f32 %v4684, 0.0
  %v4701 = vmax.f32 %v4685, 0.0
  %v4702 = vmax.f32 %v4686, 0.0
  %v4703 = vmax.f32 %v4687, 0.0
  %v4704 = vmax.f32 %v4688, 0.0
  %v4705 = vld [vmem:[%s1 + $0x150] sm:$0xf]
  %v4706 = vld [vmem:[%s1 + $0x158] sm:$0x1]
  %v4707 = vlaneseq
  %v4708 = vshrl.u32 %v4707, 7
  %v4709 = vsub.s32 0, %v4708
  %v4710 = vrot.slane %v4706, %v4709
  %v4712 = vsel %vm1148, %v4689, 0
  %v4715 = vsel %vm1148, %v4690, 0
  %v4718 = vsel %vm1148, %v4691, 0
  %v4721 = vsel %vm1148, %v4692, 0
  %v4724 = vsel %vm1148, %v4693, 0
  %v4727 = vsel %vm1148, %v4694, 0
  %v4730 = vsel %vm1148, %v4695, 0
  %v4733 = vsel %vm1148, %v4696, 0
  %v4736 = vsel %vm1148, %v4697, 0
  %v4739 = vsel %vm1148, %v4698, 0
  %v4742 = vsel %vm1148, %v4699, 0
  %v4745 = vsel %vm1148, %v4700, 0
  %v4748 = vsel %vm1148, %v4701, 0
  %v4751 = vsel %vm1148, %v4702, 0
  %v4754 = vsel %vm1148, %v4703, 0
  %v4757 = vsel %vm1148, %v4704, 0
  %v4760 = vsel %vm1468, %v4705, 0
  %4762 = vmatprep.subr.mxu0 0.0
  %4763 = vmatpush1.msra.mxu0 %v4760
  %4764 = vmatprep.subr.mxu0 0.0
  %4765 = vmatpush1.msra.mxu0 0.0
  %4766 = vmatprep.subr.mxu0 0.0
  %4767 = vmatpush1.msra.mxu0 0.0
  %4768 = vmatprep.subr.mxu0 0.0
  %4769 = vmatpush1.msra.mxu0 0.0
  %4770 = vmatprep.subr.mxu0 0.0
  %4771 = vmatpush1.msra.mxu0 0.0
  %4772 = vmatprep.subr.mxu0 0.0
  %4773 = vmatpush1.msra.mxu0 0.0
  %4774 = vmatprep.subr.mxu0 0.0
  %4775 = vmatpush1.msra.mxu0 0.0
  %4776 = vmatprep.subr.mxu0 0.0
  %4777 = vmatpush1.msra.mxu0 0.0
  %4778 = vmatprep.subr.mxu0 0.0
  %4779 = vmatpush1.msra.mxu0 0.0
  %4780 = vmatprep.subr.mxu0 0.0
  %4781 = vmatpush1.msra.mxu0 0.0
  %4782 = vmatprep.subr.mxu0 0.0
  %4783 = vmatpush1.msra.mxu0 0.0
  %4784 = vmatprep.subr.mxu0 0.0
  %4785 = vmatpush1.msra.mxu0 0.0
  %4786 = vmatprep.subr.mxu0 0.0
  %4787 = vmatpush1.msra.mxu0 0.0
  %4788 = vmatprep.subr.mxu0 0.0
  %4789 = vmatpush1.msra.mxu0 0.0
  %4790 = vmatprep.subr.mxu0 0.0
  %4791 = vmatpush1.msra.mxu0 0.0
  %4792 = vmatprep.subr.mxu0 0.0
  %4793 = vmatpush1.msra.mxu0 0.0
  %4794 = vmatprep.subr.mxu0 0.0
  %4795 = vmatpush1.msra.mxu0 0.0
  %4796 = vmatprep.subr.mxu0 0.0
  %4797 = vmatpush1.msra.mxu0 0.0
  %4798 = vmatprep.subr.mxu0 0.0
  %4799 = vmatpush1.msra.mxu0 0.0
  %4800 = vmatprep.subr.mxu0 0.0
  %4801 = vmatpush1.msra.mxu0 0.0
  %4802 = vmatprep.subr.mxu0 0.0
  %4803 = vmatpush1.msra.mxu0 0.0
  %4804 = vmatprep.subr.mxu0 0.0
  %4805 = vmatpush1.msra.mxu0 0.0
  %4806 = vmatprep.subr.mxu0 0.0
  %4807 = vmatpush1.msra.mxu0 0.0
  %4808 = vmatprep.subr.mxu0 0.0
  %4809 = vmatpush1.msra.mxu0 0.0
  %4810 = vmatprep.subr.mxu0 0.0
  %4811 = vmatpush1.msra.mxu0 0.0
  %4812 = vmatprep.subr.mxu0 0.0
  %4813 = vmatpush1.msra.mxu0 0.0
  %4814 = vmatprep.subr.mxu0 0.0
  %4815 = vmatpush1.msra.mxu0 0.0
  %4816 = vmatprep.subr.mxu0 0.0
  %4817 = vmatpush1.msra.mxu0 0.0
  %4818 = vmatprep.subr.mxu0 0.0
  %4819 = vmatpush1.msra.mxu0 0.0
  %4820 = vmatprep.subr.mxu0 0.0
  %4821 = vmatpush1.msra.mxu0 0.0
  %4822 = vmatprep.subr.mxu0 0.0
  %4823 = vmatpush1.msra.mxu0 0.0
  %4824 = vmatprep.subr.mxu0 0.0
  %4825 = vmatpush1.msra.mxu0 0.0
  %4826 = vmatprep.mubr.f32.mxu0 0.0
  %4827 = vmatmul.mubr.f32.gmra.mrb[0].mxu0 %v4712
  %v4828 = vpop.f32.mrb[0].mxu0
  %v4829 = vadd.f32 %v4710, %v4828
  %v4830 = vpop.f32.mrb[0].mxu0
  %4831 = vmatprep.mubr.f32.mxu0 0.0
  %4832 = vmatmul.mubr.f32.gmra.mrb[0].mxu0 %v4715
  %v4833 = vpop.f32.mrb[0].mxu0
  %v4834 = vadd.f32 %v4710, %v4833
  %v4835 = vpop.f32.mrb[0].mxu0
  %4836 = vmatprep.mubr.f32.mxu0 0.0
  %4837 = vmatmul.mubr.f32.gmra.mrb[0].mxu0 %v4718
  %v4838 = vpop.f32.mrb[0].mxu0
  %v4839 = vadd.f32 %v4710, %v4838
  %v4840 = vpop.f32.mrb[0].mxu0
  %4841 = vmatprep.mubr.f32.mxu0 0.0
  %4842 = vmatmul.mubr.f32.gmra.mrb[0].mxu0 %v4721
  %v4843 = vpop.f32.mrb[0].mxu0
  %v4844 = vadd.f32 %v4710, %v4843
  %v4845 = vpop.f32.mrb[0].mxu0
  %4846 = vmatprep.mubr.f32.mxu0 0.0
  %4847 = vmatmul.mubr.f32.gmra.mrb[0].mxu0 %v4724
  %v4848 = vpop.f32.mrb[0].mxu0
  %v4849 = vadd.f32 %v4710, %v4848
  %v4850 = vpop.f32.mrb[0].mxu0
  %4851 = vmatprep.mubr.f32.mxu0 0.0
  %4852 = vmatmul.mubr.f32.gmra.mrb[0].mxu0 %v4727
  %v4853 = vpop.f32.mrb[0].mxu0
  %v4854 = vadd.f32 %v4710, %v4853
  %v4855 = vpop.f32.mrb[0].mxu0
  %4856 = vmatprep.mubr.f32.mxu0 0.0
  %4857 = vmatmul.mubr.f32.gmra.mrb[0].mxu0 %v4730
  %v4858 = vpop.f32.mrb[0].mxu0
  %v4859 = vadd.f32 %v4710, %v4858
  %v4860 = vpop.f32.mrb[0].mxu0
  %4861 = vmatprep.mubr.f32.mxu0 0.0
  %4862 = vmatmul.mubr.f32.gmra.mrb[0].mxu0 %v4733
  %v4863 = vpop.f32.mrb[0].mxu0
  %v4864 = vadd.f32 %v4710, %v4863
  %v4865 = vpop.f32.mrb[0].mxu0
  %4866 = vmatprep.mubr.f32.mxu0 0.0
  %4867 = vmatmul.mubr.f32.gmra.mrb[0].mxu0 %v4736
  %v4868 = vpop.f32.mrb[0].mxu0
  %v4869 = vadd.f32 %v4710, %v4868
  %v4870 = vpop.f32.mrb[0].mxu0
  %4871 = vmatprep.mubr.f32.mxu0 0.0
  %4872 = vmatmul.mubr.f32.gmra.mrb[0].mxu0 %v4739
  %v4873 = vpop.f32.mrb[0].mxu0
  %v4874 = vadd.f32 %v4710, %v4873
  %v4875 = vpop.f32.mrb[0].mxu0
  %4876 = vmatprep.mubr.f32.mxu0 0.0
  %4877 = vmatmul.mubr.f32.gmra.mrb[0].mxu0 %v4742
  %v4878 = vpop.f32.mrb[0].mxu0
  %v4879 = vadd.f32 %v4710, %v4878
  %v4880 = vpop.f32.mrb[0].mxu0
  %4881 = vmatprep.mubr.f32.mxu0 0.0
  %4882 = vmatmul.mubr.f32.gmra.mrb[0].mxu0 %v4745
  %v4883 = vpop.f32.mrb[0].mxu0
  %v4884 = vadd.f32 %v4710, %v4883
  %v4885 = vpop.f32.mrb[0].mxu0
  %4886 = vmatprep.mubr.f32.mxu0 0.0
  %4887 = vmatmul.mubr.f32.gmra.mrb[0].mxu0 %v4748
  %v4888 = vpop.f32.mrb[0].mxu0
  %v4889 = vadd.f32 %v4710, %v4888
  %v4890 = vpop.f32.mrb[0].mxu0
  %4891 = vmatprep.mubr.f32.mxu0 0.0
  %4892 = vmatmul.mubr.f32.gmra.mrb[0].mxu0 %v4751
  %v4893 = vpop.f32.mrb[0].mxu0
  %v4894 = vadd.f32 %v4710, %v4893
  %v4895 = vpop.f32.mrb[0].mxu0
  %4896 = vmatprep.mubr.f32.mxu0 0.0
  %4897 = vmatmul.mubr.f32.gmra.mrb[0].mxu0 %v4754
  %v4898 = vpop.f32.mrb[0].mxu0
  %v4899 = vadd.f32 %v4710, %v4898
  %v4900 = vpop.f32.mrb[0].mxu0
  %4901 = vmatprep.mubr.f32.mxu0 0.0
  %4902 = vmatmul.mubr.f32.gmra.mrb[0].mxu0 %v4757
  %v4903 = vpop.f32.mrb[0].mxu0
  %v4904 = vadd.f32 %v4710, %v4903
  %v4905 = vpop.f32.mrb[0].mxu0
  %4906 = vdwg.mxu0
  %v4907 = vsub.f32 0.0, %v4829
  %v4908 = vsub.f32 0.0, %v4834
  %v4909 = vsub.f32 0.0, %v4839
  %v4910 = vsub.f32 0.0, %v4844
  %v4911 = vsub.f32 0.0, %v4849
  %v4912 = vsub.f32 0.0, %v4854
  %v4913 = vsub.f32 0.0, %v4859
  %v4914 = vsub.f32 0.0, %v4864
  %v4915 = vsub.f32 0.0, %v4869
  %v4916 = vsub.f32 0.0, %v4874
  %v4917 = vsub.f32 0.0, %v4879
  %v4918 = vsub.f32 0.0, %v4884
  %v4919 = vsub.f32 0.0, %v4889
  %v4920 = vsub.f32 0.0, %v4894
  %v4921 = vsub.f32 0.0, %v4899
  %v4922 = vsub.f32 0.0, %v4904
  %v4923 = vmul.f32 %v4907, 1.442695
  %v4924 = vpow.pop %v4923
  %v4925 = vmul.f32 %v4908, 1.442695
  %v4926 = vpow.pop %v4925
  %v4927 = vmul.f32 %v4909, 1.442695
  %v4928 = vpow.pop %v4927
  %v4929 = vmul.f32 %v4910, 1.442695
  %v4930 = vpow.pop %v4929
  %v4931 = vmul.f32 %v4911, 1.442695
  %v4932 = vpow.pop %v4931
  %v4933 = vmul.f32 %v4912, 1.442695
  %v4934 = vpow.pop %v4933
  %v4935 = vmul.f32 %v4913, 1.442695
  %v4936 = vpow.pop %v4935
  %v4937 = vmul.f32 %v4914, 1.442695
  %v4938 = vpow.pop %v4937
  %v4939 = vmul.f32 %v4915, 1.442695
  %v4940 = vpow.pop %v4939
  %v4941 = vmul.f32 %v4916, 1.442695
  %v4942 = vpow.pop %v4941
  %v4943 = vmul.f32 %v4917, 1.442695
  %v4944 = vpow.pop %v4943
  %v4945 = vmul.f32 %v4918, 1.442695
  %v4946 = vpow.pop %v4945
  %v4947 = vmul.f32 %v4919, 1.442695
  %v4948 = vpow.pop %v4947
  %v4949 = vmul.f32 %v4920, 1.442695
  %v4950 = vpow.pop %v4949
  %v4951 = vmul.f32 %v4921, 1.442695
  %v4952 = vpow.pop %v4951
  %v4953 = vmul.f32 %v4922, 1.442695
  %v4954 = vpow.pop %v4953
  %v4955 = vadd.f32 %v4924, 1.0
  %v4956 = vadd.f32 %v4926, 1.0
  %v4957 = vadd.f32 %v4928, 1.0
  %v4958 = vadd.f32 %v4930, 1.0
  %v4959 = vadd.f32 %v4932, 1.0
  %v4960 = vadd.f32 %v4934, 1.0
  %v4961 = vadd.f32 %v4936, 1.0
  %v4962 = vadd.f32 %v4938, 1.0
  %v4963 = vadd.f32 %v4940, 1.0
  %v4964 = vadd.f32 %v4942, 1.0
  %v4965 = vadd.f32 %v4944, 1.0
  %v4966 = vadd.f32 %v4946, 1.0
  %v4967 = vadd.f32 %v4948, 1.0
  %v4968 = vadd.f32 %v4950, 1.0
  %v4969 = vadd.f32 %v4952, 1.0
  %v4970 = vadd.f32 %v4954, 1.0
  %v4971 = vrcp.pop %v4955
  %v4972 = vrcp.pop %v4956
  %v4973 = vrcp.pop %v4957
  %v4974 = vrcp.pop %v4958
  %v4975 = vrcp.pop %v4959
  %v4976 = vrcp.pop %v4960
  %v4977 = vrcp.pop %v4961
  %v4978 = vrcp.pop %v4962
  %v4979 = vrcp.pop %v4963
  %v4980 = vrcp.pop %v4964
  %v4981 = vrcp.pop %v4965
  %v4982 = vrcp.pop %v4966
  %v4983 = vrcp.pop %v4967
  %v4984 = vrcp.pop %v4968
  %v4985 = vrcp.pop %v4969
  %v4986 = vrcp.pop %v4970
  %5003 = vrot.lane.b32.xlu0 %v4971, 5
  %v5004 = vpop.permute.xlu0 %5003
  %5005 = vrot.lane.b32.xlu0 %v4972, 5
  %v5006 = vpop.permute.xlu0 %5005
  %5007 = vrot.lane.b32.xlu0 %v4973, 5
  %v5008 = vpop.permute.xlu0 %5007
  %5009 = vrot.lane.b32.xlu0 %v4974, 5
  %v5010 = vpop.permute.xlu0 %5009
  %5011 = vrot.lane.b32.xlu0 %v4975, 5
  %v5012 = vpop.permute.xlu0 %5011
  %5013 = vrot.lane.b32.xlu0 %v4976, 5
  %v5014 = vpop.permute.xlu0 %5013
  %5015 = vrot.lane.b32.xlu0 %v4977, 5
  %v5016 = vpop.permute.xlu0 %5015
  %5017 = vrot.lane.b32.xlu0 %v4978, 5
  %v5018 = vpop.permute.xlu0 %5017
  %5019 = vrot.lane.b32.xlu0 %v4979, 5
  %v5020 = vpop.permute.xlu0 %5019
  %5021 = vrot.lane.b32.xlu0 %v4980, 5
  %v5022 = vpop.permute.xlu0 %5021
  %5023 = vrot.lane.b32.xlu0 %v4981, 5
  %v5024 = vpop.permute.xlu0 %5023
  %5025 = vrot.lane.b32.xlu0 %v4982, 5
  %v5026 = vpop.permute.xlu0 %5025
  %5027 = vrot.lane.b32.xlu0 %v4983, 5
  %v5028 = vpop.permute.xlu0 %5027
  %5029 = vrot.lane.b32.xlu0 %v4984, 5
  %v5030 = vpop.permute.xlu0 %5029
  %5031 = vrot.lane.b32.xlu0 %v4985, 5
  %v5032 = vpop.permute.xlu0 %5031
  %5033 = vrot.lane.b32.xlu0 %v4986, 5
  %v5034 = vpop.permute.xlu0 %5033
  %vm5051 = vcmask 48168
  %5052 = vst.msk [vmem:[%s2] sm:$0xff] %vm5051, %v5004
  %5053 = vst.msk [vmem:[%s2 + $0x8] sm:$0xff] %vm5051, %v5006
  %5054 = vst.msk [vmem:[%s2 + $0x10] sm:$0xff] %vm5051, %v5008
  %5055 = vst.msk [vmem:[%s2 + $0x18] sm:$0xff] %vm5051, %v5010
  %5056 = vst.msk [vmem:[%s2 + $0x20] sm:$0xff] %vm5051, %v5012
  %5057 = vst.msk [vmem:[%s2 + $0x28] sm:$0xff] %vm5051, %v5014
  %5058 = vst.msk [vmem:[%s2 + $0x30] sm:$0xff] %vm5051, %v5016
  %5059 = vst.msk [vmem:[%s2 + $0x38] sm:$0xff] %vm5051, %v5018
  %5060 = vst.msk [vmem:[%s2 + $0x40] sm:$0xff] %vm5051, %v5020
  %5061 = vst.msk [vmem:[%s2 + $0x48] sm:$0xff] %vm5051, %v5022
  %5062 = vst.msk [vmem:[%s2 + $0x50] sm:$0xff] %vm5051, %v5024
  %5063 = vst.msk [vmem:[%s2 + $0x58] sm:$0xff] %vm5051, %v5026
  %5064 = vst.msk [vmem:[%s2 + $0x60] sm:$0xff] %vm5051, %v5028
  %5065 = vst.msk [vmem:[%s2 + $0x68] sm:$0xff] %vm5051, %v5030
  %5066 = vst.msk [vmem:[%s2 + $0x70] sm:$0xff] %vm5051, %v5032
  %5067 = vst.msk [vmem:[%s2 + $0x78] sm:$0xff] %vm5051, %v5034
  // Predicated region
  $region10: #{tpu_custom_call.1} parent=0 // pred_check
    _
  $region11: #{tpu_custom_call.1} parent=0 // pred_check_branch
    %5069 = sbr.rel (0) target = $region13
  $region12: #{tpu_custom_call.1} parent=0 // pred_region
    _
  $region13: #{tpu_custom_call.1} parent=0 // pred_fallthru
    _
  // Predicated region
  $region14: #{tpu_custom_call.1} parent=0 // pred_check
    _
  $region15: #{tpu_custom_call.1} parent=0 // pred_check_branch
    %5071 = sbr.rel (0) target = $region17
  $region16: #{tpu_custom_call.1} parent=0 // pred_region
    _
  $region17: #{tpu_custom_call.1} parent=0 // pred_fallthru
    _

</llo_original>
